<compile_context>
chip_gen: v7x
topology: tpu7x:2x2x1
jax: 0.10.0
libtpu: 0.0.40
codegen_flags: <defaults>
</compile_context>

<pallas_src>
import functools

import jax
import jax.numpy as jnp
import numpy as np
from jax.experimental import pallas as pl
from jax.experimental.pallas import tpu as pltpu

_VMEM_LIMIT = 32 * 1024 * 1024  # fits the scoped-VMEM default on v5e/v6e/v7x


# ----------------------------------------------------------------------------
# Kernel 1: fused qkv projection + multi-head softmax attention (per batch),
#           optionally fused with the output projection (sr == 1 path).
# ----------------------------------------------------------------------------
def _fused_attn_kernel(x_ref, w_ref, *rest, num_heads, scale, fuse_proj):
    if fuse_proj:
        wp_ref, bp_ref, o_ref = rest
    else:
        (o_ref,) = rest

    C = x_ref.shape[-1]
    hd = C // num_heads

    x = x_ref[...].astype(jnp.bfloat16)
    w = w_ref[...].astype(jnp.bfloat16)
    # one wide bf16 dot for q, k, v (f32 accumulation)
    qkv = jnp.dot(x, w, preferred_element_type=jnp.float32)      # (Np, 3C)

    heads = []
    for h in range(num_heads):                                    # static unroll
        # fold the softmax scale into q (cheaper than scaling the (Np,Np) scores)
        q = (qkv[:, h * hd:(h + 1) * hd] * scale).astype(jnp.bfloat16)
        k = qkv[:, C + h * hd:C + (h + 1) * hd].astype(jnp.bfloat16)
        v = qkv[:, 2 * C + h * hd:2 * C + (h + 1) * hd].astype(jnp.bfloat16)
        s = jnp.dot(q, k.T, preferred_element_type=jnp.float32)   # (Np, Np) f32
        s = s - jnp.max(s, axis=-1, keepdims=True)
        p = jnp.exp(s)
        # softmax divide -> EUP approximate reciprocal (frees the VALU slot)
        p = p * pl.reciprocal(jnp.sum(p, axis=-1, keepdims=True), approx=True)
        heads.append(jnp.dot(p.astype(jnp.bfloat16), v,
                             preferred_element_type=jnp.float32))

    # heads concatenated along lanes -> (Np, C) layout, no extra transpose
    o = jnp.concatenate(heads, axis=-1)

    if fuse_proj:                               # sr == 1: proj fused right here
        o = jnp.dot(o.astype(jnp.bfloat16), wp_ref[...].astype(jnp.bfloat16),
                    preferred_element_type=jnp.float32) + bp_ref[...]

    o_ref[...] = o.astype(o_ref.dtype)


def fused_attention(xs, w_qkv, w_proj=None, b_proj=None, *, num_heads, scale):
    B, Np, C = xs.shape
    fuse_proj = w_proj is not None
    kernel = functools.partial(_fused_attn_kernel, num_heads=num_heads,
                               scale=scale, fuse_proj=fuse_proj)

    in_specs = [pl.BlockSpec((None, Np, C), lambda b: (b, 0, 0)),
                pl.BlockSpec((C, 3 * C), lambda b: (0, 0))]
    args = [xs, w_qkv]
    if fuse_proj:
        in_specs += [pl.BlockSpec((C, C), lambda b: (0, 0)),
                     pl.BlockSpec((1, C), lambda b: (0, 0))]
        args += [w_proj, b_proj]

    return pl.pallas_call(
        kernel,
        grid=(B,),
        in_specs=in_specs,
        out_specs=pl.BlockSpec((None, Np, C), lambda b: (b, 0, 0)),
        out_shape=jax.ShapeDtypeStruct((B, Np, C), xs.dtype),
        compiler_params=pltpu.CompilerParams(
            dimension_semantics=("parallel",),
            vmem_limit_bytes=_VMEM_LIMIT),
    )(*args)


# ----------------------------------------------------------------------------
# Kernel 2 (sr > 1): fused depthwise ConvTranspose2d (stride==kernel)
#                    + LayerNorm + output projection, written directly in the
#                    final pixel-interleaved token order.
# ----------------------------------------------------------------------------
def _upsample_ln_proj_kernel(o_ref, wct_ref, bct_ref, g_ref, bln_ref,
                             wp_ref, bp_ref, out_ref, *, sr, eps):
    # o_ref:   (T, C)  attention-output rows of this low-res row tile (T=rows*w)
    # out_ref: (rows, sr, w, sr*C)  -> flattens to final (rows*sr*w*sr, C) order
    C = o_ref.shape[-1]
    rows, _, w, _ = out_ref.shape

    o = o_ref[...]
    wct = wct_ref[...]                      # (sr*sr, C), tap k = ki*sr + kj
    bct = bct_ref[...]                      # (1, C)
    g = g_ref[...]                          # (1, C)
    bln = bln_ref[...]                      # (1, C)
    wp = wp_ref[...].astype(jnp.bfloat16)   # (C, C)
    bp = bp_ref[...]                        # (1, C)

    for ki in range(sr):                    # static unroll over tap rows
        lane_groups = []
        for kj in range(sr):                # static unroll over tap cols
            kk = ki * sr + kj
            # stride==kernel ConvTranspose => disjoint patches: scale + bias
            u = o * wct[kk:kk + 1, :] + bct
            mu = jnp.mean(u, axis=-1, keepdims=True)
            uc = u - mu
            var = jnp.mean(uc * uc, axis=-1, keepdims=True)
            un = uc * jax.lax.rsqrt(var + eps) * g + bln
            lane_groups.append(
                jnp.dot(un.astype(jnp.bfloat16), wp,
                        preferred_element_type=jnp.float32) + bp)
        # kj-pieces side by side along lanes -> (T, sr*C), one lane-dense store
        q = jnp.concatenate(lane_groups, axis=-1)
        out_ref[:, ki, :, :] = q.reshape(rows, w, sr * C).astype(out_ref.dtype)


def upsample_ln_proj(o, w_ct, b_ct, g_ln, b_ln, w_proj, b_proj,
                     *, h, w, sr, eps=1e-5, target_rows=512):
    B, Np, C = o.shape
    assert Np == h * w
    KK = sr * sr

    # low-res rows per grid step (whole rows keep in/out blocks contiguous)
    rows = max(1, min(h, target_rows // max(w, 1)))
    while h % rows:
        rows -= 1
    T = rows * w
    n_tiles = h // rows
    if n_tiles > 1 and T % 8:               # keep TPU sublane alignment
        rows, T, n_tiles = h, h * w, 1

    kernel = functools.partial(_upsample_ln_proj_kernel, sr=sr, eps=eps)
    out = pl.pallas_call(
        kernel,
        grid=(B, n_tiles),
        in_specs=[pl.BlockSpec((None, T, C), lambda b, j: (b, j, 0)),
                  pl.BlockSpec((KK, C), lambda b, j: (0, 0)),
                  pl.BlockSpec((1, C), lambda b, j: (0, 0)),
                  pl.BlockSpec((1, C), lambda b, j: (0, 0)),
                  pl.BlockSpec((1, C), lambda b, j: (0, 0)),
                  pl.BlockSpec((C, C), lambda b, j: (0, 0)),
                  pl.BlockSpec((1, C), lambda b, j: (0, 0))],
        out_specs=pl.BlockSpec((None, rows, sr, w, sr * C),
                               lambda b, j: (b, j, 0, 0, 0)),
        out_shape=jax.ShapeDtypeStruct((B, h, sr, w, sr * C), o.dtype),
        compiler_params=pltpu.CompilerParams(
            dimension_semantics=("parallel", "parallel"),
            vmem_limit_bytes=_VMEM_LIMIT),
    )(o, w_ct, b_ct, g_ln, b_ln, w_proj, b_proj)

    # (B, h, sr, w, sr*C) -> (B, h*sr*w*sr, C): contiguous (free) reshape; the
    # kernel already wrote the pixel-interleaved order, no XLA permute needed.
    return out.reshape(B, h * sr * w * sr, C)


# ----------------------------------------------------------------------------
# Module forward (Pallas kernels + minimal XLA layout glue)
# ----------------------------------------------------------------------------
def global_sparse_attn(x, params, H, W, num_heads, sr):
    B, N, C = x.shape
    assert N == H * W, "token count must equal H*W"
    assert C % num_heads == 0, "dim must be divisible by num_heads"
    assert H % sr == 0 and W % sr == 0, "H and W must be divisible by sr"
    scale = (C // num_heads) ** (-0.5)

    if sr > 1:
        # AvgPool2d(kernel_size=1, stride=sr) == strided spatial subsampling
        # TODO(synk): this gather stays a tiny XLA strided slice on the input.
        h, w = H // sr, W // sr
        xs = x.reshape(B, H, W, C)[:, ::sr, ::sr, :].reshape(B, h * w, C)
        o = fused_attention(xs, params["w_qkv"], num_heads=num_heads, scale=scale)
        # fused ConvTranspose2d + LayerNorm + proj (attn/proj dropout p=0)
        out = upsample_ln_proj(o, params["w_ct"], params["b_ct"],
                               params["g_ln"], params["b_ln"],
                               params["w_proj"], params["b_proj"],
                               h=h, w=w, sr=sr)
    else:
        # single fused kernel: qkv + attention + output projection
        out = fused_attention(x, params["w_qkv"], params["w_proj"],
                              params["b_proj"], num_heads=num_heads, scale=scale)
    return out


# ----------------------------------------------------------------------------
# Pure-JAX reference (mirrors the PyTorch forward exactly)
# ----------------------------------------------------------------------------
def reference(x, params, H, W, num_heads, sr):
    B, N, C = x.shape
    hd = C // num_heads
    scale = hd ** (-0.5)
    hp = jax.lax.Precision.HIGHEST

    xt = x
    if sr > 1:
        xc = x.transpose(0, 2, 1).reshape(B, C, H, W)
        xc = xc[:, :, ::sr, ::sr]
        xt = xc.reshape(B, C, -1).transpose(0, 2, 1)
    Np = xt.shape[1]

    qkv = jnp.einsum("bnc,cd->bnd", xt, params["w_qkv"], precision=hp)
    qkv = qkv.reshape(B, Np, 3, num_heads, hd).transpose(2, 0, 3, 1, 4)
    q, k, v = qkv[0], qkv[1], qkv[2]
    s = jnp.einsum("bhqd,bhkd->bhqk", q, k, precision=hp) * scale
    p = jax.nn.softmax(s, axis=-1)
    o = jnp.einsum("bhqk,bhkd->bhqd", p, v, precision=hp)
    o = o.transpose(0, 2, 1, 3).reshape(B, Np, C)

    if sr > 1:
        h, w = H // sr, W // sr
        oc = o.transpose(0, 2, 1).reshape(B, C, h, w)
        wct = params["w_ct_torch"][:, 0]                 # (C, sr, sr)
        up = (oc[:, :, :, None, :, None] *
              wct[None, :, None, :, None, :])            # (B,C,h,sr,w,sr)
        up = up.reshape(B, C, H, W) + params["b_ct"].reshape(1, C, 1, 1)
        y = up.reshape(B, C, -1).transpose(0, 2, 1)
        mu = jnp.mean(y, axis=-1, keepdims=True)
        var = jnp.mean((y - mu) ** 2, axis=-1, keepdims=True)
        y = (y - mu) / jnp.sqrt(var + 1e-5)
        y = y * params["g_ln"].reshape(1, 1, C) + params["b_ln"].reshape(1, 1, C)
    else:
        y = o

    out = jnp.einsum("bnc,cd->bnd", y, params["w_proj"], precision=hp) + params["b_proj"]
    return out


# ----------------------------------------------------------------------------
if __name__ == "__main__":
    B, H, W, C = 2, 16, 16, 32
    num_heads = 4
    N = H * W

    key = jax.random.PRNGKey(0)
    k_x, k_qkv, k_proj, k_pb, k_ct, k_ctb, k_g, k_bln = jax.random.split(key, 8)

    x = jax.random.normal(k_x, (B, N, C), dtype=jnp.float32)

    w_qkv = 0.1 * jax.random.normal(k_qkv, (C, 3 * C), dtype=jnp.float32)
    w_proj = 0.1 * jax.random.normal(k_proj, (C, C), dtype=jnp.float32)
    b_proj = 0.1 * jax.random.normal(k_pb, (C,), dtype=jnp.float32)
    g_ln = 1.0 + 0.1 * jax.random.normal(k_g, (C,), dtype=jnp.float32)
    b_ln = 0.1 * jax.random.normal(k_bln, (C,), dtype=jnp.float32)

    for sr in (2, 1):
        # ConvTranspose2d weight, PyTorch layout (in_ch, out_ch/groups, kH, kW)
        w_ct_torch = 0.5 * jax.random.normal(k_ct, (C, 1, sr, sr), dtype=jnp.float32)
        b_ct = 0.1 * jax.random.normal(k_ctb, (C,), dtype=jnp.float32)

        params = {
            "w_qkv": w_qkv,                                      # qkv_bias=False
            "w_proj": w_proj,
            "b_proj": b_proj.reshape(1, C),
            # kernel-friendly conv-transpose taps: (sr*sr, C), k = ki*sr + kj
            "w_ct": w_ct_torch[:, 0].transpose(1, 2, 0).reshape(sr * sr, C),
            "b_ct": b_ct.reshape(1, C),
            "g_ln": g_ln.reshape(1, C),
            "b_ln": b_ln.reshape(1, C),
        }
        ref_params = {
            "w_qkv": w_qkv, "w_proj": w_proj, "b_proj": b_proj,
            "w_ct_torch": w_ct_torch, "b_ct": b_ct, "g_ln": g_ln, "b_ln": b_ln,
        }

        fwd = jax.jit(functools.partial(global_sparse_attn, H=H, W=W,
                                        num_heads=num_heads, sr=sr))
        out = jax.block_until_ready(fwd(x, params))
        ref = jax.block_until_ready(reference(x, ref_params, H, W, num_heads, sr))

        assert out.shape == (B, N, C), out.shape
        assert np.all(np.isfinite(np.asarray(out)))
        np.testing.assert_allclose(np.asarray(out), np.asarray(ref),
                                   rtol=1e-2, atol=1e-2)

    print("KERNEL_OK")
</pallas_src>

<mosaic_0001>
module attributes {stable_mosaic.version = 11 : i64} {
  func.func @_fused_attn_kernel(%arg0: i32, %arg1: memref<1x64x32xf32, #tpu.memory_space<vmem>>, %arg2: memref<32x96xf32, #tpu.memory_space<vmem>>, %arg3: memref<1x64x32xf32, #tpu.memory_space<vmem>>) attributes {dimension_semantics = [#tpu.dimension_semantics<parallel>], iteration_bounds = array<i64: 2>, scalar_prefetch = 0 : i64, scratch_operands = 0 : i64, tpu.core_type = #tpu.core_type<tc>, window_params = [{transform_indices = @transform_0, window_bounds = array<i64: 1, 64, 32>}, {pipeline_mode = #tpu.pipeline_mode<synchronous>, transform_indices = @transform_1, window_bounds = array<i64: 32, 96>}, {transform_indices = @transform_2, window_bounds = array<i64: 1, 64, 32>}]} {
    %c0 = arith.constant 0 : index
    %c0_0 = arith.constant 0 : index
    %c0_1 = arith.constant 0 : index
    %0 = vector.load %arg1[%c0, %c0_0, %c0_1] : memref<1x64x32xf32, #tpu.memory_space<vmem>>, vector<1x64x32xf32>
    %1 = vector.shape_cast %0 : vector<1x64x32xf32> to vector<64x32xf32>
    %2 = arith.truncf %1 : vector<64x32xf32> to vector<64x32xbf16>
    %c0_2 = arith.constant 0 : index
    %c0_3 = arith.constant 0 : index
    %3 = vector.load %arg2[%c0_2, %c0_3] : memref<32x96xf32, #tpu.memory_space<vmem>>, vector<32x96xf32>
    %4 = arith.truncf %3 : vector<32x96xf32> to vector<32x96xbf16>
    %cst = arith.constant dense<0.000000e+00> : vector<64x96xf32>
    %5 = tpu.matmul %2, %4, %cst {dimension_numbers = #tpu.dot_dimension_numbers<[1], [0], [0], [1], [0, 0, 1, 1], [], []>} : vector<64x32xbf16>, vector<32x96xbf16>, vector<64x96xf32> -> vector<64x96xf32>
    %6 = vector.extract_strided_slice %5 {offsets = [0, 0], sizes = [64, 8], strides = [1, 1]} : vector<64x96xf32> to vector<64x8xf32>
    %cst_4 = arith.constant 0.353553385 : f32
    %7 = vector.broadcast %cst_4 : f32 to vector<64x8xf32>
    %8 = arith.mulf %6, %7 : vector<64x8xf32>
    %9 = arith.truncf %8 : vector<64x8xf32> to vector<64x8xbf16>
    %10 = vector.extract_strided_slice %5 {offsets = [0, 32], sizes = [64, 8], strides = [1, 1]} : vector<64x96xf32> to vector<64x8xf32>
    %11 = arith.truncf %10 : vector<64x8xf32> to vector<64x8xbf16>
    %12 = vector.extract_strided_slice %5 {offsets = [0, 64], sizes = [64, 8], strides = [1, 1]} : vector<64x96xf32> to vector<64x8xf32>
    %13 = arith.truncf %12 : vector<64x8xf32> to vector<64x8xbf16>
    %14 = tpu.transpose %11, [1, 0] : vector<64x8xbf16> -> vector<8x64xbf16>
    %cst_5 = arith.constant dense<0.000000e+00> : vector<64x64xf32>
    %15 = tpu.matmul %9, %14, %cst_5 {dimension_numbers = #tpu.dot_dimension_numbers<[1], [0], [0], [1], [0, 0, 1, 1], [], []>} : vector<64x8xbf16>, vector<8x64xbf16>, vector<64x64xf32> -> vector<64x64xf32>
    %cst_6 = arith.constant dense<0xFF800000> : vector<64xf32>
    %16 = vector.multi_reduction <maximumf>, %15, %cst_6 [1] : vector<64x64xf32> to vector<64xf32>
    %17 = vector.shape_cast %16 : vector<64xf32> to vector<64x1xf32>
    %18 = vector.broadcast %17 : vector<64x1xf32> to vector<64x64xf32>
    %19 = arith.subf %15, %18 : vector<64x64xf32>
    %20 = math.exp %19 : vector<64x64xf32>
    %cst_7 = arith.constant dense<0.000000e+00> : vector<64xf32>
    %21 = vector.multi_reduction <add>, %20, %cst_7 [1] : vector<64x64xf32> to vector<64xf32>
    %22 = vector.shape_cast %21 : vector<64xf32> to vector<64x1xf32>
    %23 = tpu.reciprocal %22 {approx = true} : vector<64x1xf32> -> vector<64x1xf32>
    %24 = vector.broadcast %23 : vector<64x1xf32> to vector<64x64xf32>
    %25 = arith.mulf %20, %24 : vector<64x64xf32>
    %26 = arith.truncf %25 : vector<64x64xf32> to vector<64x64xbf16>
    %cst_8 = arith.constant dense<0.000000e+00> : vector<64x8xf32>
    %27 = tpu.matmul %26, %13, %cst_8 {dimension_numbers = #tpu.dot_dimension_numbers<[1], [0], [0], [1], [0, 0, 1, 1], [], []>} : vector<64x64xbf16>, vector<64x8xbf16>, vector<64x8xf32> -> vector<64x8xf32>
    %28 = vector.extract_strided_slice %5 {offsets = [0, 8], sizes = [64, 8], strides = [1, 1]} : vector<64x96xf32> to vector<64x8xf32>
    %cst_9 = arith.constant 0.353553385 : f32
    %29 = vector.broadcast %cst_9 : f32 to vector<64x8xf32>
    %30 = arith.mulf %28, %29 : vector<64x8xf32>
    %31 = arith.truncf %30 : vector<64x8xf32> to vector<64x8xbf16>
    %32 = vector.extract_strided_slice %5 {offsets = [0, 40], sizes = [64, 8], strides = [1, 1]} : vector<64x96xf32> to vector<64x8xf32>
    %33 = arith.truncf %32 : vector<64x8xf32> to vector<64x8xbf16>
    %34 = vector.extract_strided_slice %5 {offsets = [0, 72], sizes = [64, 8], strides = [1, 1]} : vector<64x96xf32> to vector<64x8xf32>
    %35 = arith.truncf %34 : vector<64x8xf32> to vector<64x8xbf16>
    %36 = tpu.transpose %33, [1, 0] : vector<64x8xbf16> -> vector<8x64xbf16>
    %cst_10 = arith.constant dense<0.000000e+00> : vector<64x64xf32>
    %37 = tpu.matmul %31, %36, %cst_10 {dimension_numbers = #tpu.dot_dimension_numbers<[1], [0], [0], [1], [0, 0, 1, 1], [], []>} : vector<64x8xbf16>, vector<8x64xbf16>, vector<64x64xf32> -> vector<64x64xf32>
    %cst_11 = arith.constant dense<0xFF800000> : vector<64xf32>
    %38 = vector.multi_reduction <maximumf>, %37, %cst_11 [1] : vector<64x64xf32> to vector<64xf32>
    %39 = vector.shape_cast %38 : vector<64xf32> to vector<64x1xf32>
    %40 = vector.broadcast %39 : vector<64x1xf32> to vector<64x64xf32>
    %41 = arith.subf %37, %40 : vector<64x64xf32>
    %42 = math.exp %41 : vector<64x64xf32>
    %cst_12 = arith.constant dense<0.000000e+00> : vector<64xf32>
    %43 = vector.multi_reduction <add>, %42, %cst_12 [1] : vector<64x64xf32> to vector<64xf32>
    %44 = vector.shape_cast %43 : vector<64xf32> to vector<64x1xf32>
    %45 = tpu.reciprocal %44 {approx = true} : vector<64x1xf32> -> vector<64x1xf32>
    %46 = vector.broadcast %45 : vector<64x1xf32> to vector<64x64xf32>
    %47 = arith.mulf %42, %46 : vector<64x64xf32>
    %48 = arith.truncf %47 : vector<64x64xf32> to vector<64x64xbf16>
    %cst_13 = arith.constant dense<0.000000e+00> : vector<64x8xf32>
    %49 = tpu.matmul %48, %35, %cst_13 {dimension_numbers = #tpu.dot_dimension_numbers<[1], [0], [0], [1], [0, 0, 1, 1], [], []>} : vector<64x64xbf16>, vector<64x8xbf16>, vector<64x8xf32> -> vector<64x8xf32>
    %50 = vector.extract_strided_slice %5 {offsets = [0, 16], sizes = [64, 8], strides = [1, 1]} : vector<64x96xf32> to vector<64x8xf32>
    %cst_14 = arith.constant 0.353553385 : f32
    %51 = vector.broadcast %cst_14 : f32 to vector<64x8xf32>
    %52 = arith.mulf %50, %51 : vector<64x8xf32>
    %53 = arith.truncf %52 : vector<64x8xf32> to vector<64x8xbf16>
    %54 = vector.extract_strided_slice %5 {offsets = [0, 48], sizes = [64, 8], strides = [1, 1]} : vector<64x96xf32> to vector<64x8xf32>
    %55 = arith.truncf %54 : vector<64x8xf32> to vector<64x8xbf16>
    %56 = vector.extract_strided_slice %5 {offsets = [0, 80], sizes = [64, 8], strides = [1, 1]} : vector<64x96xf32> to vector<64x8xf32>
    %57 = arith.truncf %56 : vector<64x8xf32> to vector<64x8xbf16>
    %58 = tpu.transpose %55, [1, 0] : vector<64x8xbf16> -> vector<8x64xbf16>
    %cst_15 = arith.constant dense<0.000000e+00> : vector<64x64xf32>
    %59 = tpu.matmul %53, %58, %cst_15 {dimension_numbers = #tpu.dot_dimension_numbers<[1], [0], [0], [1], [0, 0, 1, 1], [], []>} : vector<64x8xbf16>, vector<8x64xbf16>, vector<64x64xf32> -> vector<64x64xf32>
    %cst_16 = arith.constant dense<0xFF800000> : vector<64xf32>
    %60 = vector.multi_reduction <maximumf>, %59, %cst_16 [1] : vector<64x64xf32> to vector<64xf32>
    %61 = vector.shape_cast %60 : vector<64xf32> to vector<64x1xf32>
    %62 = vector.broadcast %61 : vector<64x1xf32> to vector<64x64xf32>
    %63 = arith.subf %59, %62 : vector<64x64xf32>
    %64 = math.exp %63 : vector<64x64xf32>
    %cst_17 = arith.constant dense<0.000000e+00> : vector<64xf32>
    %65 = vector.multi_reduction <add>, %64, %cst_17 [1] : vector<64x64xf32> to vector<64xf32>
    %66 = vector.shape_cast %65 : vector<64xf32> to vector<64x1xf32>
    %67 = tpu.reciprocal %66 {approx = true} : vector<64x1xf32> -> vector<64x1xf32>
    %68 = vector.broadcast %67 : vector<64x1xf32> to vector<64x64xf32>
    %69 = arith.mulf %64, %68 : vector<64x64xf32>
    %70 = arith.truncf %69 : vector<64x64xf32> to vector<64x64xbf16>
    %cst_18 = arith.constant dense<0.000000e+00> : vector<64x8xf32>
    %71 = tpu.matmul %70, %57, %cst_18 {dimension_numbers = #tpu.dot_dimension_numbers<[1], [0], [0], [1], [0, 0, 1, 1], [], []>} : vector<64x64xbf16>, vector<64x8xbf16>, vector<64x8xf32> -> vector<64x8xf32>
    %72 = vector.extract_strided_slice %5 {offsets = [0, 24], sizes = [64, 8], strides = [1, 1]} : vector<64x96xf32> to vector<64x8xf32>
    %cst_19 = arith.constant 0.353553385 : f32
    %73 = vector.broadcast %cst_19 : f32 to vector<64x8xf32>
    %74 = arith.mulf %72, %73 : vector<64x8xf32>
    %75 = arith.truncf %74 : vector<64x8xf32> to vector<64x8xbf16>
    %76 = vector.extract_strided_slice %5 {offsets = [0, 56], sizes = [64, 8], strides = [1, 1]} : vector<64x96xf32> to vector<64x8xf32>
    %77 = arith.truncf %76 : vector<64x8xf32> to vector<64x8xbf16>
    %78 = vector.extract_strided_slice %5 {offsets = [0, 88], sizes = [64, 8], strides = [1, 1]} : vector<64x96xf32> to vector<64x8xf32>
    %79 = arith.truncf %78 : vector<64x8xf32> to vector<64x8xbf16>
    %80 = tpu.transpose %77, [1, 0] : vector<64x8xbf16> -> vector<8x64xbf16>
    %cst_20 = arith.constant dense<0.000000e+00> : vector<64x64xf32>
    %81 = tpu.matmul %75, %80, %cst_20 {dimension_numbers = #tpu.dot_dimension_numbers<[1], [0], [0], [1], [0, 0, 1, 1], [], []>} : vector<64x8xbf16>, vector<8x64xbf16>, vector<64x64xf32> -> vector<64x64xf32>
    %cst_21 = arith.constant dense<0xFF800000> : vector<64xf32>
    %82 = vector.multi_reduction <maximumf>, %81, %cst_21 [1] : vector<64x64xf32> to vector<64xf32>
    %83 = vector.shape_cast %82 : vector<64xf32> to vector<64x1xf32>
    %84 = vector.broadcast %83 : vector<64x1xf32> to vector<64x64xf32>
    %85 = arith.subf %81, %84 : vector<64x64xf32>
    %86 = math.exp %85 : vector<64x64xf32>
    %cst_22 = arith.constant dense<0.000000e+00> : vector<64xf32>
    %87 = vector.multi_reduction <add>, %86, %cst_22 [1] : vector<64x64xf32> to vector<64xf32>
    %88 = vector.shape_cast %87 : vector<64xf32> to vector<64x1xf32>
    %89 = tpu.reciprocal %88 {approx = true} : vector<64x1xf32> -> vector<64x1xf32>
    %90 = vector.broadcast %89 : vector<64x1xf32> to vector<64x64xf32>
    %91 = arith.mulf %86, %90 : vector<64x64xf32>
    %92 = arith.truncf %91 : vector<64x64xf32> to vector<64x64xbf16>
    %cst_23 = arith.constant dense<0.000000e+00> : vector<64x8xf32>
    %93 = tpu.matmul %92, %79, %cst_23 {dimension_numbers = #tpu.dot_dimension_numbers<[1], [0], [0], [1], [0, 0, 1, 1], [], []>} : vector<64x64xbf16>, vector<64x8xbf16>, vector<64x8xf32> -> vector<64x8xf32>
    %94 = tpu.concatenate %27, %49, %71, %93 in 1 : vector<64x8xf32>, vector<64x8xf32>, vector<64x8xf32>, vector<64x8xf32> -> vector<64x32xf32>
    %c0_24 = arith.constant 0 : index
    %c0_25 = arith.constant 0 : index
    %c0_26 = arith.constant 0 : index
    %95 = vector.load %arg3[%c0_24, %c0_25, %c0_26] : memref<1x64x32xf32, #tpu.memory_space<vmem>>, vector<1x64x32xf32>
    %96 = vector.shape_cast %95 : vector<1x64x32xf32> to vector<64x32xf32>
    %97 = vector.shape_cast %94 : vector<64x32xf32> to vector<1x64x32xf32>
    tpu.vector_store %arg3[%c0_24, %c0_25, %c0_26], %97 {strides = array<i32>} : memref<1x64x32xf32, #tpu.memory_space<vmem>>, vector<1x64x32xf32>,
    return
  }
  func.func @transform_0(%arg0: i32) -> (i32, i32, i32) {
    %c0_i32 = arith.constant 0 : i32
    %c0_i32_0 = arith.constant 0 : i32
    %c0_i32_1 = arith.constant 0 : i32
    return %arg0, %c0_i32, %c0_i32_0 : i32, i32, i32
  }
  func.func @transform_1(%arg0: i32) -> (i32, i32) {
    %c0_i32 = arith.constant 0 : i32
    %c0_i32_0 = arith.constant 0 : i32
    %c0_i32_1 = arith.constant 0 : i32
    return %c0_i32, %c0_i32_0 : i32, i32
  }
  func.func @transform_2(%arg0: i32) -> (i32, i32, i32) {
    %c0_i32 = arith.constant 0 : i32
    %c0_i32_0 = arith.constant 0 : i32
    %c0_i32_1 = arith.constant 0 : i32
    return %arg0, %c0_i32, %c0_i32_0 : i32, i32, i32
  }
}

module attributes {stable_mosaic.version = 11 : i64} {
  func.func @_upsample_ln_proj_kernel(%arg0: i32, %arg1: i32, %arg2: memref<1x64x32xf32, #tpu.memory_space<vmem>>, %arg3: memref<4x32xf32, #tpu.memory_space<vmem>>, %arg4: memref<1x32xf32, #tpu.memory_space<vmem>>, %arg5: memref<1x32xf32, #tpu.memory_space<vmem>>, %arg6: memref<1x32xf32, #tpu.memory_space<vmem>>, %arg7: memref<32x32xf32, #tpu.memory_space<vmem>>, %arg8: memref<1x32xf32, #tpu.memory_space<vmem>>, %arg9: memref<1x8x2x8x64xf32, #tpu.memory_space<vmem>>) attributes {dimension_semantics = [#tpu.dimension_semantics<parallel>, #tpu.dimension_semantics<parallel>], iteration_bounds = array<i64: 2, 1>, scalar_prefetch = 0 : i64, scratch_operands = 0 : i64, tpu.core_type = #tpu.core_type<tc>, window_params = [{transform_indices = @transform_0, window_bounds = array<i64: 1, 64, 32>}, {pipeline_mode = #tpu.pipeline_mode<synchronous>, transform_indices = @transform_1, window_bounds = array<i64: 4, 32>}, {pipeline_mode = #tpu.pipeline_mode<synchronous>, transform_indices = @transform_2, window_bounds = array<i64: 1, 32>}, {pipeline_mode = #tpu.pipeline_mode<synchronous>, transform_indices = @transform_3, window_bounds = array<i64: 1, 32>}, {pipeline_mode = #tpu.pipeline_mode<synchronous>, transform_indices = @transform_4, window_bounds = array<i64: 1, 32>}, {pipeline_mode = #tpu.pipeline_mode<synchronous>, transform_indices = @transform_5, window_bounds = array<i64: 32, 32>}, {pipeline_mode = #tpu.pipeline_mode<synchronous>, transform_indices = @transform_6, window_bounds = array<i64: 1, 32>}, {transform_indices = @transform_7, window_bounds = array<i64: 1, 8, 2, 8, 64>}]} {
    %c0 = arith.constant 0 : index
    %c0_0 = arith.constant 0 : index
    %c0_1 = arith.constant 0 : index
    %0 = vector.load %arg2[%c0, %c0_0, %c0_1] : memref<1x64x32xf32, #tpu.memory_space<vmem>>, vector<1x64x32xf32>
    %1 = vector.shape_cast %0 : vector<1x64x32xf32> to vector<64x32xf32>
    %c0_2 = arith.constant 0 : index
    %c0_3 = arith.constant 0 : index
    %2 = vector.load %arg3[%c0_2, %c0_3] : memref<4x32xf32, #tpu.memory_space<vmem>>, vector<4x32xf32>
    %c0_4 = arith.constant 0 : index
    %c0_5 = arith.constant 0 : index
    %3 = vector.load %arg4[%c0_4, %c0_5] : memref<1x32xf32, #tpu.memory_space<vmem>>, vector<1x32xf32>
    %c0_6 = arith.constant 0 : index
    %c0_7 = arith.constant 0 : index
    %4 = vector.load %arg5[%c0_6, %c0_7] : memref<1x32xf32, #tpu.memory_space<vmem>>, vector<1x32xf32>
    %c0_8 = arith.constant 0 : index
    %c0_9 = arith.constant 0 : index
    %5 = vector.load %arg6[%c0_8, %c0_9] : memref<1x32xf32, #tpu.memory_space<vmem>>, vector<1x32xf32>
    %c0_10 = arith.constant 0 : index
    %c0_11 = arith.constant 0 : index
    %6 = vector.load %arg7[%c0_10, %c0_11] : memref<32x32xf32, #tpu.memory_space<vmem>>, vector<32x32xf32>
    %7 = arith.truncf %6 : vector<32x32xf32> to vector<32x32xbf16>
    %c0_12 = arith.constant 0 : index
    %c0_13 = arith.constant 0 : index
    %8 = vector.load %arg8[%c0_12, %c0_13] : memref<1x32xf32, #tpu.memory_space<vmem>>, vector<1x32xf32>
    %9 = vector.extract_strided_slice %2 {offsets = [0, 0], sizes = [1, 32], strides = [1, 1]} : vector<4x32xf32> to vector<1x32xf32>
    %10 = vector.broadcast %9 : vector<1x32xf32> to vector<64x32xf32>
    %11 = arith.mulf %1, %10 : vector<64x32xf32>
    %12 = vector.broadcast %3 : vector<1x32xf32> to vector<64x32xf32>
    %13 = arith.addf %11, %12 : vector<64x32xf32>
    %cst = arith.constant dense<0.000000e+00> : vector<64xf32>
    %14 = vector.multi_reduction <add>, %13, %cst [1] : vector<64x32xf32> to vector<64xf32>
    %15 = vector.shape_cast %14 : vector<64xf32> to vector<64x1xf32>
    %cst_14 = arith.constant 3.200000e+01 : f32
    %16 = vector.broadcast %cst_14 : f32 to vector<64x1xf32>
    %17 = arith.divf %15, %16 : vector<64x1xf32>
    %18 = vector.broadcast %17 : vector<64x1xf32> to vector<64x32xf32>
    %19 = arith.subf %13, %18 : vector<64x32xf32>
    %20 = arith.mulf %19, %19 : vector<64x32xf32>
    %cst_15 = arith.constant dense<0.000000e+00> : vector<64xf32>
    %21 = vector.multi_reduction <add>, %20, %cst_15 [1] : vector<64x32xf32> to vector<64xf32>
    %22 = vector.shape_cast %21 : vector<64xf32> to vector<64x1xf32>
    %cst_16 = arith.constant 3.200000e+01 : f32
    %23 = vector.broadcast %cst_16 : f32 to vector<64x1xf32>
    %24 = arith.divf %22, %23 : vector<64x1xf32>
    %cst_17 = arith.constant 9.99999974E-6 : f32
    %25 = vector.broadcast %cst_17 : f32 to vector<64x1xf32>
    %26 = arith.addf %24, %25 : vector<64x1xf32>
    %27 = math.rsqrt %26 : vector<64x1xf32>
    %28 = vector.broadcast %27 : vector<64x1xf32> to vector<64x32xf32>
    %29 = arith.mulf %19, %28 : vector<64x32xf32>
    %30 = vector.broadcast %4 : vector<1x32xf32> to vector<64x32xf32>
    %31 = arith.mulf %29, %30 : vector<64x32xf32>
    %32 = vector.broadcast %5 : vector<1x32xf32> to vector<64x32xf32>
    %33 = arith.addf %31, %32 : vector<64x32xf32>
    %34 = arith.truncf %33 : vector<64x32xf32> to vector<64x32xbf16>
    %cst_18 = arith.constant dense<0.000000e+00> : vector<64x32xf32>
    %35 = tpu.matmul %34, %7, %cst_18 {dimension_numbers = #tpu.dot_dimension_numbers<[1], [0], [0], [1], [0, 0, 1, 1], [], []>} : vector<64x32xbf16>, vector<32x32xbf16>, vector<64x32xf32> -> vector<64x32xf32>
    %36 = vector.broadcast %8 : vector<1x32xf32> to vector<64x32xf32>
    %37 = arith.addf %35, %36 : vector<64x32xf32>
    %38 = vector.extract_strided_slice %2 {offsets = [1, 0], sizes = [1, 32], strides = [1, 1]} : vector<4x32xf32> to vector<1x32xf32>
    %39 = vector.broadcast %38 : vector<1x32xf32> to vector<64x32xf32>
    %40 = arith.mulf %1, %39 : vector<64x32xf32>
    %41 = vector.broadcast %3 : vector<1x32xf32> to vector<64x32xf32>
    %42 = arith.addf %40, %41 : vector<64x32xf32>
    %cst_19 = arith.constant dense<0.000000e+00> : vector<64xf32>
    %43 = vector.multi_reduction <add>, %42, %cst_19 [1] : vector<64x32xf32> to vector<64xf32>
    %44 = vector.shape_cast %43 : vector<64xf32> to vector<64x1xf32>
    %cst_20 = arith.constant 3.200000e+01 : f32
    %45 = vector.broadcast %cst_20 : f32 to vector<64x1xf32>
    %46 = arith.divf %44, %45 : vector<64x1xf32>
    %47 = vector.broadcast %46 : vector<64x1xf32> to vector<64x32xf32>
    %48 = arith.subf %42, %47 : vector<64x32xf32>
    %49 = arith.mulf %48, %48 : vector<64x32xf32>
    %cst_21 = arith.constant dense<0.000000e+00> : vector<64xf32>
    %50 = vector.multi_reduction <add>, %49, %cst_21 [1] : vector<64x32xf32> to vector<64xf32>
    %51 = vector.shape_cast %50 : vector<64xf32> to vector<64x1xf32>
    %cst_22 = arith.constant 3.200000e+01 : f32
    %52 = vector.broadcast %cst_22 : f32 to vector<64x1xf32>
    %53 = arith.divf %51, %52 : vector<64x1xf32>
    %cst_23 = arith.constant 9.99999974E-6 : f32
    %54 = vector.broadcast %cst_23 : f32 to vector<64x1xf32>
    %55 = arith.addf %53, %54 : vector<64x1xf32>
    %56 = math.rsqrt %55 : vector<64x1xf32>
    %57 = vector.broadcast %56 : vector<64x1xf32> to vector<64x32xf32>
    %58 = arith.mulf %48, %57 : vector<64x32xf32>
    %59 = vector.broadcast %4 : vector<1x32xf32> to vector<64x32xf32>
    %60 = arith.mulf %58, %59 : vector<64x32xf32>
    %61 = vector.broadcast %5 : vector<1x32xf32> to vector<64x32xf32>
    %62 = arith.addf %60, %61 : vector<64x32xf32>
    %63 = arith.truncf %62 : vector<64x32xf32> to vector<64x32xbf16>
    %cst_24 = arith.constant dense<0.000000e+00> : vector<64x32xf32>
    %64 = tpu.matmul %63, %7, %cst_24 {dimension_numbers = #tpu.dot_dimension_numbers<[1], [0], [0], [1], [0, 0, 1, 1], [], []>} : vector<64x32xbf16>, vector<32x32xbf16>, vector<64x32xf32> -> vector<64x32xf32>
    %65 = vector.broadcast %8 : vector<1x32xf32> to vector<64x32xf32>
    %66 = arith.addf %64, %65 : vector<64x32xf32>
    %67 = tpu.concatenate %37, %66 in 1 : vector<64x32xf32>, vector<64x32xf32> -> vector<64x64xf32>
    %68 = vector.shape_cast %67 : vector<64x64xf32> to vector<8x8x64xf32>
    %c0_25 = arith.constant 0 : index
    %c0_26 = arith.constant 0 : index
    %c0_27 = arith.constant 0 : index
    %c0_28 = arith.constant 0 : index
    %c0_29 = arith.constant 0 : index
    %69 = vector.load %arg9[%c0_25, %c0_26, %c0_27, %c0_28, %c0_29] : memref<1x8x2x8x64xf32, #tpu.memory_space<vmem>>, vector<1x8x1x8x64xf32>
    %70 = vector.shape_cast %69 : vector<1x8x1x8x64xf32> to vector<8x8x64xf32>
    %71 = vector.shape_cast %68 : vector<8x8x64xf32> to vector<1x8x1x8x64xf32>
    tpu.vector_store %arg9[%c0_25, %c0_26, %c0_27, %c0_28, %c0_29], %71 {strides = array<i32>} : memref<1x8x2x8x64xf32, #tpu.memory_space<vmem>>, vector<1x8x1x8x64xf32>,
    %72 = vector.extract_strided_slice %2 {offsets = [2, 0], sizes = [1, 32], strides = [1, 1]} : vector<4x32xf32> to vector<1x32xf32>
    %73 = vector.broadcast %72 : vector<1x32xf32> to vector<64x32xf32>
    %74 = arith.mulf %1, %73 : vector<64x32xf32>
    %75 = vector.broadcast %3 : vector<1x32xf32> to vector<64x32xf32>
    %76 = arith.addf %74, %75 : vector<64x32xf32>
    %cst_30 = arith.constant dense<0.000000e+00> : vector<64xf32>
    %77 = vector.multi_reduction <add>, %76, %cst_30 [1] : vector<64x32xf32> to vector<64xf32>
    %78 = vector.shape_cast %77 : vector<64xf32> to vector<64x1xf32>
    %cst_31 = arith.constant 3.200000e+01 : f32
    %79 = vector.broadcast %cst_31 : f32 to vector<64x1xf32>
    %80 = arith.divf %78, %79 : vector<64x1xf32>
    %81 = vector.broadcast %80 : vector<64x1xf32> to vector<64x32xf32>
    %82 = arith.subf %76, %81 : vector<64x32xf32>
    %83 = arith.mulf %82, %82 : vector<64x32xf32>
    %cst_32 = arith.constant dense<0.000000e+00> : vector<64xf32>
    %84 = vector.multi_reduction <add>, %83, %cst_32 [1] : vector<64x32xf32> to vector<64xf32>
    %85 = vector.shape_cast %84 : vector<64xf32> to vector<64x1xf32>
    %cst_33 = arith.constant 3.200000e+01 : f32
    %86 = vector.broadcast %cst_33 : f32 to vector<64x1xf32>
    %87 = arith.divf %85, %86 : vector<64x1xf32>
    %cst_34 = arith.constant 9.99999974E-6 : f32
    %88 = vector.broadcast %cst_34 : f32 to vector<64x1xf32>
    %89 = arith.addf %87, %88 : vector<64x1xf32>
    %90 = math.rsqrt %89 : vector<64x1xf32>
    %91 = vector.broadcast %90 : vector<64x1xf32> to vector<64x32xf32>
    %92 = arith.mulf %82, %91 : vector<64x32xf32>
    %93 = vector.broadcast %4 : vector<1x32xf32> to vector<64x32xf32>
    %94 = arith.mulf %92, %93 : vector<64x32xf32>
    %95 = vector.broadcast %5 : vector<1x32xf32> to vector<64x32xf32>
    %96 = arith.addf %94, %95 : vector<64x32xf32>
    %97 = arith.truncf %96 : vector<64x32xf32> to vector<64x32xbf16>
    %cst_35 = arith.constant dense<0.000000e+00> : vector<64x32xf32>
    %98 = tpu.matmul %97, %7, %cst_35 {dimension_numbers = #tpu.dot_dimension_numbers<[1], [0], [0], [1], [0, 0, 1, 1], [], []>} : vector<64x32xbf16>, vector<32x32xbf16>, vector<64x32xf32> -> vector<64x32xf32>
    %99 = vector.broadcast %8 : vector<1x32xf32> to vector<64x32xf32>
    %100 = arith.addf %98, %99 : vector<64x32xf32>
    %101 = vector.extract_strided_slice %2 {offsets = [3, 0], sizes = [1, 32], strides = [1, 1]} : vector<4x32xf32> to vector<1x32xf32>
    %102 = vector.broadcast %101 : vector<1x32xf32> to vector<64x32xf32>
    %103 = arith.mulf %1, %102 : vector<64x32xf32>
    %104 = vector.broadcast %3 : vector<1x32xf32> to vector<64x32xf32>
    %105 = arith.addf %103, %104 : vector<64x32xf32>
    %cst_36 = arith.constant dense<0.000000e+00> : vector<64xf32>
    %106 = vector.multi_reduction <add>, %105, %cst_36 [1] : vector<64x32xf32> to vector<64xf32>
    %107 = vector.shape_cast %106 : vector<64xf32> to vector<64x1xf32>
    %cst_37 = arith.constant 3.200000e+01 : f32
    %108 = vector.broadcast %cst_37 : f32 to vector<64x1xf32>
    %109 = arith.divf %107, %108 : vector<64x1xf32>
    %110 = vector.broadcast %109 : vector<64x1xf32> to vector<64x32xf32>
    %111 = arith.subf %105, %110 : vector<64x32xf32>
    %112 = arith.mulf %111, %111 : vector<64x32xf32>
    %cst_38 = arith.constant dense<0.000000e+00> : vector<64xf32>
    %113 = vector.multi_reduction <add>, %112, %cst_38 [1] : vector<64x32xf32> to vector<64xf32>
    %114 = vector.shape_cast %113 : vector<64xf32> to vector<64x1xf32>
    %cst_39 = arith.constant 3.200000e+01 : f32
    %115 = vector.broadcast %cst_39 : f32 to vector<64x1xf32>
    %116 = arith.divf %114, %115 : vector<64x1xf32>
    %cst_40 = arith.constant 9.99999974E-6 : f32
    %117 = vector.broadcast %cst_40 : f32 to vector<64x1xf32>
    %118 = arith.addf %116, %117 : vector<64x1xf32>
    %119 = math.rsqrt %118 : vector<64x1xf32>
    %120 = vector.broadcast %119 : vector<64x1xf32> to vector<64x32xf32>
    %121 = arith.mulf %111, %120 : vector<64x32xf32>
    %122 = vector.broadcast %4 : vector<1x32xf32> to vector<64x32xf32>
    %123 = arith.mulf %121, %122 : vector<64x32xf32>
    %124 = vector.broadcast %5 : vector<1x32xf32> to vector<64x32xf32>
    %125 = arith.addf %123, %124 : vector<64x32xf32>
    %126 = arith.truncf %125 : vector<64x32xf32> to vector<64x32xbf16>
    %cst_41 = arith.constant dense<0.000000e+00> : vector<64x32xf32>
    %127 = tpu.matmul %126, %7, %cst_41 {dimension_numbers = #tpu.dot_dimension_numbers<[1], [0], [0], [1], [0, 0, 1, 1], [], []>} : vector<64x32xbf16>, vector<32x32xbf16>, vector<64x32xf32> -> vector<64x32xf32>
    %128 = vector.broadcast %8 : vector<1x32xf32> to vector<64x32xf32>
    %129 = arith.addf %127, %128 : vector<64x32xf32>
    %130 = tpu.concatenate %100, %129 in 1 : vector<64x32xf32>, vector<64x32xf32> -> vector<64x64xf32>
    %131 = vector.shape_cast %130 : vector<64x64xf32> to vector<8x8x64xf32>
    %c0_42 = arith.constant 0 : index
    %c0_43 = arith.constant 0 : index
    %c1 = arith.constant 1 : index
    %c0_44 = arith.constant 0 : index
    %c0_45 = arith.constant 0 : index
    %132 = vector.load %arg9[%c0_42, %c0_43, %c1, %c0_44, %c0_45] : memref<1x8x2x8x64xf32, #tpu.memory_space<vmem>>, vector<1x8x1x8x64xf32>
    %133 = vector.shape_cast %132 : vector<1x8x1x8x64xf32> to vector<8x8x64xf32>
    %134 = vector.shape_cast %131 : vector<8x8x64xf32> to vector<1x8x1x8x64xf32>
    tpu.vector_store %arg9[%c0_42, %c0_43, %c1, %c0_44, %c0_45], %134 {strides = array<i32>} : memref<1x8x2x8x64xf32, #tpu.memory_space<vmem>>, vector<1x8x1x8x64xf32>,
    return
  }
  func.func @transform_0(%arg0: i32, %arg1: i32) -> (i32, i32, i32) {
    %c0_i32 = arith.constant 0 : i32
    %c0_i32_0 = arith.constant 0 : i32
    return %arg0, %arg1, %c0_i32 : i32, i32, i32
  }
  func.func @transform_1(%arg0: i32, %arg1: i32) -> (i32, i32) {
    %c0_i32 = arith.constant 0 : i32
    %c0_i32_0 = arith.constant 0 : i32
    %c0_i32_1 = arith.constant 0 : i32
    return %c0_i32, %c0_i32_0 : i32, i32
  }
  func.func @transform_2(%arg0: i32, %arg1: i32) -> (i32, i32) {
    %c0_i32 = arith.constant 0 : i32
    %c0_i32_0 = arith.constant 0 : i32
    %c0_i32_1 = arith.constant 0 : i32
    return %c0_i32, %c0_i32_0 : i32, i32
  }
  func.func @transform_3(%arg0: i32, %arg1: i32) -> (i32, i32) {
    %c0_i32 = arith.constant 0 : i32
    %c0_i32_0 = arith.constant 0 : i32
    %c0_i32_1 = arith.constant 0 : i32
    return %c0_i32, %c0_i32_0 : i32, i32
  }
  func.func @transform_4(%arg0: i32, %arg1: i32) -> (i32, i32) {
    %c0_i32 = arith.constant 0 : i32
    %c0_i32_0 = arith.constant 0 : i32
    %c0_i32_1 = arith.constant 0 : i32
    return %c0_i32, %c0_i32_0 : i32, i32
  }
  func.func @transform_5(%arg0: i32, %arg1: i32) -> (i32, i32) {
    %c0_i32 = arith.constant 0 : i32
    %c0_i32_0 = arith.constant 0 : i32
    %c0_i32_1 = arith.constant 0 : i32
    return %c0_i32, %c0_i32_0 : i32, i32
  }
  func.func @transform_6(%arg0: i32, %arg1: i32) -> (i32, i32) {
    %c0_i32 = arith.constant 0 : i32
    %c0_i32_0 = arith.constant 0 : i32
    %c0_i32_1 = arith.constant 0 : i32
    return %c0_i32, %c0_i32_0 : i32, i32
  }
  func.func @transform_7(%arg0: i32, %arg1: i32) -> (i32, i32, i32, i32, i32) {
    %c0_i32 = arith.constant 0 : i32
    %c0_i32_0 = arith.constant 0 : i32
    %c0_i32_1 = arith.constant 0 : i32
    %c0_i32_2 = arith.constant 0 : i32
    return %arg0, %arg1, %c0_i32, %c0_i32_0, %c0_i32_1 : i32, i32, i32, i32, i32
  }
}

</mosaic_0001>

<llo_original>
// kernel: global_sparse_attn.3
$region0: #{global_sparse_attn.3}
  #allocation0 [shape = 'u32[]', space=smem, size = 0x4, offset = 0x4, fixed_abs, tag = 'smem constant byte address 0x4 - core index']
  #allocation1 [shape = 'u32[144,128]{1,0:T(1,128)}', space=vmem, size = 0x12000, scoped, tag = 'internal scratch']
  %s0 = inlined_call_operand.vmem [shape: f32[2,64,32], index: 0, kind: input, shape index: {}]
  %s1 = inlined_call_operand.vmem [shape: f32[4,32], index: 1, kind: input, shape index: {}]
  %s2 = inlined_call_operand.vmem [shape: f32[1,32], index: 2, kind: input, shape index: {}]
  %s3 = inlined_call_operand.vmem [shape: f32[1,32], index: 3, kind: input, shape index: {}]
  %s4 = inlined_call_operand.vmem [shape: f32[1,32], index: 4, kind: input, shape index: {}]
  %s5 = inlined_call_operand.vmem [shape: f32[32,32], index: 5, kind: input, shape index: {}]
  %s6 = inlined_call_operand.vmem [shape: f32[1,32], index: 6, kind: input, shape index: {}]
  %s7 = inlined_call_operand.vmem [shape: f32[2,8,2,8,64], index: 7, kind: output, shape index: {}]
  %s8 = sld [smem:[#allocation0]]
  $region61: #{global_sparse_attn.3} parent=0
    _
  %s10 = ssub.s32 1, %s8
  %s11 = scalar_select 0, %s10, %s8
  loop: start=0, step=1, limit=4
  $region2: #{global_sparse_attn.3} parent=0 // loop_pre_header
    _
  $region3: #{global_sparse_attn.3} parent=0 // loop_header
    %s13 = sphi 0, %s17
    %p14 = scmp.ge.s32.totalorder %s13, 4
    %s20 = sphi 0, %s32
    %s21 = sphi 0, %s28
    %s22 = sphi 0, %s20
    %s23 = sphi 0, %s21
    %s24 = sphi 0, %s22
    %s25 = sphi 0, %s23
    %s37 = sphi 0, %s39
    %s40 = sphi 0, %s37
    %s41 = sphi 0, %s40
    %s57 = sphi 0, %s41
    %s61 = sphi 0, %s61
    %s63 = sphi 0, %s61
    %s64 = sphi 0, %s63
    %s78 = sphi 0, %s64
    %s82 = sphi 0, %s82
    %s84 = sphi 0, %s82
    %s85 = sphi 0, %s84
    %s99 = sphi 0, %s85
    %s103 = sphi 0, %s103
    %s105 = sphi 0, %s103
    %s106 = sphi 0, %s105
    %s120 = sphi 0, %s106
    %s124 = sphi 0, %s124
    %s126 = sphi 0, %s124
    %s127 = sphi 0, %s126
    %s141 = sphi 0, %s127
    %s145 = sphi 0, %s145
    %s147 = sphi 0, %s145
    %s148 = sphi 0, %s147
    %s162 = sphi 0, %s148
    %s166 = sphi 0, %s166
    %s168 = sphi 0, %s166
    %s169 = sphi 0, %s168
    %s183 = sphi 0, %s169
    %s191 = sphi 0, %s193
    %s194 = sphi 0, %s191
    %s195 = sphi 0, %s194
    %s211 = sphi 0, %s195
  $region4: #{global_sparse_attn.3} parent=0 // loop_header_branch
    %16 = sbr.rel (%p14) target = $region8
  $region5: #{global_sparse_attn.3} parent=0 // loop_body
    %s18 = ssub.s32 %s13, 1
    %s19 = ssub.s32 %s13, 2
    %s26 = sadd.s32 1, %s21
    %p27 = scmp.ge.s32.totalorder %s26, 1
    %s28 = scalar_select %p27, 0, %s26
    %s29 = sadd.s32 1, %s20
    %s30 = scalar_select %p27, %s29, %s20
    %p31 = scmp.ge.s32.totalorder %s30, 2
    %s32 = scalar_select %p31, 0, %s30
    %s33 = ssub.s32 %s20, %s32
    %s34 = ssub.s32 %s21, %s28
    %s35 = sor.u32 %s33, %s34
    %p36 = scmp.eq.s32.totalorder %s35, 0
    %s38 = sadd.s32 %s37, 1
    %s39 = scalar_select %p36, %s37, %s38
    %p42 = pneg %p36
    %p43 = scmp.eq.s32.totalorder %s13, 1
    %p44 = por %p42, %p43
    %p45 = scmp.ne.s32.totalorder %s37, %s40
    %p46 = scmp.eq.s32.totalorder %s13, 0
    %p47 = por %p45, %p46
    %p48 = scmp.ne.s32.totalorder %s37, %s40
    %p49 = scmp.eq.s32.totalorder %s18, 1
    %p50 = por %p48, %p49
    %p51 = scmp.ne.s32.totalorder %s40, %s41
    %p52 = scmp.eq.s32.totalorder %s18, 0
    %p53 = por %p51, %p52
    %p54 = scmp.ne.s32.totalorder %s40, %s41
    %p55 = scmp.eq.s32.totalorder %s19, 1
    %p56 = por %p54, %p55
    %p58 = scmp.ne.s32.totalorder %s41, %s57
    %p59 = scmp.eq.s32.totalorder %s19, 0
    %p60 = por %p58, %p59
    %s62 = sadd.s32 %s61, 1
    %p65 = scmp.eq.s32.totalorder %s13, 1
    %p66 = scmp.ne.s32.totalorder %s61, %s63
    %p67 = scmp.eq.s32.totalorder %s13, 0
    %p68 = por %p66, %p67
    %p69 = scmp.ne.s32.totalorder %s61, %s63
    %p70 = scmp.eq.s32.totalorder %s18, 1
    %p71 = por %p69, %p70
    %p72 = scmp.ne.s32.totalorder %s63, %s64
    %p73 = scmp.eq.s32.totalorder %s18, 0
    %p74 = por %p72, %p73
    %p75 = scmp.ne.s32.totalorder %s63, %s64
    %p76 = scmp.eq.s32.totalorder %s19, 1
    %p77 = por %p75, %p76
    %p79 = scmp.ne.s32.totalorder %s64, %s78
    %p80 = scmp.eq.s32.totalorder %s19, 0
    %p81 = por %p79, %p80
    %s83 = sadd.s32 %s82, 1
    %p86 = scmp.eq.s32.totalorder %s13, 1
    %p87 = scmp.ne.s32.totalorder %s82, %s84
    %p88 = scmp.eq.s32.totalorder %s13, 0
    %p89 = por %p87, %p88
    %p90 = scmp.ne.s32.totalorder %s82, %s84
    %p91 = scmp.eq.s32.totalorder %s18, 1
    %p92 = por %p90, %p91
    %p93 = scmp.ne.s32.totalorder %s84, %s85
    %p94 = scmp.eq.s32.totalorder %s18, 0
    %p95 = por %p93, %p94
    %p96 = scmp.ne.s32.totalorder %s84, %s85
    %p97 = scmp.eq.s32.totalorder %s19, 1
    %p98 = por %p96, %p97
    %p100 = scmp.ne.s32.totalorder %s85, %s99
    %p101 = scmp.eq.s32.totalorder %s19, 0
    %p102 = por %p100, %p101
    %s104 = sadd.s32 %s103, 1
    %p107 = scmp.eq.s32.totalorder %s13, 1
    %p108 = scmp.ne.s32.totalorder %s103, %s105
    %p109 = scmp.eq.s32.totalorder %s13, 0
    %p110 = por %p108, %p109
    %p111 = scmp.ne.s32.totalorder %s103, %s105
    %p112 = scmp.eq.s32.totalorder %s18, 1
    %p113 = por %p111, %p112
    %p114 = scmp.ne.s32.totalorder %s105, %s106
    %p115 = scmp.eq.s32.totalorder %s18, 0
    %p116 = por %p114, %p115
    %p117 = scmp.ne.s32.totalorder %s105, %s106
    %p118 = scmp.eq.s32.totalorder %s19, 1
    %p119 = por %p117, %p118
    %p121 = scmp.ne.s32.totalorder %s106, %s120
    %p122 = scmp.eq.s32.totalorder %s19, 0
    %p123 = por %p121, %p122
    %s125 = sadd.s32 %s124, 1
    %p128 = scmp.eq.s32.totalorder %s13, 1
    %p129 = scmp.ne.s32.totalorder %s124, %s126
    %p130 = scmp.eq.s32.totalorder %s13, 0
    %p131 = por %p129, %p130
    %p132 = scmp.ne.s32.totalorder %s124, %s126
    %p133 = scmp.eq.s32.totalorder %s18, 1
    %p134 = por %p132, %p133
    %p135 = scmp.ne.s32.totalorder %s126, %s127
    %p136 = scmp.eq.s32.totalorder %s18, 0
    %p137 = por %p135, %p136
    %p138 = scmp.ne.s32.totalorder %s126, %s127
    %p139 = scmp.eq.s32.totalorder %s19, 1
    %p140 = por %p138, %p139
    %p142 = scmp.ne.s32.totalorder %s127, %s141
    %p143 = scmp.eq.s32.totalorder %s19, 0
    %p144 = por %p142, %p143
    %s146 = sadd.s32 %s145, 1
    %p149 = scmp.eq.s32.totalorder %s13, 1
    %p150 = scmp.ne.s32.totalorder %s145, %s147
    %p151 = scmp.eq.s32.totalorder %s13, 0
    %p152 = por %p150, %p151
    %p153 = scmp.ne.s32.totalorder %s145, %s147
    %p154 = scmp.eq.s32.totalorder %s18, 1
    %p155 = por %p153, %p154
    %p156 = scmp.ne.s32.totalorder %s147, %s148
    %p157 = scmp.eq.s32.totalorder %s18, 0
    %p158 = por %p156, %p157
    %p159 = scmp.ne.s32.totalorder %s147, %s148
    %p160 = scmp.eq.s32.totalorder %s19, 1
    %p161 = por %p159, %p160
    %p163 = scmp.ne.s32.totalorder %s148, %s162
    %p164 = scmp.eq.s32.totalorder %s19, 0
    %p165 = por %p163, %p164
    %s167 = sadd.s32 %s166, 1
    %p170 = scmp.eq.s32.totalorder %s13, 1
    %p171 = scmp.ne.s32.totalorder %s166, %s168
    %p172 = scmp.eq.s32.totalorder %s13, 0
    %p173 = por %p171, %p172
    %p174 = scmp.ne.s32.totalorder %s166, %s168
    %p175 = scmp.eq.s32.totalorder %s18, 1
    %p176 = por %p174, %p175
    %p177 = scmp.ne.s32.totalorder %s168, %s169
    %p178 = scmp.eq.s32.totalorder %s18, 0
    %p179 = por %p177, %p178
    %p180 = scmp.ne.s32.totalorder %s168, %s169
    %p181 = scmp.eq.s32.totalorder %s19, 1
    %p182 = por %p180, %p181
    %p184 = scmp.ne.s32.totalorder %s169, %s183
    %p185 = scmp.eq.s32.totalorder %s19, 0
    %p186 = por %p184, %p185
    %s187 = ssub.s32 %s20, %s32
    %s188 = ssub.s32 %s21, %s28
    %s189 = sor.u32 %s187, %s188
    %p190 = scmp.eq.s32.totalorder %s189, 0
    %s192 = sadd.s32 %s191, 1
    %s193 = scalar_select %p190, %s191, %s192
    %p196 = pneg %p190
    %p197 = scmp.eq.s32.totalorder %s13, 1
    %p198 = por %p196, %p197
    %p199 = scmp.ne.s32.totalorder %s191, %s194
    %p200 = scmp.eq.s32.totalorder %s13, 0
    %p201 = por %p199, %p200
    %p202 = scmp.ne.s32.totalorder %s191, %s194
    %p203 = scmp.eq.s32.totalorder %s18, 1
    %p204 = por %p202, %p203
    %p205 = scmp.ne.s32.totalorder %s194, %s195
    %p206 = scmp.eq.s32.totalorder %s18, 0
    %p207 = por %p205, %p206
    %p208 = scmp.ne.s32.totalorder %s194, %s195
    %p209 = scmp.eq.s32.totalorder %s19, 1
    %p210 = por %p208, %p209
    %p212 = scmp.ne.s32.totalorder %s195, %s211
    %p213 = scmp.eq.s32.totalorder %s19, 0
    %p214 = por %p212, %p213
    %p215 = scmp.le.s32.totalorder 1, %s13
    %p216 = scmp.lt.s32.totalorder %s13, 3
    %p217 = pnand %p215, %p216
    %p218 = pneg %p217
    // Predicated region
    $region9: #{global_sparse_attn.3} parent=5 // pred_check
      _
    $region10: #{global_sparse_attn.3} parent=5 // pred_check_branch
      %220 = sbr.rel (%p217) target = $region12
    $region11: #{global_sparse_attn.3} parent=5 // pred_region
      %s221 = ssub.s32 %s13, 1
      // Predicated region
      $region13: #{global_sparse_attn.3} parent=11 // pred_check
        %p222 = pneg %p74
      $region14: #{global_sparse_attn.3} parent=11 // pred_check_branch
        %224 = sbr.rel (%p222) target = $region16
      $region15: #{global_sparse_attn.3} parent=11 // pred_region
        _
      $region16: #{global_sparse_attn.3} parent=11 // pred_fallthru
        _
      // Predicated region
      $region17: #{global_sparse_attn.3} parent=11 // pred_check
        %p225 = pneg %p95
      $region18: #{global_sparse_attn.3} parent=11 // pred_check_branch
        %227 = sbr.rel (%p225) target = $region20
      $region19: #{global_sparse_attn.3} parent=11 // pred_region
        _
      $region20: #{global_sparse_attn.3} parent=11 // pred_fallthru
        _
      // Predicated region
      $region21: #{global_sparse_attn.3} parent=11 // pred_check
        %p228 = pneg %p116
      $region22: #{global_sparse_attn.3} parent=11 // pred_check_branch
        %230 = sbr.rel (%p228) target = $region24
      $region23: #{global_sparse_attn.3} parent=11 // pred_region
        _
      $region24: #{global_sparse_attn.3} parent=11 // pred_fallthru
        _
      // Predicated region
      $region25: #{global_sparse_attn.3} parent=11 // pred_check
        %p231 = pneg %p137
      $region26: #{global_sparse_attn.3} parent=11 // pred_check_branch
        %233 = sbr.rel (%p231) target = $region28
      $region27: #{global_sparse_attn.3} parent=11 // pred_region
        _
      $region28: #{global_sparse_attn.3} parent=11 // pred_fallthru
        _
      // Predicated region
      $region29: #{global_sparse_attn.3} parent=11 // pred_check
        %p234 = pneg %p158
      $region30: #{global_sparse_attn.3} parent=11 // pred_check_branch
        %236 = sbr.rel (%p234) target = $region32
      $region31: #{global_sparse_attn.3} parent=11 // pred_region
        _
      $region32: #{global_sparse_attn.3} parent=11 // pred_fallthru
        _
      // Predicated region
      $region33: #{global_sparse_attn.3} parent=11 // pred_check
        %p237 = pneg %p179
      $region34: #{global_sparse_attn.3} parent=11 // pred_check_branch
        %239 = sbr.rel (%p237) target = $region36
      $region35: #{global_sparse_attn.3} parent=11 // pred_region
        _
      $region36: #{global_sparse_attn.3} parent=11 // pred_fallthru
        _
    $region12: #{global_sparse_attn.3} parent=5 // pred_fallthru
      _
    %p240 = scmp.lt.s32.totalorder %s13, 2
    // Predicated region
    $region37: #{global_sparse_attn.3} parent=5 // pred_check
      %p241 = pneg %p240
    $region38: #{global_sparse_attn.3} parent=5 // pred_check_branch
      %243 = sbr.rel (%p241) target = $region40
    $region39: #{global_sparse_attn.3} parent=5 // pred_region
      // Predicated region
      $region41: #{global_sparse_attn.3} parent=39 // pred_check
        %p244 = pneg %p47
      $region42: #{global_sparse_attn.3} parent=39 // pred_check_branch
        %246 = sbr.rel (%p244) target = $region44
      $region43: #{global_sparse_attn.3} parent=39 // pred_region
        %s247 = smul.u32 8, %s21
        %p248 = scmp.lt.s32.totalorder %s20, 1
        %s249 = scalar_select %p248, %s20, 1
        %p250 = scmp.lt.s32.totalorder %s247, 7
        %s251 = scalar_select %p250, %s247, 7
        %s252 = smul.addr %s249, 8
        %s253 = sadd.s32 %s251, %s252
        %s254 = smul.addr %s253, 8
        %s255 = scalar_lea.vmem %s0, %s254
        %s256 = smul.u32 8, %s21
      $region44: #{global_sparse_attn.3} parent=39 // pred_fallthru
        _
    $region40: #{global_sparse_attn.3} parent=5 // pred_fallthru
      _
    %p257 = scmp.le.s32.totalorder 1, %s13
    %p258 = scmp.lt.s32.totalorder %s13, 3
    %p259 = pnand %p257, %p258
    %p260 = pneg %p259
    // Predicated region
    $region45: #{global_sparse_attn.3} parent=5 // pred_check
      _
    $region46: #{global_sparse_attn.3} parent=5 // pred_check_branch
      %262 = sbr.rel (%p259) target = $region48
    $region47: #{global_sparse_attn.3} parent=5 // pred_region
      %s263 = ssub.s32 %s13, 1
      %s264 = smul.u32 8, %s23
      %p265 = scmp.lt.s32.totalorder %s22, 1
      %s266 = scalar_select %p265, %s22, 1
      %p267 = scmp.lt.s32.totalorder %s264, 7
      %s268 = scalar_select %p267, %s264, 7
      %s269 = smul.addr %s266, 8
      %s270 = sadd.s32 %s268, %s269
      %s271 = smul.addr %s270, 8
      %s272 = scalar_lea.vmem %s0, %s271
      %p273 = pneg %p53
      %p274 = pneg %p50
      %p275 = pneg %p74
      %p276 = pneg %p71
      %p277 = pneg %p95
      %p278 = pneg %p92
      %p279 = pneg %p116
      %p280 = pneg %p113
      %p281 = pneg %p137
      %p282 = pneg %p134
      %p283 = pneg %p158
      %p284 = pneg %p155
      %p285 = pneg %p179
      %p286 = pneg %p176
      %p287 = pneg %p207
      %p288 = pneg %p204
      %s289 = smul.u32 8, %s23
      %p290 = scmp.lt.s32.totalorder %s22, 1
      %s291 = scalar_select %p290, %s22, 1
      %p292 = scmp.lt.s32.totalorder %s289, 7
      %s293 = scalar_select %p292, %s289, 7
      %s294 = smul.addr %s293, 2
      %s295 = smul.addr %s291, 16
      %s296 = sadd.s32 %s294, %s295
      %s297 = smul.addr %s296, 8
      %s298 = scalar_lea.vmem %s7, %s297
      %s299 = smul.u32 8, %s23
      %p300 = scmp.lt.s32.totalorder %s22, 1
      %s301 = scalar_select %p300, %s22, 1
      %p302 = scmp.lt.s32.totalorder %s299, 7
      %s303 = scalar_select %p302, %s299, 7
      %s304 = smul.addr %s301, 8
      %s305 = sadd.s32 %s303, %s304
      %s306 = smul.addr %s305, 8
      %s307 = scalar_lea.vmem %s0, %s306
      %s308 = smul.u32 8, %s23
      %s309 = smul.u32 8, %s23
      %p310 = scmp.lt.s32.totalorder %s22, 1
      %s311 = scalar_select %p310, %s22, 1
      %p312 = scmp.lt.s32.totalorder %s309, 7
      %s313 = scalar_select %p312, %s309, 7
      %s314 = smul.addr %s313, 2
      %s315 = smul.addr %s311, 16
      %s316 = sadd.s32 %s314, %s315
      %s317 = smul.addr %s316, 8
      %s318 = scalar_lea.vmem %s7, %s317
      %s319 = smul.u32 8, %s23
      %v321 = vld [vmem:[%s307] sm:$0xff]
      %v322 = vld [vmem:[%s307 + $0x8] sm:$0xff]
      %v323 = vld [vmem:[%s307 + $0x10] sm:$0xff]
      %v324 = vld [vmem:[%s307 + $0x18] sm:$0xff]
      %v325 = vld [vmem:[%s307 + $0x20] sm:$0xff]
      %v326 = vld [vmem:[%s307 + $0x28] sm:$0xff]
      %v327 = vld [vmem:[%s307 + $0x30] sm:$0xff]
      %v328 = vld [vmem:[%s307 + $0x38] sm:$0xff]
      %v329 = vld [vmem:[%s1] sm:$0xf]
      %v330 = vld [vmem:[%s2] sm:$0x1]
      %v331 = vld [vmem:[%s3] sm:$0x1]
      %v332 = vld [vmem:[%s4] sm:$0x1]
      %v333 = vld [vmem:[%s5] sm:$0xff]
      %v334 = vld [vmem:[%s5 + $0x8] sm:$0xff]
      %v335 = vld [vmem:[%s5 + $0x10] sm:$0xff]
      %v336 = vld [vmem:[%s5 + $0x18] sm:$0xff]
      %v337 = vpack.c.bf16 %v334, %v333
      %v338 = vpack.c.bf16 %v336, %v335
      %v339 = vld [vmem:[%s6] sm:$0x1]
      %v340 = vlaneseq
      %v341 = vshrl.u32 %v340, 7
      %v342 = vsub.s32 0, %v341
      %v343 = vrot.slane %v329, %v342
      %v344 = vmul.f32 %v321, %v343
      %v345 = vmul.f32 %v322, %v343
      %v346 = vmul.f32 %v323, %v343
      %v347 = vmul.f32 %v324, %v343
      %v348 = vmul.f32 %v325, %v343
      %v349 = vmul.f32 %v326, %v343
      %v350 = vmul.f32 %v327, %v343
      %v351 = vmul.f32 %v328, %v343
      %v353 = vlaneseq
      %v354 = vshrl.u32 %v353, 7
      %v355 = vsub.s32 0, %v354
      %v356 = vrot.slane %v330, %v355
      %v358 = vadd.f32 %v344, %v356
      %v359 = vadd.f32 %v345, %v356
      %v360 = vadd.f32 %v346, %v356
      %v361 = vadd.f32 %v347, %v356
      %v362 = vadd.f32 %v348, %v356
      %v363 = vadd.f32 %v349, %v356
      %v364 = vadd.f32 %v350, %v356
      %v365 = vadd.f32 %v351, %v356
      %vm366 = vcmask 261120
      %v367 = vsel %vm366, %v358, 0.0
      %368 = vadd.xlane.f32.xlu0 %v367
      %v369 = vpop.xlane.xlu0 %368
      %v370 = vsel %vm366, %v359, 0.0
      %371 = vadd.xlane.f32.xlu0 %v370
      %v372 = vpop.xlane.xlu0 %371
      %v373 = vsel %vm366, %v360, 0.0
      %374 = vadd.xlane.f32.xlu0 %v373
      %v375 = vpop.xlane.xlu0 %374
      %v376 = vsel %vm366, %v361, 0.0
      %377 = vadd.xlane.f32.xlu0 %v376
      %v378 = vpop.xlane.xlu0 %377
      %v379 = vsel %vm366, %v362, 0.0
      %380 = vadd.xlane.f32.xlu0 %v379
      %v381 = vpop.xlane.xlu0 %380
      %v382 = vsel %vm366, %v363, 0.0
      %383 = vadd.xlane.f32.xlu0 %v382
      %v384 = vpop.xlane.xlu0 %383
      %v385 = vsel %vm366, %v364, 0.0
      %386 = vadd.xlane.f32.xlu0 %v385
      %v387 = vpop.xlane.xlu0 %386
      %v388 = vsel %vm366, %v365, 0.0
      %389 = vadd.xlane.f32.xlu0 %v388
      %v390 = vpop.xlane.xlu0 %389
      %v391 = vrcp.pop 32.0
      %v392 = vmul.f32 %v369, %v391
      %v393 = vmul.f32 %v372, %v391
      %v394 = vmul.f32 %v375, %v391
      %v395 = vmul.f32 %v378, %v391
      %v396 = vmul.f32 %v381, %v391
      %v397 = vmul.f32 %v384, %v391
      %v398 = vmul.f32 %v387, %v391
      %v399 = vmul.f32 %v390, %v391
      %v400 = vsub.f32 %v358, %v392
      %v401 = vsub.f32 %v359, %v393
      %v402 = vsub.f32 %v360, %v394
      %v403 = vsub.f32 %v361, %v395
      %v404 = vsub.f32 %v362, %v396
      %v405 = vsub.f32 %v363, %v397
      %v406 = vsub.f32 %v364, %v398
      %v407 = vsub.f32 %v365, %v399
      %v408 = vmul.f32 %v400, %v400
      %v409 = vmul.f32 %v401, %v401
      %v410 = vmul.f32 %v402, %v402
      %v411 = vmul.f32 %v403, %v403
      %v412 = vmul.f32 %v404, %v404
      %v413 = vmul.f32 %v405, %v405
      %v414 = vmul.f32 %v406, %v406
      %v415 = vmul.f32 %v407, %v407
      %v416 = vsel %vm366, %v408, 0.0
      %417 = vadd.xlane.f32.xlu0 %v416
      %v418 = vpop.xlane.xlu0 %417
      %v419 = vsel %vm366, %v409, 0.0
      %420 = vadd.xlane.f32.xlu0 %v419
      %v421 = vpop.xlane.xlu0 %420
      %v422 = vsel %vm366, %v410, 0.0
      %423 = vadd.xlane.f32.xlu0 %v422
      %v424 = vpop.xlane.xlu0 %423
      %v425 = vsel %vm366, %v411, 0.0
      %426 = vadd.xlane.f32.xlu0 %v425
      %v427 = vpop.xlane.xlu0 %426
      %v428 = vsel %vm366, %v412, 0.0
      %429 = vadd.xlane.f32.xlu0 %v428
      %v430 = vpop.xlane.xlu0 %429
      %v431 = vsel %vm366, %v413, 0.0
      %432 = vadd.xlane.f32.xlu0 %v431
      %v433 = vpop.xlane.xlu0 %432
      %v434 = vsel %vm366, %v414, 0.0
      %435 = vadd.xlane.f32.xlu0 %v434
      %v436 = vpop.xlane.xlu0 %435
      %v437 = vsel %vm366, %v415, 0.0
      %438 = vadd.xlane.f32.xlu0 %v437
      %v439 = vpop.xlane.xlu0 %438
      %v440 = vmul.f32 %v418, %v391
      %v441 = vmul.f32 %v421, %v391
      %v442 = vmul.f32 %v424, %v391
      %v443 = vmul.f32 %v427, %v391
      %v444 = vmul.f32 %v430, %v391
      %v445 = vmul.f32 %v433, %v391
      %v446 = vmul.f32 %v436, %v391
      %v447 = vmul.f32 %v439, %v391
      %v448 = vadd.f32 %v440, 1e-05
      %v449 = vadd.f32 %v441, 1e-05
      %v450 = vadd.f32 %v442, 1e-05
      %v451 = vadd.f32 %v443, 1e-05
      %v452 = vadd.f32 %v444, 1e-05
      %v453 = vadd.f32 %v445, 1e-05
      %v454 = vadd.f32 %v446, 1e-05
      %v455 = vadd.f32 %v447, 1e-05
      %v456 = vrsqrt.pop %v448
      %v457 = vrsqrt.pop %v449
      %v458 = vrsqrt.pop %v450
      %v459 = vrsqrt.pop %v451
      %v460 = vrsqrt.pop %v452
      %v461 = vrsqrt.pop %v453
      %v462 = vrsqrt.pop %v454
      %v463 = vrsqrt.pop %v455
      %v464 = vmul.f32 %v400, %v456
      %v465 = vmul.f32 %v401, %v457
      %v466 = vmul.f32 %v402, %v458
      %v467 = vmul.f32 %v403, %v459
      %v468 = vmul.f32 %v404, %v460
      %v469 = vmul.f32 %v405, %v461
      %v470 = vmul.f32 %v406, %v462
      %v471 = vmul.f32 %v407, %v463
      %v473 = vlaneseq
      %v474 = vshrl.u32 %v473, 7
      %v475 = vsub.s32 0, %v474
      %v476 = vrot.slane %v331, %v475
      %v478 = vmul.f32 %v464, %v476
      %v479 = vmul.f32 %v465, %v476
      %v480 = vmul.f32 %v466, %v476
      %v481 = vmul.f32 %v467, %v476
      %v482 = vmul.f32 %v468, %v476
      %v483 = vmul.f32 %v469, %v476
      %v484 = vmul.f32 %v470, %v476
      %v485 = vmul.f32 %v471, %v476
      %v487 = vlaneseq
      %v488 = vshrl.u32 %v487, 7
      %v489 = vsub.s32 0, %v488
      %v490 = vrot.slane %v332, %v489
      %v492 = vadd.f32 %v478, %v490
      %v493 = vadd.f32 %v479, %v490
      %v494 = vadd.f32 %v480, %v490
      %v495 = vadd.f32 %v481, %v490
      %v496 = vadd.f32 %v482, %v490
      %v497 = vadd.f32 %v483, %v490
      %v498 = vadd.f32 %v484, %v490
      %v499 = vadd.f32 %v485, %v490
      %v500 = vpack.c.bf16 %v493, %v492
      %v501 = vpack.c.bf16 %v495, %v494
      %v502 = vpack.c.bf16 %v497, %v496
      %v503 = vpack.c.bf16 %v499, %v498
      %v505 = vlaneseq
      %v506 = vshrl.u32 %v505, 7
      %v507 = vsub.s32 0, %v506
      %v508 = vrot.slane %v339, %v507
      %v511 = vsel %vm366, %v500, 0
      %v514 = vsel %vm366, %v501, 0
      %v517 = vsel %vm366, %v502, 0
      %v520 = vsel %vm366, %v503, 0
      %522 = vmatprep.subr.bf16.mxu0 0
      %523 = vmatpush1.bf16.msra.mxu0 %v337
      %524 = vmatprep.subr.bf16.mxu0 0
      %525 = vmatpush1.bf16.msra.mxu0 %v338
      %526 = vmatprep.subr.bf16.mxu0 0
      %527 = vmatpush1.bf16.msra.mxu0 0
      %528 = vmatprep.subr.bf16.mxu0 0
      %529 = vmatpush1.bf16.msra.mxu0 0
      %530 = vmatprep.subr.bf16.mxu0 0
      %531 = vmatpush1.bf16.msra.mxu0 0
      %532 = vmatprep.subr.bf16.mxu0 0
      %533 = vmatpush1.bf16.msra.mxu0 0
      %534 = vmatprep.subr.bf16.mxu0 0
      %535 = vmatpush1.bf16.msra.mxu0 0
      %536 = vmatprep.subr.bf16.mxu0 0
      %537 = vmatpush1.bf16.msra.mxu0 0
      %538 = vmatprep.subr.bf16.mxu0 0
      %539 = vmatpush1.bf16.msra.mxu0 0
      %540 = vmatprep.subr.bf16.mxu0 0
      %541 = vmatpush1.bf16.msra.mxu0 0
      %542 = vmatprep.subr.bf16.mxu0 0
      %543 = vmatpush1.bf16.msra.mxu0 0
      %544 = vmatprep.subr.bf16.mxu0 0
      %545 = vmatpush1.bf16.msra.mxu0 0
      %546 = vmatprep.subr.bf16.mxu0 0
      %547 = vmatpush1.bf16.msra.mxu0 0
      %548 = vmatprep.subr.bf16.mxu0 0
      %549 = vmatpush1.bf16.msra.mxu0 0
      %550 = vmatprep.subr.bf16.mxu0 0
      %551 = vmatpush1.bf16.msra.mxu0 0
      %552 = vmatprep.subr.bf16.mxu0 0
      %553 = vmatpush1.bf16.msra.mxu0 0
      %554 = vmatprep.mubr.bf16.mxu0 0
      %555 = vmatmul.mubr.bf16.gmra.mrb[0].mxu0 %v511
      %v556 = vpop.f32.mrb[0].mxu0
      %v557 = vadd.f32 %v508, %v556
      %v558 = vpop.f32.mrb[0].mxu0
      %v559 = vpop.f32.mrb[0].mxu0
      %v560 = vadd.f32 %v508, %v559
      %v561 = vpop.f32.mrb[0].mxu0
      %562 = vmatprep.mubr.bf16.mxu0 0
      %563 = vmatmul.mubr.bf16.gmra.mrb[0].mxu0 %v514
      %v564 = vpop.f32.mrb[0].mxu0
      %v565 = vadd.f32 %v508, %v564
      %v566 = vpop.f32.mrb[0].mxu0
      %v567 = vpop.f32.mrb[0].mxu0
      %v568 = vadd.f32 %v508, %v567
      %v569 = vpop.f32.mrb[0].mxu0
      %570 = vmatprep.mubr.bf16.mxu0 0
      %571 = vmatmul.mubr.bf16.gmra.mrb[0].mxu0 %v517
      %v572 = vpop.f32.mrb[0].mxu0
      %v573 = vadd.f32 %v508, %v572
      %v574 = vpop.f32.mrb[0].mxu0
      %v575 = vpop.f32.mrb[0].mxu0
      %v576 = vadd.f32 %v508, %v575
      %v577 = vpop.f32.mrb[0].mxu0
      %578 = vmatprep.mubr.bf16.mxu0 0
      %579 = vmatmul.mubr.bf16.gmra.mrb[0].mxu0 %v520
      %v580 = vpop.f32.mrb[0].mxu0
      %v581 = vadd.f32 %v508, %v580
      %v582 = vpop.f32.mrb[0].mxu0
      %v583 = vpop.f32.mrb[0].mxu0
      %v584 = vadd.f32 %v508, %v583
      %v585 = vpop.f32.mrb[0].mxu0
      %586 = vdwg.mxu0
      %v587 = vlaneseq
      %v588 = vshrl.u32 %v587, 7
      %v589 = vsub.s32 1, %v588
      %v590 = vrot.slane %v329, %v589
      %v591 = vmul.f32 %v321, %v590
      %v592 = vmul.f32 %v322, %v590
      %v593 = vmul.f32 %v323, %v590
      %v594 = vmul.f32 %v324, %v590
      %v595 = vmul.f32 %v325, %v590
      %v596 = vmul.f32 %v326, %v590
      %v597 = vmul.f32 %v327, %v590
      %v598 = vmul.f32 %v328, %v590
      %v599 = vadd.f32 %v591, %v356
      %v600 = vadd.f32 %v592, %v356
      %v601 = vadd.f32 %v593, %v356
      %v602 = vadd.f32 %v594, %v356
      %v603 = vadd.f32 %v595, %v356
      %v604 = vadd.f32 %v596, %v356
      %v605 = vadd.f32 %v597, %v356
      %v606 = vadd.f32 %v598, %v356
      %v607 = vsel %vm366, %v599, 0.0
      %608 = vadd.xlane.f32.xlu0 %v607
      %v609 = vpop.xlane.xlu0 %608
      %v610 = vsel %vm366, %v600, 0.0
      %611 = vadd.xlane.f32.xlu0 %v610
      %v612 = vpop.xlane.xlu0 %611
      %v613 = vsel %vm366, %v601, 0.0
      %614 = vadd.xlane.f32.xlu0 %v613
      %v615 = vpop.xlane.xlu0 %614
      %v616 = vsel %vm366, %v602, 0.0
      %617 = vadd.xlane.f32.xlu0 %v616
      %v618 = vpop.xlane.xlu0 %617
      %v619 = vsel %vm366, %v603, 0.0
      %620 = vadd.xlane.f32.xlu0 %v619
      %v621 = vpop.xlane.xlu0 %620
      %v622 = vsel %vm366, %v604, 0.0
      %623 = vadd.xlane.f32.xlu0 %v622
      %v624 = vpop.xlane.xlu0 %623
      %v625 = vsel %vm366, %v605, 0.0
      %626 = vadd.xlane.f32.xlu0 %v625
      %v627 = vpop.xlane.xlu0 %626
      %v628 = vsel %vm366, %v606, 0.0
      %629 = vadd.xlane.f32.xlu0 %v628
      %v630 = vpop.xlane.xlu0 %629
      %v631 = vmul.f32 %v609, %v391
      %v632 = vmul.f32 %v612, %v391
      %v633 = vmul.f32 %v615, %v391
      %v634 = vmul.f32 %v618, %v391
      %v635 = vmul.f32 %v621, %v391
      %v636 = vmul.f32 %v624, %v391
      %v637 = vmul.f32 %v627, %v391
      %v638 = vmul.f32 %v630, %v391
      %v639 = vsub.f32 %v599, %v631
      %v640 = vsub.f32 %v600, %v632
      %v641 = vsub.f32 %v601, %v633
      %v642 = vsub.f32 %v602, %v634
      %v643 = vsub.f32 %v603, %v635
      %v644 = vsub.f32 %v604, %v636
      %v645 = vsub.f32 %v605, %v637
      %v646 = vsub.f32 %v606, %v638
      %v647 = vmul.f32 %v639, %v639
      %v648 = vmul.f32 %v640, %v640
      %v649 = vmul.f32 %v641, %v641
      %v650 = vmul.f32 %v642, %v642
      %v651 = vmul.f32 %v643, %v643
      %v652 = vmul.f32 %v644, %v644
      %v653 = vmul.f32 %v645, %v645
      %v654 = vmul.f32 %v646, %v646
      %v655 = vsel %vm366, %v647, 0.0
      %656 = vadd.xlane.f32.xlu0 %v655
      %v657 = vpop.xlane.xlu0 %656
      %v658 = vsel %vm366, %v648, 0.0
      %659 = vadd.xlane.f32.xlu0 %v658
      %v660 = vpop.xlane.xlu0 %659
      %v661 = vsel %vm366, %v649, 0.0
      %662 = vadd.xlane.f32.xlu0 %v661
      %v663 = vpop.xlane.xlu0 %662
      %v664 = vsel %vm366, %v650, 0.0
      %665 = vadd.xlane.f32.xlu0 %v664
      %v666 = vpop.xlane.xlu0 %665
      %v667 = vsel %vm366, %v651, 0.0
      %668 = vadd.xlane.f32.xlu0 %v667
      %v669 = vpop.xlane.xlu0 %668
      %v670 = vsel %vm366, %v652, 0.0
      %671 = vadd.xlane.f32.xlu0 %v670
      %v672 = vpop.xlane.xlu0 %671
      %v673 = vsel %vm366, %v653, 0.0
      %674 = vadd.xlane.f32.xlu0 %v673
      %v675 = vpop.xlane.xlu0 %674
      %v676 = vsel %vm366, %v654, 0.0
      %677 = vadd.xlane.f32.xlu0 %v676
      %v678 = vpop.xlane.xlu0 %677
      %v679 = vmul.f32 %v657, %v391
      %v680 = vmul.f32 %v660, %v391
      %v681 = vmul.f32 %v663, %v391
      %v682 = vmul.f32 %v666, %v391
      %v683 = vmul.f32 %v669, %v391
      %v684 = vmul.f32 %v672, %v391
      %v685 = vmul.f32 %v675, %v391
      %v686 = vmul.f32 %v678, %v391
      %v687 = vadd.f32 %v679, 1e-05
      %v688 = vadd.f32 %v680, 1e-05
      %v689 = vadd.f32 %v681, 1e-05
      %v690 = vadd.f32 %v682, 1e-05
      %v691 = vadd.f32 %v683, 1e-05
      %v692 = vadd.f32 %v684, 1e-05
      %v693 = vadd.f32 %v685, 1e-05
      %v694 = vadd.f32 %v686, 1e-05
      %v695 = vrsqrt.pop %v687
      %v696 = vrsqrt.pop %v688
      %v697 = vrsqrt.pop %v689
      %v698 = vrsqrt.pop %v690
      %v699 = vrsqrt.pop %v691
      %v700 = vrsqrt.pop %v692
      %v701 = vrsqrt.pop %v693
      %v702 = vrsqrt.pop %v694
      %v703 = vmul.f32 %v639, %v695
      %v704 = vmul.f32 %v640, %v696
      %v705 = vmul.f32 %v641, %v697
      %v706 = vmul.f32 %v642, %v698
      %v707 = vmul.f32 %v643, %v699
      %v708 = vmul.f32 %v644, %v700
      %v709 = vmul.f32 %v645, %v701
      %v710 = vmul.f32 %v646, %v702
      %v711 = vmul.f32 %v703, %v476
      %v712 = vmul.f32 %v704, %v476
      %v713 = vmul.f32 %v705, %v476
      %v714 = vmul.f32 %v706, %v476
      %v715 = vmul.f32 %v707, %v476
      %v716 = vmul.f32 %v708, %v476
      %v717 = vmul.f32 %v709, %v476
      %v718 = vmul.f32 %v710, %v476
      %v719 = vadd.f32 %v711, %v490
      %v720 = vadd.f32 %v712, %v490
      %v721 = vadd.f32 %v713, %v490
      %v722 = vadd.f32 %v714, %v490
      %v723 = vadd.f32 %v715, %v490
      %v724 = vadd.f32 %v716, %v490
      %v725 = vadd.f32 %v717, %v490
      %v726 = vadd.f32 %v718, %v490
      %v727 = vpack.c.bf16 %v720, %v719
      %v728 = vpack.c.bf16 %v722, %v721
      %v729 = vpack.c.bf16 %v724, %v723
      %v730 = vpack.c.bf16 %v726, %v725
      %v732 = vsel %vm366, %v727, 0
      %v735 = vsel %vm366, %v728, 0
      %v738 = vsel %vm366, %v729, 0
      %v741 = vsel %vm366, %v730, 0
      %743 = vmatprep.subr.bf16.mxu0 0
      %744 = vmatpush1.bf16.msra.mxu0 %v337
      %745 = vmatprep.subr.bf16.mxu0 0
      %746 = vmatpush1.bf16.msra.mxu0 %v338
      %747 = vmatprep.subr.bf16.mxu0 0
      %748 = vmatpush1.bf16.msra.mxu0 0
      %749 = vmatprep.subr.bf16.mxu0 0
      %750 = vmatpush1.bf16.msra.mxu0 0
      %751 = vmatprep.subr.bf16.mxu0 0
      %752 = vmatpush1.bf16.msra.mxu0 0
      %753 = vmatprep.subr.bf16.mxu0 0
      %754 = vmatpush1.bf16.msra.mxu0 0
      %755 = vmatprep.subr.bf16.mxu0 0
      %756 = vmatpush1.bf16.msra.mxu0 0
      %757 = vmatprep.subr.bf16.mxu0 0
      %758 = vmatpush1.bf16.msra.mxu0 0
      %759 = vmatprep.subr.bf16.mxu0 0
      %760 = vmatpush1.bf16.msra.mxu0 0
      %761 = vmatprep.subr.bf16.mxu0 0
      %762 = vmatpush1.bf16.msra.mxu0 0
      %763 = vmatprep.subr.bf16.mxu0 0
      %764 = vmatpush1.bf16.msra.mxu0 0
      %765 = vmatprep.subr.bf16.mxu0 0
      %766 = vmatpush1.bf16.msra.mxu0 0
      %767 = vmatprep.subr.bf16.mxu0 0
      %768 = vmatpush1.bf16.msra.mxu0 0
      %769 = vmatprep.subr.bf16.mxu0 0
      %770 = vmatpush1.bf16.msra.mxu0 0
      %771 = vmatprep.subr.bf16.mxu0 0
      %772 = vmatpush1.bf16.msra.mxu0 0
      %773 = vmatprep.subr.bf16.mxu0 0
      %774 = vmatpush1.bf16.msra.mxu0 0
      %775 = vmatprep.mubr.bf16.mxu0 0
      %776 = vmatmul.mubr.bf16.gmra.mrb[0].mxu0 %v732
      %v777 = vpop.f32.mrb[0].mxu0
      %v778 = vadd.f32 %v508, %v777
      %v779 = vpop.f32.mrb[0].mxu0
      %v780 = vpop.f32.mrb[0].mxu0
      %v781 = vadd.f32 %v508, %v780
      %v782 = vpop.f32.mrb[0].mxu0
      %783 = vmatprep.mubr.bf16.mxu0 0
      %784 = vmatmul.mubr.bf16.gmra.mrb[0].mxu0 %v735
      %v785 = vpop.f32.mrb[0].mxu0
      %v786 = vadd.f32 %v508, %v785
      %v787 = vpop.f32.mrb[0].mxu0
      %v788 = vpop.f32.mrb[0].mxu0
      %v789 = vadd.f32 %v508, %v788
      %v790 = vpop.f32.mrb[0].mxu0
      %791 = vmatprep.mubr.bf16.mxu0 0
      %792 = vmatmul.mubr.bf16.gmra.mrb[0].mxu0 %v738
      %v793 = vpop.f32.mrb[0].mxu0
      %v794 = vadd.f32 %v508, %v793
      %v795 = vpop.f32.mrb[0].mxu0
      %v796 = vpop.f32.mrb[0].mxu0
      %v797 = vadd.f32 %v508, %v796
      %v798 = vpop.f32.mrb[0].mxu0
      %799 = vmatprep.mubr.bf16.mxu0 0
      %800 = vmatmul.mubr.bf16.gmra.mrb[0].mxu0 %v741
      %v801 = vpop.f32.mrb[0].mxu0
      %v802 = vadd.f32 %v508, %v801
      %v803 = vpop.f32.mrb[0].mxu0
      %v804 = vpop.f32.mrb[0].mxu0
      %v805 = vadd.f32 %v508, %v804
      %v806 = vpop.f32.mrb[0].mxu0
      %807 = vdwg.mxu0
      %816 = vrot.lane.b32.xlu0 %v778, 32
      %v817 = vpop.permute.xlu0 %816
      %818 = vrot.lane.b32.xlu0 %v781, 32
      %v819 = vpop.permute.xlu0 %818
      %820 = vrot.lane.b32.xlu0 %v786, 32
      %v821 = vpop.permute.xlu0 %820
      %822 = vrot.lane.b32.xlu0 %v789, 32
      %v823 = vpop.permute.xlu0 %822
      %824 = vrot.lane.b32.xlu0 %v794, 32
      %v825 = vpop.permute.xlu0 %824
      %826 = vrot.lane.b32.xlu0 %v797, 32
      %v827 = vpop.permute.xlu0 %826
      %828 = vrot.lane.b32.xlu0 %v802, 32
      %v829 = vpop.permute.xlu0 %828
      %830 = vrot.lane.b32.xlu0 %v805, 32
      %v831 = vpop.permute.xlu0 %830
      %v840 = vsel %vm366, %v557, %v817
      %v841 = vsel %vm366, %v560, %v819
      %v842 = vsel %vm366, %v565, %v821
      %v843 = vsel %vm366, %v568, %v823
      %v844 = vsel %vm366, %v573, %v825
      %v845 = vsel %vm366, %v576, %v827
      %v846 = vsel %vm366, %v581, %v829
      %v847 = vsel %vm366, %v584, %v831
      %vm848 = vcmask 523264
      %849 = vst.msk [vmem:[%s318] sm:$0xff] %vm848, %v840
      %850 = vst.msk [vmem:[%s318 + $0x10] sm:$0xff] %vm848, %v841
      %851 = vst.msk [vmem:[%s318 + $0x20] sm:$0xff] %vm848, %v842
      %852 = vst.msk [vmem:[%s318 + $0x30] sm:$0xff] %vm848, %v843
      %853 = vst.msk [vmem:[%s318 + $0x40] sm:$0xff] %vm848, %v844
      %854 = vst.msk [vmem:[%s318 + $0x50] sm:$0xff] %vm848, %v845
      %855 = vst.msk [vmem:[%s318 + $0x60] sm:$0xff] %vm848, %v846
      %856 = vst.msk [vmem:[%s318 + $0x70] sm:$0xff] %vm848, %v847
      %v857 = vlaneseq
      %v858 = vshrl.u32 %v857, 7
      %v859 = vsub.s32 2, %v858
      %v860 = vrot.slane %v329, %v859
      %v861 = vmul.f32 %v321, %v860
      %v862 = vmul.f32 %v322, %v860
      %v863 = vmul.f32 %v323, %v860
      %v864 = vmul.f32 %v324, %v860
      %v865 = vmul.f32 %v325, %v860
      %v866 = vmul.f32 %v326, %v860
      %v867 = vmul.f32 %v327, %v860
      %v868 = vmul.f32 %v328, %v860
      %v869 = vadd.f32 %v861, %v356
      %v870 = vadd.f32 %v862, %v356
      %v871 = vadd.f32 %v863, %v356
      %v872 = vadd.f32 %v864, %v356
      %v873 = vadd.f32 %v865, %v356
      %v874 = vadd.f32 %v866, %v356
      %v875 = vadd.f32 %v867, %v356
      %v876 = vadd.f32 %v868, %v356
      %v877 = vsel %vm366, %v869, 0.0
      %878 = vadd.xlane.f32.xlu0 %v877
      %v879 = vpop.xlane.xlu0 %878
      %v880 = vsel %vm366, %v870, 0.0
      %881 = vadd.xlane.f32.xlu0 %v880
      %v882 = vpop.xlane.xlu0 %881
      %v883 = vsel %vm366, %v871, 0.0
      %884 = vadd.xlane.f32.xlu0 %v883
      %v885 = vpop.xlane.xlu0 %884
      %v886 = vsel %vm366, %v872, 0.0
      %887 = vadd.xlane.f32.xlu0 %v886
      %v888 = vpop.xlane.xlu0 %887
      %v889 = vsel %vm366, %v873, 0.0
      %890 = vadd.xlane.f32.xlu0 %v889
      %v891 = vpop.xlane.xlu0 %890
      %v892 = vsel %vm366, %v874, 0.0
      %893 = vadd.xlane.f32.xlu0 %v892
      %v894 = vpop.xlane.xlu0 %893
      %v895 = vsel %vm366, %v875, 0.0
      %896 = vadd.xlane.f32.xlu0 %v895
      %v897 = vpop.xlane.xlu0 %896
      %v898 = vsel %vm366, %v876, 0.0
      %899 = vadd.xlane.f32.xlu0 %v898
      %v900 = vpop.xlane.xlu0 %899
      %v901 = vmul.f32 %v879, %v391
      %v902 = vmul.f32 %v882, %v391
      %v903 = vmul.f32 %v885, %v391
      %v904 = vmul.f32 %v888, %v391
      %v905 = vmul.f32 %v891, %v391
      %v906 = vmul.f32 %v894, %v391
      %v907 = vmul.f32 %v897, %v391
      %v908 = vmul.f32 %v900, %v391
      %v909 = vsub.f32 %v869, %v901
      %v910 = vsub.f32 %v870, %v902
      %v911 = vsub.f32 %v871, %v903
      %v912 = vsub.f32 %v872, %v904
      %v913 = vsub.f32 %v873, %v905
      %v914 = vsub.f32 %v874, %v906
      %v915 = vsub.f32 %v875, %v907
      %v916 = vsub.f32 %v876, %v908
      %v917 = vmul.f32 %v909, %v909
      %v918 = vmul.f32 %v910, %v910
      %v919 = vmul.f32 %v911, %v911
      %v920 = vmul.f32 %v912, %v912
      %v921 = vmul.f32 %v913, %v913
      %v922 = vmul.f32 %v914, %v914
      %v923 = vmul.f32 %v915, %v915
      %v924 = vmul.f32 %v916, %v916
      %v925 = vsel %vm366, %v917, 0.0
      %926 = vadd.xlane.f32.xlu0 %v925
      %v927 = vpop.xlane.xlu0 %926
      %v928 = vsel %vm366, %v918, 0.0
      %929 = vadd.xlane.f32.xlu0 %v928
      %v930 = vpop.xlane.xlu0 %929
      %v931 = vsel %vm366, %v919, 0.0
      %932 = vadd.xlane.f32.xlu0 %v931
      %v933 = vpop.xlane.xlu0 %932
      %v934 = vsel %vm366, %v920, 0.0
      %935 = vadd.xlane.f32.xlu0 %v934
      %v936 = vpop.xlane.xlu0 %935
      %v937 = vsel %vm366, %v921, 0.0
      %938 = vadd.xlane.f32.xlu0 %v937
      %v939 = vpop.xlane.xlu0 %938
      %v940 = vsel %vm366, %v922, 0.0
      %941 = vadd.xlane.f32.xlu0 %v940
      %v942 = vpop.xlane.xlu0 %941
      %v943 = vsel %vm366, %v923, 0.0
      %944 = vadd.xlane.f32.xlu0 %v943
      %v945 = vpop.xlane.xlu0 %944
      %v946 = vsel %vm366, %v924, 0.0
      %947 = vadd.xlane.f32.xlu0 %v946
      %v948 = vpop.xlane.xlu0 %947
      %v949 = vmul.f32 %v927, %v391
      %v950 = vmul.f32 %v930, %v391
      %v951 = vmul.f32 %v933, %v391
      %v952 = vmul.f32 %v936, %v391
      %v953 = vmul.f32 %v939, %v391
      %v954 = vmul.f32 %v942, %v391
      %v955 = vmul.f32 %v945, %v391
      %v956 = vmul.f32 %v948, %v391
      %v957 = vadd.f32 %v949, 1e-05
      %v958 = vadd.f32 %v950, 1e-05
      %v959 = vadd.f32 %v951, 1e-05
      %v960 = vadd.f32 %v952, 1e-05
      %v961 = vadd.f32 %v953, 1e-05
      %v962 = vadd.f32 %v954, 1e-05
      %v963 = vadd.f32 %v955, 1e-05
      %v964 = vadd.f32 %v956, 1e-05
      %v965 = vrsqrt.pop %v957
      %v966 = vrsqrt.pop %v958
      %v967 = vrsqrt.pop %v959
      %v968 = vrsqrt.pop %v960
      %v969 = vrsqrt.pop %v961
      %v970 = vrsqrt.pop %v962
      %v971 = vrsqrt.pop %v963
      %v972 = vrsqrt.pop %v964
      %v973 = vmul.f32 %v909, %v965
      %v974 = vmul.f32 %v910, %v966
      %v975 = vmul.f32 %v911, %v967
      %v976 = vmul.f32 %v912, %v968
      %v977 = vmul.f32 %v913, %v969
      %v978 = vmul.f32 %v914, %v970
      %v979 = vmul.f32 %v915, %v971
      %v980 = vmul.f32 %v916, %v972
      %v981 = vmul.f32 %v973, %v476
      %v982 = vmul.f32 %v974, %v476
      %v983 = vmul.f32 %v975, %v476
      %v984 = vmul.f32 %v976, %v476
      %v985 = vmul.f32 %v977, %v476
      %v986 = vmul.f32 %v978, %v476
      %v987 = vmul.f32 %v979, %v476
      %v988 = vmul.f32 %v980, %v476
      %v989 = vadd.f32 %v981, %v490
      %v990 = vadd.f32 %v982, %v490
      %v991 = vadd.f32 %v983, %v490
      %v992 = vadd.f32 %v984, %v490
      %v993 = vadd.f32 %v985, %v490
      %v994 = vadd.f32 %v986, %v490
      %v995 = vadd.f32 %v987, %v490
      %v996 = vadd.f32 %v988, %v490
      %v997 = vpack.c.bf16 %v990, %v989
      %v998 = vpack.c.bf16 %v992, %v991
      %v999 = vpack.c.bf16 %v994, %v993
      %v1000 = vpack.c.bf16 %v996, %v995
      %v1002 = vsel %vm366, %v997, 0
      %v1005 = vsel %vm366, %v998, 0
      %v1008 = vsel %vm366, %v999, 0
      %v1011 = vsel %vm366, %v1000, 0
      %1013 = vmatprep.subr.bf16.mxu0 0
      %1014 = vmatpush1.bf16.msra.mxu0 %v337
      %1015 = vmatprep.subr.bf16.mxu0 0
      %1016 = vmatpush1.bf16.msra.mxu0 %v338
      %1017 = vmatprep.subr.bf16.mxu0 0
      %1018 = vmatpush1.bf16.msra.mxu0 0
      %1019 = vmatprep.subr.bf16.mxu0 0
      %1020 = vmatpush1.bf16.msra.mxu0 0
      %1021 = vmatprep.subr.bf16.mxu0 0
      %1022 = vmatpush1.bf16.msra.mxu0 0
      %1023 = vmatprep.subr.bf16.mxu0 0
      %1024 = vmatpush1.bf16.msra.mxu0 0
      %1025 = vmatprep.subr.bf16.mxu0 0
      %1026 = vmatpush1.bf16.msra.mxu0 0
      %1027 = vmatprep.subr.bf16.mxu0 0
      %1028 = vmatpush1.bf16.msra.mxu0 0
      %1029 = vmatprep.subr.bf16.mxu0 0
      %1030 = vmatpush1.bf16.msra.mxu0 0
      %1031 = vmatprep.subr.bf16.mxu0 0
      %1032 = vmatpush1.bf16.msra.mxu0 0
      %1033 = vmatprep.subr.bf16.mxu0 0
      %1034 = vmatpush1.bf16.msra.mxu0 0
      %1035 = vmatprep.subr.bf16.mxu0 0
      %1036 = vmatpush1.bf16.msra.mxu0 0
      %1037 = vmatprep.subr.bf16.mxu0 0
      %1038 = vmatpush1.bf16.msra.mxu0 0
      %1039 = vmatprep.subr.bf16.mxu0 0
      %1040 = vmatpush1.bf16.msra.mxu0 0
      %1041 = vmatprep.subr.bf16.mxu0 0
      %1042 = vmatpush1.bf16.msra.mxu0 0
      %1043 = vmatprep.subr.bf16.mxu0 0
      %1044 = vmatpush1.bf16.msra.mxu0 0
      %1045 = vmatprep.mubr.bf16.mxu0 0
      %1046 = vmatmul.mubr.bf16.gmra.mrb[0].mxu0 %v1002
      %v1047 = vpop.f32.mrb[0].mxu0
      %v1048 = vadd.f32 %v508, %v1047
      %v1049 = vpop.f32.mrb[0].mxu0
      %v1050 = vpop.f32.mrb[0].mxu0
      %v1051 = vadd.f32 %v508, %v1050
      %v1052 = vpop.f32.mrb[0].mxu0
      %1053 = vmatprep.mubr.bf16.mxu0 0
      %1054 = vmatmul.mubr.bf16.gmra.mrb[0].mxu0 %v1005
      %v1055 = vpop.f32.mrb[0].mxu0
      %v1056 = vadd.f32 %v508, %v1055
      %v1057 = vpop.f32.mrb[0].mxu0
      %v1058 = vpop.f32.mrb[0].mxu0
      %v1059 = vadd.f32 %v508, %v1058
      %v1060 = vpop.f32.mrb[0].mxu0
      %1061 = vmatprep.mubr.bf16.mxu0 0
      %1062 = vmatmul.mubr.bf16.gmra.mrb[0].mxu0 %v1008
      %v1063 = vpop.f32.mrb[0].mxu0
      %v1064 = vadd.f32 %v508, %v1063
      %v1065 = vpop.f32.mrb[0].mxu0
      %v1066 = vpop.f32.mrb[0].mxu0
      %v1067 = vadd.f32 %v508, %v1066
      %v1068 = vpop.f32.mrb[0].mxu0
      %1069 = vmatprep.mubr.bf16.mxu0 0
      %1070 = vmatmul.mubr.bf16.gmra.mrb[0].mxu0 %v1011
      %v1071 = vpop.f32.mrb[0].mxu0
      %v1072 = vadd.f32 %v508, %v1071
      %v1073 = vpop.f32.mrb[0].mxu0
      %v1074 = vpop.f32.mrb[0].mxu0
      %v1075 = vadd.f32 %v508, %v1074
      %v1076 = vpop.f32.mrb[0].mxu0
      %1077 = vdwg.mxu0
      %v1078 = vlaneseq
      %v1079 = vshrl.u32 %v1078, 7
      %v1080 = vsub.s32 3, %v1079
      %v1081 = vrot.slane %v329, %v1080
      %v1082 = vmul.f32 %v321, %v1081
      %v1083 = vmul.f32 %v322, %v1081
      %v1084 = vmul.f32 %v323, %v1081
      %v1085 = vmul.f32 %v324, %v1081
      %v1086 = vmul.f32 %v325, %v1081
      %v1087 = vmul.f32 %v326, %v1081
      %v1088 = vmul.f32 %v327, %v1081
      %v1089 = vmul.f32 %v328, %v1081
      %v1090 = vadd.f32 %v1082, %v356
      %v1091 = vadd.f32 %v1083, %v356
      %v1092 = vadd.f32 %v1084, %v356
      %v1093 = vadd.f32 %v1085, %v356
      %v1094 = vadd.f32 %v1086, %v356
      %v1095 = vadd.f32 %v1087, %v356
      %v1096 = vadd.f32 %v1088, %v356
      %v1097 = vadd.f32 %v1089, %v356
      %v1098 = vsel %vm366, %v1090, 0.0
      %1099 = vadd.xlane.f32.xlu0 %v1098
      %v1100 = vpop.xlane.xlu0 %1099
      %v1101 = vsel %vm366, %v1091, 0.0
      %1102 = vadd.xlane.f32.xlu0 %v1101
      %v1103 = vpop.xlane.xlu0 %1102
      %v1104 = vsel %vm366, %v1092, 0.0
      %1105 = vadd.xlane.f32.xlu0 %v1104
      %v1106 = vpop.xlane.xlu0 %1105
      %v1107 = vsel %vm366, %v1093, 0.0
      %1108 = vadd.xlane.f32.xlu0 %v1107
      %v1109 = vpop.xlane.xlu0 %1108
      %v1110 = vsel %vm366, %v1094, 0.0
      %1111 = vadd.xlane.f32.xlu0 %v1110
      %v1112 = vpop.xlane.xlu0 %1111
      %v1113 = vsel %vm366, %v1095, 0.0
      %1114 = vadd.xlane.f32.xlu0 %v1113
      %v1115 = vpop.xlane.xlu0 %1114
      %v1116 = vsel %vm366, %v1096, 0.0
      %1117 = vadd.xlane.f32.xlu0 %v1116
      %v1118 = vpop.xlane.xlu0 %1117
      %v1119 = vsel %vm366, %v1097, 0.0
      %1120 = vadd.xlane.f32.xlu0 %v1119
      %v1121 = vpop.xlane.xlu0 %1120
      %v1122 = vmul.f32 %v1100, %v391
      %v1123 = vmul.f32 %v1103, %v391
      %v1124 = vmul.f32 %v1106, %v391
      %v1125 = vmul.f32 %v1109, %v391
      %v1126 = vmul.f32 %v1112, %v391
      %v1127 = vmul.f32 %v1115, %v391
      %v1128 = vmul.f32 %v1118, %v391
      %v1129 = vmul.f32 %v1121, %v391
      %v1130 = vsub.f32 %v1090, %v1122
      %v1131 = vsub.f32 %v1091, %v1123
      %v1132 = vsub.f32 %v1092, %v1124
      %v1133 = vsub.f32 %v1093, %v1125
      %v1134 = vsub.f32 %v1094, %v1126
      %v1135 = vsub.f32 %v1095, %v1127
      %v1136 = vsub.f32 %v1096, %v1128
      %v1137 = vsub.f32 %v1097, %v1129
      %v1138 = vmul.f32 %v1130, %v1130
      %v1139 = vmul.f32 %v1131, %v1131
      %v1140 = vmul.f32 %v1132, %v1132
      %v1141 = vmul.f32 %v1133, %v1133
      %v1142 = vmul.f32 %v1134, %v1134
      %v1143 = vmul.f32 %v1135, %v1135
      %v1144 = vmul.f32 %v1136, %v1136
      %v1145 = vmul.f32 %v1137, %v1137
      %v1146 = vsel %vm366, %v1138, 0.0
      %1147 = vadd.xlane.f32.xlu0 %v1146
      %v1148 = vpop.xlane.xlu0 %1147
      %v1149 = vsel %vm366, %v1139, 0.0
      %1150 = vadd.xlane.f32.xlu0 %v1149
      %v1151 = vpop.xlane.xlu0 %1150
      %v1152 = vsel %vm366, %v1140, 0.0
      %1153 = vadd.xlane.f32.xlu0 %v1152
      %v1154 = vpop.xlane.xlu0 %1153
      %v1155 = vsel %vm366, %v1141, 0.0
      %1156 = vadd.xlane.f32.xlu0 %v1155
      %v1157 = vpop.xlane.xlu0 %1156
      %v1158 = vsel %vm366, %v1142, 0.0
      %1159 = vadd.xlane.f32.xlu0 %v1158
      %v1160 = vpop.xlane.xlu0 %1159
      %v1161 = vsel %vm366, %v1143, 0.0
      %1162 = vadd.xlane.f32.xlu0 %v1161
      %v1163 = vpop.xlane.xlu0 %1162
      %v1164 = vsel %vm366, %v1144, 0.0
      %1165 = vadd.xlane.f32.xlu0 %v1164
      %v1166 = vpop.xlane.xlu0 %1165
      %v1167 = vsel %vm366, %v1145, 0.0
      %1168 = vadd.xlane.f32.xlu0 %v1167
      %v1169 = vpop.xlane.xlu0 %1168
      %v1170 = vmul.f32 %v1148, %v391
      %v1171 = vmul.f32 %v1151, %v391
      %v1172 = vmul.f32 %v1154, %v391
      %v1173 = vmul.f32 %v1157, %v391
      %v1174 = vmul.f32 %v1160, %v391
      %v1175 = vmul.f32 %v1163, %v391
      %v1176 = vmul.f32 %v1166, %v391
      %v1177 = vmul.f32 %v1169, %v391
      %v1178 = vadd.f32 %v1170, 1e-05
      %v1179 = vadd.f32 %v1171, 1e-05
      %v1180 = vadd.f32 %v1172, 1e-05
      %v1181 = vadd.f32 %v1173, 1e-05
      %v1182 = vadd.f32 %v1174, 1e-05
      %v1183 = vadd.f32 %v1175, 1e-05
      %v1184 = vadd.f32 %v1176, 1e-05
      %v1185 = vadd.f32 %v1177, 1e-05
      %v1186 = vrsqrt.pop %v1178
      %v1187 = vrsqrt.pop %v1179
      %v1188 = vrsqrt.pop %v1180
      %v1189 = vrsqrt.pop %v1181
      %v1190 = vrsqrt.pop %v1182
      %v1191 = vrsqrt.pop %v1183
      %v1192 = vrsqrt.pop %v1184
      %v1193 = vrsqrt.pop %v1185
      %v1194 = vmul.f32 %v1130, %v1186
      %v1195 = vmul.f32 %v1131, %v1187
      %v1196 = vmul.f32 %v1132, %v1188
      %v1197 = vmul.f32 %v1133, %v1189
      %v1198 = vmul.f32 %v1134, %v1190
      %v1199 = vmul.f32 %v1135, %v1191
      %v1200 = vmul.f32 %v1136, %v1192
      %v1201 = vmul.f32 %v1137, %v1193
      %v1202 = vmul.f32 %v1194, %v476
      %v1203 = vmul.f32 %v1195, %v476
      %v1204 = vmul.f32 %v1196, %v476
      %v1205 = vmul.f32 %v1197, %v476
      %v1206 = vmul.f32 %v1198, %v476
      %v1207 = vmul.f32 %v1199, %v476
      %v1208 = vmul.f32 %v1200, %v476
      %v1209 = vmul.f32 %v1201, %v476
      %v1210 = vadd.f32 %v1202, %v490
      %v1211 = vadd.f32 %v1203, %v490
      %v1212 = vadd.f32 %v1204, %v490
      %v1213 = vadd.f32 %v1205, %v490
      %v1214 = vadd.f32 %v1206, %v490
      %v1215 = vadd.f32 %v1207, %v490
      %v1216 = vadd.f32 %v1208, %v490
      %v1217 = vadd.f32 %v1209, %v490
      %v1218 = vpack.c.bf16 %v1211, %v1210
      %v1219 = vpack.c.bf16 %v1213, %v1212
      %v1220 = vpack.c.bf16 %v1215, %v1214
      %v1221 = vpack.c.bf16 %v1217, %v1216
      %v1223 = vsel %vm366, %v1218, 0
      %v1226 = vsel %vm366, %v1219, 0
      %v1229 = vsel %vm366, %v1220, 0
      %v1232 = vsel %vm366, %v1221, 0
      %1234 = vmatprep.subr.bf16.mxu0 0
      %1235 = vmatpush1.bf16.msra.mxu0 %v337
      %1236 = vmatprep.subr.bf16.mxu0 0
      %1237 = vmatpush1.bf16.msra.mxu0 %v338
      %1238 = vmatprep.subr.bf16.mxu0 0
      %1239 = vmatpush1.bf16.msra.mxu0 0
      %1240 = vmatprep.subr.bf16.mxu0 0
      %1241 = vmatpush1.bf16.msra.mxu0 0
      %1242 = vmatprep.subr.bf16.mxu0 0
      %1243 = vmatpush1.bf16.msra.mxu0 0
      %1244 = vmatprep.subr.bf16.mxu0 0
      %1245 = vmatpush1.bf16.msra.mxu0 0
      %1246 = vmatprep.subr.bf16.mxu0 0
      %1247 = vmatpush1.bf16.msra.mxu0 0
      %1248 = vmatprep.subr.bf16.mxu0 0
      %1249 = vmatpush1.bf16.msra.mxu0 0
      %1250 = vmatprep.subr.bf16.mxu0 0
      %1251 = vmatpush1.bf16.msra.mxu0 0
      %1252 = vmatprep.subr.bf16.mxu0 0
      %1253 = vmatpush1.bf16.msra.mxu0 0
      %1254 = vmatprep.subr.bf16.mxu0 0
      %1255 = vmatpush1.bf16.msra.mxu0 0
      %1256 = vmatprep.subr.bf16.mxu0 0
      %1257 = vmatpush1.bf16.msra.mxu0 0
      %1258 = vmatprep.subr.bf16.mxu0 0
      %1259 = vmatpush1.bf16.msra.mxu0 0
      %1260 = vmatprep.subr.bf16.mxu0 0
      %1261 = vmatpush1.bf16.msra.mxu0 0
      %1262 = vmatprep.subr.bf16.mxu0 0
      %1263 = vmatpush1.bf16.msra.mxu0 0
      %1264 = vmatprep.subr.bf16.mxu0 0
      %1265 = vmatpush1.bf16.msra.mxu0 0
      %1266 = vmatprep.mubr.bf16.mxu0 0
      %1267 = vmatmul.mubr.bf16.gmra.mrb[0].mxu0 %v1223
      %v1268 = vpop.f32.mrb[0].mxu0
      %v1269 = vadd.f32 %v508, %v1268
      %v1270 = vpop.f32.mrb[0].mxu0
      %v1271 = vpop.f32.mrb[0].mxu0
      %v1272 = vadd.f32 %v508, %v1271
      %v1273 = vpop.f32.mrb[0].mxu0
      %1274 = vmatprep.mubr.bf16.mxu0 0
      %1275 = vmatmul.mubr.bf16.gmra.mrb[0].mxu0 %v1226
      %v1276 = vpop.f32.mrb[0].mxu0
      %v1277 = vadd.f32 %v508, %v1276
      %v1278 = vpop.f32.mrb[0].mxu0
      %v1279 = vpop.f32.mrb[0].mxu0
      %v1280 = vadd.f32 %v508, %v1279
      %v1281 = vpop.f32.mrb[0].mxu0
      %1282 = vmatprep.mubr.bf16.mxu0 0
      %1283 = vmatmul.mubr.bf16.gmra.mrb[0].mxu0 %v1229
      %v1284 = vpop.f32.mrb[0].mxu0
      %v1285 = vadd.f32 %v508, %v1284
      %v1286 = vpop.f32.mrb[0].mxu0
      %v1287 = vpop.f32.mrb[0].mxu0
      %v1288 = vadd.f32 %v508, %v1287
      %v1289 = vpop.f32.mrb[0].mxu0
      %1290 = vmatprep.mubr.bf16.mxu0 0
      %1291 = vmatmul.mubr.bf16.gmra.mrb[0].mxu0 %v1232
      %v1292 = vpop.f32.mrb[0].mxu0
      %v1293 = vadd.f32 %v508, %v1292
      %v1294 = vpop.f32.mrb[0].mxu0
      %v1295 = vpop.f32.mrb[0].mxu0
      %v1296 = vadd.f32 %v508, %v1295
      %v1297 = vpop.f32.mrb[0].mxu0
      %1298 = vdwg.mxu0
      %1307 = vrot.lane.b32.xlu0 %v1269, 32
      %v1308 = vpop.permute.xlu0 %1307
      %1309 = vrot.lane.b32.xlu0 %v1272, 32
      %v1310 = vpop.permute.xlu0 %1309
      %1311 = vrot.lane.b32.xlu0 %v1277, 32
      %v1312 = vpop.permute.xlu0 %1311
      %1313 = vrot.lane.b32.xlu0 %v1280, 32
      %v1314 = vpop.permute.xlu0 %1313
      %1315 = vrot.lane.b32.xlu0 %v1285, 32
      %v1316 = vpop.permute.xlu0 %1315
      %1317 = vrot.lane.b32.xlu0 %v1288, 32
      %v1318 = vpop.permute.xlu0 %1317
      %1319 = vrot.lane.b32.xlu0 %v1293, 32
      %v1320 = vpop.permute.xlu0 %1319
      %1321 = vrot.lane.b32.xlu0 %v1296, 32
      %v1322 = vpop.permute.xlu0 %1321
      %v1331 = vsel %vm366, %v1048, %v1308
      %v1332 = vsel %vm366, %v1051, %v1310
      %v1333 = vsel %vm366, %v1056, %v1312
      %v1334 = vsel %vm366, %v1059, %v1314
      %v1335 = vsel %vm366, %v1064, %v1316
      %v1336 = vsel %vm366, %v1067, %v1318
      %v1337 = vsel %vm366, %v1072, %v1320
      %v1338 = vsel %vm366, %v1075, %v1322
      %s1339 = scalar_lea.vmem %s318, 8
      %1340 = vst.msk [vmem:[%s1339] sm:$0xff] %vm848, %v1331
      %1341 = vst.msk [vmem:[%s1339 + $0x10] sm:$0xff] %vm848, %v1332
      %1342 = vst.msk [vmem:[%s1339 + $0x20] sm:$0xff] %vm848, %v1333
      %1343 = vst.msk [vmem:[%s1339 + $0x30] sm:$0xff] %vm848, %v1334
      %1344 = vst.msk [vmem:[%s1339 + $0x40] sm:$0xff] %vm848, %v1335
      %1345 = vst.msk [vmem:[%s1339 + $0x50] sm:$0xff] %vm848, %v1336
      %1346 = vst.msk [vmem:[%s1339 + $0x60] sm:$0xff] %vm848, %v1337
      %1347 = vst.msk [vmem:[%s1339 + $0x70] sm:$0xff] %vm848, %v1338
      %s1348 = smul.u32 8, %s23
      %p1349 = scmp.lt.s32.totalorder %s22, 1
      %s1350 = scalar_select %p1349, %s22, 1
      %p1351 = scmp.lt.s32.totalorder %s1348, 7
      %s1352 = scalar_select %p1351, %s1348, 7
      %s1353 = smul.addr %s1352, 2
      %s1354 = smul.addr %s1350, 16
      %s1355 = sadd.s32 %s1353, %s1354
      %s1356 = smul.addr %s1355, 8
      %s1357 = scalar_lea.vmem %s7, %s1356
      // Predicated region
      $region49: #{global_sparse_attn.3} parent=47 // pred_check
        %p1358 = pneg %p204
      $region50: #{global_sparse_attn.3} parent=47 // pred_check_branch
        %1360 = sbr.rel (%p1358) target = $region52
      $region51: #{global_sparse_attn.3} parent=47 // pred_region
        %s1361 = smul.u32 8, %s23
      $region52: #{global_sparse_attn.3} parent=47 // pred_fallthru
        _
    $region48: #{global_sparse_attn.3} parent=5 // pred_fallthru
      _
    %p1362 = scmp.le.s32.totalorder 2, %s13
    // Predicated region
    $region53: #{global_sparse_attn.3} parent=5 // pred_check
      %p1363 = pneg %p1362
    $region54: #{global_sparse_attn.3} parent=5 // pred_check_branch
      %1365 = sbr.rel (%p1363) target = $region56
    $region55: #{global_sparse_attn.3} parent=5 // pred_region
      %s1366 = ssub.s32 %s13, 2
      // Predicated region
      $region57: #{global_sparse_attn.3} parent=55 // pred_check
        %p1367 = pneg %p210
      $region58: #{global_sparse_attn.3} parent=55 // pred_check_branch
        %1369 = sbr.rel (%p1367) target = $region60
      $region59: #{global_sparse_attn.3} parent=55 // pred_region
        %s1370 = smul.u32 8, %s25
        %p1371 = scmp.lt.s32.totalorder %s24, 1
        %s1372 = scalar_select %p1371, %s24, 1
        %p1373 = scmp.lt.s32.totalorder %s1370, 7
        %s1374 = scalar_select %p1373, %s1370, 7
        %s1375 = smul.addr %s1374, 2
        %s1376 = smul.addr %s1372, 16
        %s1377 = sadd.s32 %s1375, %s1376
        %s1378 = smul.addr %s1377, 8
        %s1379 = scalar_lea.vmem %s7, %s1378
      $region60: #{global_sparse_attn.3} parent=55 // pred_fallthru
        _
    $region56: #{global_sparse_attn.3} parent=5 // pred_fallthru
      _
  $region6: #{global_sparse_attn.3} parent=0 // loop_footer
    %s17 = sadd.s32 1, %s13
  $region7: #{global_sparse_attn.3} parent=0 // loop_footer_branch
    %12 = sbr.rel target = $region3
  $region8: #{global_sparse_attn.3} parent=0 // loop_exit
    _

// kernel: global_sparse_attn.2
$region0: #{global_sparse_attn.2}
  #allocation0 [shape = 'u32[]', space=smem, size = 0x4, offset = 0x4, fixed_abs, tag = 'smem constant byte address 0x4 - core index']
  #allocation1 [shape = 'u32[144,128]{1,0:T(1,128)}', space=vmem, size = 0x12000, scoped, tag = 'internal scratch']
  %s0 = inlined_call_operand.vmem [shape: f32[2,64,32], index: 0, kind: input, shape index: {}]
  %s1 = inlined_call_operand.vmem [shape: f32[32,96], index: 1, kind: input, shape index: {}]
  %s2 = inlined_call_operand.vmem [shape: f32[2,64,32], index: 2, kind: output, shape index: {}]
  %s3 = sld [smem:[#allocation0]]
  $region41: #{global_sparse_attn.2} parent=0
    _
  %s5 = ssub.s32 1, %s3
  %s6 = scalar_select 0, %s5, %s3
  loop: start=0, step=1, limit=4
  $region2: #{global_sparse_attn.2} parent=0 // loop_pre_header
    _
  $region3: #{global_sparse_attn.2} parent=0 // loop_header
    %s8 = sphi 0, %s12
    %p9 = scmp.ge.s32.totalorder %s8, 4
    %s18 = sphi 0, %s20
    %s21 = sphi 0, %s18
    %s22 = sphi 0, %s21
    %s38 = sphi 0, %s22
    %s42 = sphi 0, %s42
    %s44 = sphi 0, %s42
    %s45 = sphi 0, %s44
    %s59 = sphi 0, %s45
    %s65 = sphi 0, %s67
    %s68 = sphi 0, %s65
    %s69 = sphi 0, %s68
    %s85 = sphi 0, %s69
  $region4: #{global_sparse_attn.2} parent=0 // loop_header_branch
    %11 = sbr.rel (%p9) target = $region8
  $region5: #{global_sparse_attn.2} parent=0 // loop_body
    %s13 = ssub.s32 %s8, 1
    %s14 = ssub.s32 %s8, 2
    %s15 = sadd.s32 %s8, 1
    %s16 = ssub.s32 %s8, %s15
    %p17 = scmp.eq.s32.totalorder %s16, 0
    %s19 = sadd.s32 %s18, 1
    %s20 = scalar_select %p17, %s18, %s19
    %p23 = pneg %p17
    %p24 = scmp.eq.s32.totalorder %s8, 1
    %p25 = por %p23, %p24
    %p26 = scmp.ne.s32.totalorder %s18, %s21
    %p27 = scmp.eq.s32.totalorder %s8, 0
    %p28 = por %p26, %p27
    %p29 = scmp.ne.s32.totalorder %s18, %s21
    %p30 = scmp.eq.s32.totalorder %s13, 1
    %p31 = por %p29, %p30
    %p32 = scmp.ne.s32.totalorder %s21, %s22
    %p33 = scmp.eq.s32.totalorder %s13, 0
    %p34 = por %p32, %p33
    %p35 = scmp.ne.s32.totalorder %s21, %s22
    %p36 = scmp.eq.s32.totalorder %s14, 1
    %p37 = por %p35, %p36
    %p39 = scmp.ne.s32.totalorder %s22, %s38
    %p40 = scmp.eq.s32.totalorder %s14, 0
    %p41 = por %p39, %p40
    %s43 = sadd.s32 %s42, 1
    %p46 = scmp.eq.s32.totalorder %s8, 1
    %p47 = scmp.ne.s32.totalorder %s42, %s44
    %p48 = scmp.eq.s32.totalorder %s8, 0
    %p49 = por %p47, %p48
    %p50 = scmp.ne.s32.totalorder %s42, %s44
    %p51 = scmp.eq.s32.totalorder %s13, 1
    %p52 = por %p50, %p51
    %p53 = scmp.ne.s32.totalorder %s44, %s45
    %p54 = scmp.eq.s32.totalorder %s13, 0
    %p55 = por %p53, %p54
    %p56 = scmp.ne.s32.totalorder %s44, %s45
    %p57 = scmp.eq.s32.totalorder %s14, 1
    %p58 = por %p56, %p57
    %p60 = scmp.ne.s32.totalorder %s45, %s59
    %p61 = scmp.eq.s32.totalorder %s14, 0
    %p62 = por %p60, %p61
    %s63 = ssub.s32 %s8, %s15
    %p64 = scmp.eq.s32.totalorder %s63, 0
    %s66 = sadd.s32 %s65, 1
    %s67 = scalar_select %p64, %s65, %s66
    %p70 = pneg %p64
    %p71 = scmp.eq.s32.totalorder %s8, 1
    %p72 = por %p70, %p71
    %p73 = scmp.ne.s32.totalorder %s65, %s68
    %p74 = scmp.eq.s32.totalorder %s8, 0
    %p75 = por %p73, %p74
    %p76 = scmp.ne.s32.totalorder %s65, %s68
    %p77 = scmp.eq.s32.totalorder %s13, 1
    %p78 = por %p76, %p77
    %p79 = scmp.ne.s32.totalorder %s68, %s69
    %p80 = scmp.eq.s32.totalorder %s13, 0
    %p81 = por %p79, %p80
    %p82 = scmp.ne.s32.totalorder %s68, %s69
    %p83 = scmp.eq.s32.totalorder %s14, 1
    %p84 = por %p82, %p83
    %p86 = scmp.ne.s32.totalorder %s69, %s85
    %p87 = scmp.eq.s32.totalorder %s14, 0
    %p88 = por %p86, %p87
    %p89 = scmp.le.s32.totalorder 1, %s8
    %p90 = scmp.lt.s32.totalorder %s8, 3
    %p91 = pnand %p89, %p90
    %p92 = pneg %p91
    // Predicated region
    $region9: #{global_sparse_attn.2} parent=5 // pred_check
      _
    $region10: #{global_sparse_attn.2} parent=5 // pred_check_branch
      %94 = sbr.rel (%p91) target = $region12
    $region11: #{global_sparse_attn.2} parent=5 // pred_region
      %s95 = ssub.s32 %s8, 1
      // Predicated region
      $region13: #{global_sparse_attn.2} parent=11 // pred_check
        %p96 = pneg %p55
      $region14: #{global_sparse_attn.2} parent=11 // pred_check_branch
        %98 = sbr.rel (%p96) target = $region16
      $region15: #{global_sparse_attn.2} parent=11 // pred_region
        _
      $region16: #{global_sparse_attn.2} parent=11 // pred_fallthru
        _
    $region12: #{global_sparse_attn.2} parent=5 // pred_fallthru
      _
    %p99 = scmp.lt.s32.totalorder %s8, 2
    // Predicated region
    $region17: #{global_sparse_attn.2} parent=5 // pred_check
      %p100 = pneg %p99
    $region18: #{global_sparse_attn.2} parent=5 // pred_check_branch
      %102 = sbr.rel (%p100) target = $region20
    $region19: #{global_sparse_attn.2} parent=5 // pred_region
      // Predicated region
      $region21: #{global_sparse_attn.2} parent=19 // pred_check
        %p103 = pneg %p28
      $region22: #{global_sparse_attn.2} parent=19 // pred_check_branch
        %105 = sbr.rel (%p103) target = $region24
      $region23: #{global_sparse_attn.2} parent=19 // pred_region
        %p106 = scmp.lt.s32.totalorder %s8, 1
        %s107 = scalar_select %p106, %s8, 1
        %s108 = smul.addr %s107, 8
        %s109 = smul.addr %s108, 8
        %s110 = scalar_lea.vmem %s0, %s109
      $region24: #{global_sparse_attn.2} parent=19 // pred_fallthru
        _
    $region20: #{global_sparse_attn.2} parent=5 // pred_fallthru
      _
    %p111 = scmp.le.s32.totalorder 1, %s8
    %p112 = scmp.lt.s32.totalorder %s8, 3
    %p113 = pnand %p111, %p112
    %p114 = pneg %p113
    // Predicated region
    $region25: #{global_sparse_attn.2} parent=5 // pred_check
      _
    $region26: #{global_sparse_attn.2} parent=5 // pred_check_branch
      %116 = sbr.rel (%p113) target = $region28
    $region27: #{global_sparse_attn.2} parent=5 // pred_region
      %s117 = ssub.s32 %s8, 1
      %p118 = scmp.lt.s32.totalorder %s13, 1
      %s119 = scalar_select %p118, %s13, 1
      %s120 = smul.addr %s119, 8
      %s121 = smul.addr %s120, 8
      %s122 = scalar_lea.vmem %s0, %s121
      %p123 = pneg %p34
      %p124 = pneg %p31
      %p125 = pneg %p55
      %p126 = pneg %p52
      %p127 = pneg %p81
      %p128 = pneg %p78
      %p129 = scmp.lt.s32.totalorder %s13, 1
      %s130 = scalar_select %p129, %s13, 1
      %s131 = smul.addr %s130, 8
      %s132 = smul.addr %s131, 8
      %s133 = scalar_lea.vmem %s2, %s132
      %p134 = scmp.lt.s32.totalorder %s13, 1
      %s135 = scalar_select %p134, %s13, 1
      %s136 = smul.addr %s135, 8
      %s137 = smul.addr %s136, 8
      %s138 = scalar_lea.vmem %s0, %s137
      %p139 = scmp.lt.s32.totalorder %s13, 1
      %s140 = scalar_select %p139, %s13, 1
      %s141 = smul.addr %s140, 8
      %s142 = smul.addr %s141, 8
      %s143 = scalar_lea.vmem %s2, %s142
      %v145 = vld [vmem:[%s138] sm:$0xff]
      %v146 = vld [vmem:[%s138 + $0x8] sm:$0xff]
      %v147 = vld [vmem:[%s138 + $0x10] sm:$0xff]
      %v148 = vld [vmem:[%s138 + $0x18] sm:$0xff]
      %v149 = vld [vmem:[%s138 + $0x20] sm:$0xff]
      %v150 = vld [vmem:[%s138 + $0x28] sm:$0xff]
      %v151 = vld [vmem:[%s138 + $0x30] sm:$0xff]
      %v152 = vld [vmem:[%s138 + $0x38] sm:$0xff]
      %v153 = vpack.c.bf16 %v146, %v145
      %v154 = vpack.c.bf16 %v148, %v147
      %v155 = vpack.c.bf16 %v150, %v149
      %v156 = vpack.c.bf16 %v152, %v151
      %v157 = vld [vmem:[%s1] sm:$0xff]
      %v158 = vld [vmem:[%s1 + $0x8] sm:$0xff]
      %v159 = vld [vmem:[%s1 + $0x10] sm:$0xff]
      %v160 = vld [vmem:[%s1 + $0x18] sm:$0xff]
      %v161 = vpack.c.bf16 %v158, %v157
      %v162 = vpack.c.bf16 %v160, %v159
      %vm163 = vcmask 261120
      %v165 = vsel %vm163, %v153, 0
      %v168 = vsel %vm163, %v154, 0
      %v171 = vsel %vm163, %v155, 0
      %v174 = vsel %vm163, %v156, 0
      %176 = vmatprep.subr.bf16.mxu0 0
      %177 = vmatpush1.bf16.msra.mxu0 %v161
      %178 = vmatprep.subr.bf16.mxu0 0
      %179 = vmatpush1.bf16.msra.mxu0 %v162
      %180 = vmatprep.subr.bf16.mxu0 0
      %181 = vmatpush1.bf16.msra.mxu0 0
      %182 = vmatprep.subr.bf16.mxu0 0
      %183 = vmatpush1.bf16.msra.mxu0 0
      %184 = vmatprep.subr.bf16.mxu0 0
      %185 = vmatpush1.bf16.msra.mxu0 0
      %186 = vmatprep.subr.bf16.mxu0 0
      %187 = vmatpush1.bf16.msra.mxu0 0
      %188 = vmatprep.subr.bf16.mxu0 0
      %189 = vmatpush1.bf16.msra.mxu0 0
      %190 = vmatprep.subr.bf16.mxu0 0
      %191 = vmatpush1.bf16.msra.mxu0 0
      %192 = vmatprep.subr.bf16.mxu0 0
      %193 = vmatpush1.bf16.msra.mxu0 0
      %194 = vmatprep.subr.bf16.mxu0 0
      %195 = vmatpush1.bf16.msra.mxu0 0
      %196 = vmatprep.subr.bf16.mxu0 0
      %197 = vmatpush1.bf16.msra.mxu0 0
      %198 = vmatprep.subr.bf16.mxu0 0
      %199 = vmatpush1.bf16.msra.mxu0 0
      %200 = vmatprep.subr.bf16.mxu0 0
      %201 = vmatpush1.bf16.msra.mxu0 0
      %202 = vmatprep.subr.bf16.mxu0 0
      %203 = vmatpush1.bf16.msra.mxu0 0
      %204 = vmatprep.subr.bf16.mxu0 0
      %205 = vmatpush1.bf16.msra.mxu0 0
      %206 = vmatprep.subr.bf16.mxu0 0
      %207 = vmatpush1.bf16.msra.mxu0 0
      %208 = vmatprep.mubr.bf16.mxu0 0
      %209 = vmatmul.mubr.bf16.gmra.mrb[0].mxu0 %v165
      %v210 = vpop.f32.mrb[0].mxu0
      %v211 = vadd.f32 0.0, %v210
      %v212 = vpop.f32.mrb[0].mxu0
      %v213 = vpop.f32.mrb[0].mxu0
      %v214 = vadd.f32 0.0, %v213
      %v215 = vpop.f32.mrb[0].mxu0
      %216 = vmatprep.mubr.bf16.mxu0 0
      %217 = vmatmul.mubr.bf16.gmra.mrb[0].mxu0 %v168
      %v218 = vpop.f32.mrb[0].mxu0
      %v219 = vadd.f32 0.0, %v218
      %v220 = vpop.f32.mrb[0].mxu0
      %v221 = vpop.f32.mrb[0].mxu0
      %v222 = vadd.f32 0.0, %v221
      %v223 = vpop.f32.mrb[0].mxu0
      %224 = vmatprep.mubr.bf16.mxu0 0
      %225 = vmatmul.mubr.bf16.gmra.mrb[0].mxu0 %v171
      %v226 = vpop.f32.mrb[0].mxu0
      %v227 = vadd.f32 0.0, %v226
      %v228 = vpop.f32.mrb[0].mxu0
      %v229 = vpop.f32.mrb[0].mxu0
      %v230 = vadd.f32 0.0, %v229
      %v231 = vpop.f32.mrb[0].mxu0
      %232 = vmatprep.mubr.bf16.mxu0 0
      %233 = vmatmul.mubr.bf16.gmra.mrb[0].mxu0 %v174
      %v234 = vpop.f32.mrb[0].mxu0
      %v235 = vadd.f32 0.0, %v234
      %v236 = vpop.f32.mrb[0].mxu0
      %v237 = vpop.f32.mrb[0].mxu0
      %v238 = vadd.f32 0.0, %v237
      %v239 = vpop.f32.mrb[0].mxu0
      %240 = vdwg.mxu0
      %v241 = vmul.f32 %v211, 0.35355338
      %v242 = vmul.f32 %v214, 0.35355338
      %v243 = vmul.f32 %v219, 0.35355338
      %v244 = vmul.f32 %v222, 0.35355338
      %v245 = vmul.f32 %v227, 0.35355338
      %v246 = vmul.f32 %v230, 0.35355338
      %v247 = vmul.f32 %v235, 0.35355338
      %v248 = vmul.f32 %v238, 0.35355338
      %v249 = vpack.c.bf16 %v242, %v241
      %v250 = vpack.c.bf16 %v244, %v243
      %v251 = vpack.c.bf16 %v246, %v245
      %v252 = vpack.c.bf16 %v248, %v247
      %v253 = vpack.c.bf16 %v214, %v211
      %v254 = vpack.c.bf16 %v222, %v219
      %v255 = vpack.c.bf16 %v230, %v227
      %v256 = vpack.c.bf16 %v238, %v235
      %261 = vrot.lane.b32.xlu0 %v253, 96
      %v262 = vpop.permute.xlu0 %261
      %263 = vrot.lane.b32.xlu0 %v254, 96
      %v264 = vpop.permute.xlu0 %263
      %265 = vrot.lane.b32.xlu0 %v255, 96
      %v266 = vpop.permute.xlu0 %265
      %267 = vrot.lane.b32.xlu0 %v256, 96
      %v268 = vpop.permute.xlu0 %267
      %vm269 = vcmask 64512
      %v271 = vsel %vm269, %v249, 0
      %v274 = vsel %vm269, %v250, 0
      %v277 = vsel %vm269, %v251, 0
      %v280 = vsel %vm269, %v252, 0
      %v283 = vsel %vm269, %v262, 0
      %v286 = vsel %vm269, %v264, 0
      %v289 = vsel %vm269, %v266, 0
      %v292 = vsel %vm269, %v268, 0
      %294 = vmatprep.subr.bf16.mxu0 0
      %295 = vmatpush1.bf16.xpose.msra.mxu0 %v283
      %296 = vmatprep.subr.bf16.mxu0 0
      %297 = vmatpush1.bf16.xpose.msra.mxu0 %v286
      %298 = vmatprep.subr.bf16.mxu0 0
      %299 = vmatpush1.bf16.xpose.msra.mxu0 %v289
      %300 = vmatprep.subr.bf16.mxu0 0
      %301 = vmatpush1.bf16.xpose.msra.mxu0 %v292
      %302 = vmatprep.subr.bf16.mxu0 0
      %303 = vmatpush1.bf16.xpose.msra.mxu0 0
      %304 = vmatprep.subr.bf16.mxu0 0
      %305 = vmatpush1.bf16.xpose.msra.mxu0 0
      %306 = vmatprep.subr.bf16.mxu0 0
      %307 = vmatpush1.bf16.xpose.msra.mxu0 0
      %308 = vmatprep.subr.bf16.mxu0 0
      %309 = vmatpush1.bf16.xpose.msra.mxu0 0
      %310 = vmatprep.subr.bf16.mxu0 0
      %311 = vmatpush1.bf16.xpose.msra.mxu0 0
      %312 = vmatprep.subr.bf16.mxu0 0
      %313 = vmatpush1.bf16.xpose.msra.mxu0 0
      %314 = vmatprep.subr.bf16.mxu0 0
      %315 = vmatpush1.bf16.xpose.msra.mxu0 0
      %316 = vmatprep.subr.bf16.mxu0 0
      %317 = vmatpush1.bf16.xpose.msra.mxu0 0
      %318 = vmatprep.subr.bf16.mxu0 0
      %319 = vmatpush1.bf16.xpose.msra.mxu0 0
      %320 = vmatprep.subr.bf16.mxu0 0
      %321 = vmatpush1.bf16.xpose.msra.mxu0 0
      %322 = vmatprep.subr.bf16.mxu0 0
      %323 = vmatpush1.bf16.xpose.msra.mxu0 0
      %324 = vmatprep.subr.bf16.mxu0 0
      %325 = vmatpush1.bf16.xpose.msra.mxu0 0
      %326 = vmatprep.mubr.bf16.mxu0 0
      %327 = vmatmul.mubr.bf16.gmra.mrb[0].mxu0 %v271
      %v328 = vpop.f32.mrb[0].mxu0
      %v329 = vadd.f32 0.0, %v328
      %v330 = vpop.f32.mrb[0].mxu0
      %v331 = vpop.f32.mrb[0].mxu0
      %v332 = vadd.f32 0.0, %v331
      %v333 = vpop.f32.mrb[0].mxu0
      %334 = vmatprep.mubr.bf16.mxu0 0
      %335 = vmatmul.mubr.bf16.gmra.mrb[0].mxu0 %v274
      %v336 = vpop.f32.mrb[0].mxu0
      %v337 = vadd.f32 0.0, %v336
      %v338 = vpop.f32.mrb[0].mxu0
      %v339 = vpop.f32.mrb[0].mxu0
      %v340 = vadd.f32 0.0, %v339
      %v341 = vpop.f32.mrb[0].mxu0
      %342 = vmatprep.mubr.bf16.mxu0 0
      %343 = vmatmul.mubr.bf16.gmra.mrb[0].mxu0 %v277
      %v344 = vpop.f32.mrb[0].mxu0
      %v345 = vadd.f32 0.0, %v344
      %v346 = vpop.f32.mrb[0].mxu0
      %v347 = vpop.f32.mrb[0].mxu0
      %v348 = vadd.f32 0.0, %v347
      %v349 = vpop.f32.mrb[0].mxu0
      %350 = vmatprep.mubr.bf16.mxu0 0
      %351 = vmatmul.mubr.bf16.gmra.mrb[0].mxu0 %v280
      %v352 = vpop.f32.mrb[0].mxu0
      %v353 = vadd.f32 0.0, %v352
      %v354 = vpop.f32.mrb[0].mxu0
      %v355 = vpop.f32.mrb[0].mxu0
      %v356 = vadd.f32 0.0, %v355
      %v357 = vpop.f32.mrb[0].mxu0
      %358 = vdwg.mxu0
      %vm359 = vcmask 523264
      %v360 = vsel %vm359, %v329, -inf
      %361 = vmax.xlane.f32.xlu0 %v360
      %v362 = vpop.xlane.xlu0 %361
      %v363 = vsel %vm359, %v332, -inf
      %364 = vmax.xlane.f32.xlu0 %v363
      %v365 = vpop.xlane.xlu0 %364
      %v366 = vsel %vm359, %v337, -inf
      %367 = vmax.xlane.f32.xlu0 %v366
      %v368 = vpop.xlane.xlu0 %367
      %v369 = vsel %vm359, %v340, -inf
      %370 = vmax.xlane.f32.xlu0 %v369
      %v371 = vpop.xlane.xlu0 %370
      %v372 = vsel %vm359, %v345, -inf
      %373 = vmax.xlane.f32.xlu0 %v372
      %v374 = vpop.xlane.xlu0 %373
      %v375 = vsel %vm359, %v348, -inf
      %376 = vmax.xlane.f32.xlu0 %v375
      %v377 = vpop.xlane.xlu0 %376
      %v378 = vsel %vm359, %v353, -inf
      %379 = vmax.xlane.f32.xlu0 %v378
      %v380 = vpop.xlane.xlu0 %379
      %v381 = vsel %vm359, %v356, -inf
      %382 = vmax.xlane.f32.xlu0 %v381
      %v383 = vpop.xlane.xlu0 %382
      %v384 = vsub.f32 %v329, %v362
      %v385 = vsub.f32 %v332, %v365
      %v386 = vsub.f32 %v337, %v368
      %v387 = vsub.f32 %v340, %v371
      %v388 = vsub.f32 %v345, %v374
      %v389 = vsub.f32 %v348, %v377
      %v390 = vsub.f32 %v353, %v380
      %v391 = vsub.f32 %v356, %v383
      %v392 = vmul.f32 %v384, 1.442695
      %v393 = vpow.pop %v392
      %v394 = vmul.f32 %v385, 1.442695
      %v395 = vpow.pop %v394
      %v396 = vmul.f32 %v386, 1.442695
      %v397 = vpow.pop %v396
      %v398 = vmul.f32 %v387, 1.442695
      %v399 = vpow.pop %v398
      %v400 = vmul.f32 %v388, 1.442695
      %v401 = vpow.pop %v400
      %v402 = vmul.f32 %v389, 1.442695
      %v403 = vpow.pop %v402
      %v404 = vmul.f32 %v390, 1.442695
      %v405 = vpow.pop %v404
      %v406 = vmul.f32 %v391, 1.442695
      %v407 = vpow.pop %v406
      %v408 = vsel %vm359, %v393, 0.0
      %409 = vadd.xlane.f32.xlu0 %v408
      %v410 = vpop.xlane.xlu0 %409
      %v411 = vsel %vm359, %v395, 0.0
      %412 = vadd.xlane.f32.xlu0 %v411
      %v413 = vpop.xlane.xlu0 %412
      %v414 = vsel %vm359, %v397, 0.0
      %415 = vadd.xlane.f32.xlu0 %v414
      %v416 = vpop.xlane.xlu0 %415
      %v417 = vsel %vm359, %v399, 0.0
      %418 = vadd.xlane.f32.xlu0 %v417
      %v419 = vpop.xlane.xlu0 %418
      %v420 = vsel %vm359, %v401, 0.0
      %421 = vadd.xlane.f32.xlu0 %v420
      %v422 = vpop.xlane.xlu0 %421
      %v423 = vsel %vm359, %v403, 0.0
      %424 = vadd.xlane.f32.xlu0 %v423
      %v425 = vpop.xlane.xlu0 %424
      %v426 = vsel %vm359, %v405, 0.0
      %427 = vadd.xlane.f32.xlu0 %v426
      %v428 = vpop.xlane.xlu0 %427
      %v429 = vsel %vm359, %v407, 0.0
      %430 = vadd.xlane.f32.xlu0 %v429
      %v431 = vpop.xlane.xlu0 %430
      %v432 = vrcp.pop %v410
      %v433 = vrcp.pop %v413
      %v434 = vrcp.pop %v416
      %v435 = vrcp.pop %v419
      %v436 = vrcp.pop %v422
      %v437 = vrcp.pop %v425
      %v438 = vrcp.pop %v428
      %v439 = vrcp.pop %v431
      %v440 = vmul.f32 %v393, %v432
      %v441 = vmul.f32 %v395, %v433
      %v442 = vmul.f32 %v397, %v434
      %v443 = vmul.f32 %v399, %v435
      %v444 = vmul.f32 %v401, %v436
      %v445 = vmul.f32 %v403, %v437
      %v446 = vmul.f32 %v405, %v438
      %v447 = vmul.f32 %v407, %v439
      %v448 = vpack.c.bf16 %v441, %v440
      %v449 = vpack.c.bf16 %v443, %v442
      %v450 = vpack.c.bf16 %v445, %v444
      %v451 = vpack.c.bf16 %v447, %v446
      %452 = vrot.lane.b32.xlu0 %v253, 64
      %v453 = vpop.permute.xlu0 %452
      %454 = vrot.lane.b32.xlu0 %v254, 64
      %v455 = vpop.permute.xlu0 %454
      %456 = vrot.lane.b32.xlu0 %v255, 64
      %v457 = vpop.permute.xlu0 %456
      %458 = vrot.lane.b32.xlu0 %v256, 64
      %v459 = vpop.permute.xlu0 %458
      %v465 = vsel %vm359, %v448, 0
      %v468 = vsel %vm359, %v449, 0
      %v471 = vsel %vm359, %v450, 0
      %v474 = vsel %vm359, %v451, 0
      %476 = vmatprep.subr.bf16.mxu0 0
      %477 = vmatpush1.bf16.msra.mxu0 %v453
      %478 = vmatprep.subr.bf16.mxu0 0
      %479 = vmatpush1.bf16.msra.mxu0 %v455
      %480 = vmatprep.subr.bf16.mxu0 0
      %481 = vmatpush1.bf16.msra.mxu0 %v457
      %482 = vmatprep.subr.bf16.mxu0 0
      %483 = vmatpush1.bf16.msra.mxu0 %v459
      %484 = vmatprep.subr.bf16.mxu0 0
      %485 = vmatpush1.bf16.msra.mxu0 0
      %486 = vmatprep.subr.bf16.mxu0 0
      %487 = vmatpush1.bf16.msra.mxu0 0
      %488 = vmatprep.subr.bf16.mxu0 0
      %489 = vmatpush1.bf16.msra.mxu0 0
      %490 = vmatprep.subr.bf16.mxu0 0
      %491 = vmatpush1.bf16.msra.mxu0 0
      %492 = vmatprep.subr.bf16.mxu0 0
      %493 = vmatpush1.bf16.msra.mxu0 0
      %494 = vmatprep.subr.bf16.mxu0 0
      %495 = vmatpush1.bf16.msra.mxu0 0
      %496 = vmatprep.subr.bf16.mxu0 0
      %497 = vmatpush1.bf16.msra.mxu0 0
      %498 = vmatprep.subr.bf16.mxu0 0
      %499 = vmatpush1.bf16.msra.mxu0 0
      %500 = vmatprep.subr.bf16.mxu0 0
      %501 = vmatpush1.bf16.msra.mxu0 0
      %502 = vmatprep.subr.bf16.mxu0 0
      %503 = vmatpush1.bf16.msra.mxu0 0
      %504 = vmatprep.subr.bf16.mxu0 0
      %505 = vmatpush1.bf16.msra.mxu0 0
      %506 = vmatprep.subr.bf16.mxu0 0
      %507 = vmatpush1.bf16.msra.mxu0 0
      %508 = vmatprep.mubr.bf16.mxu0 0
      %509 = vmatmul.mubr.bf16.gmra.mrb[0].mxu0 %v465
      %v510 = vpop.f32.mrb[0].mxu0
      %v511 = vadd.f32 0.0, %v510
      %v512 = vpop.f32.mrb[0].mxu0
      %v513 = vpop.f32.mrb[0].mxu0
      %v514 = vadd.f32 0.0, %v513
      %v515 = vpop.f32.mrb[0].mxu0
      %516 = vmatprep.mubr.bf16.mxu0 0
      %517 = vmatmul.mubr.bf16.gmra.mrb[0].mxu0 %v468
      %v518 = vpop.f32.mrb[0].mxu0
      %v519 = vadd.f32 0.0, %v518
      %v520 = vpop.f32.mrb[0].mxu0
      %v521 = vpop.f32.mrb[0].mxu0
      %v522 = vadd.f32 0.0, %v521
      %v523 = vpop.f32.mrb[0].mxu0
      %524 = vmatprep.mubr.bf16.mxu0 0
      %525 = vmatmul.mubr.bf16.gmra.mrb[0].mxu0 %v471
      %v526 = vpop.f32.mrb[0].mxu0
      %v527 = vadd.f32 0.0, %v526
      %v528 = vpop.f32.mrb[0].mxu0
      %v529 = vpop.f32.mrb[0].mxu0
      %v530 = vadd.f32 0.0, %v529
      %v531 = vpop.f32.mrb[0].mxu0
      %532 = vmatprep.mubr.bf16.mxu0 0
      %533 = vmatmul.mubr.bf16.gmra.mrb[0].mxu0 %v474
      %v534 = vpop.f32.mrb[0].mxu0
      %v535 = vadd.f32 0.0, %v534
      %v536 = vpop.f32.mrb[0].mxu0
      %v537 = vpop.f32.mrb[0].mxu0
      %v538 = vadd.f32 0.0, %v537
      %v539 = vpop.f32.mrb[0].mxu0
      %540 = vdwg.mxu0
      %545 = vrot.lane.b32.xlu0 %v249, 120
      %v546 = vpop.permute.xlu0 %545
      %547 = vrot.lane.b32.xlu0 %v250, 120
      %v548 = vpop.permute.xlu0 %547
      %549 = vrot.lane.b32.xlu0 %v251, 120
      %v550 = vpop.permute.xlu0 %549
      %551 = vrot.lane.b32.xlu0 %v252, 120
      %v552 = vpop.permute.xlu0 %551
      %553 = vrot.lane.b32.xlu0 %v253, 88
      %v554 = vpop.permute.xlu0 %553
      %555 = vrot.lane.b32.xlu0 %v254, 88
      %v556 = vpop.permute.xlu0 %555
      %557 = vrot.lane.b32.xlu0 %v255, 88
      %v558 = vpop.permute.xlu0 %557
      %559 = vrot.lane.b32.xlu0 %v256, 88
      %v560 = vpop.permute.xlu0 %559
      %v562 = vsel %vm269, %v546, 0
      %v565 = vsel %vm269, %v548, 0
      %v568 = vsel %vm269, %v550, 0
      %v571 = vsel %vm269, %v552, 0
      %v574 = vsel %vm269, %v554, 0
      %v577 = vsel %vm269, %v556, 0
      %v580 = vsel %vm269, %v558, 0
      %v583 = vsel %vm269, %v560, 0
      %585 = vmatprep.subr.bf16.mxu0 0
      %586 = vmatpush1.bf16.xpose.msra.mxu0 %v574
      %587 = vmatprep.subr.bf16.mxu0 0
      %588 = vmatpush1.bf16.xpose.msra.mxu0 %v577
      %589 = vmatprep.subr.bf16.mxu0 0
      %590 = vmatpush1.bf16.xpose.msra.mxu0 %v580
      %591 = vmatprep.subr.bf16.mxu0 0
      %592 = vmatpush1.bf16.xpose.msra.mxu0 %v583
      %593 = vmatprep.subr.bf16.mxu0 0
      %594 = vmatpush1.bf16.xpose.msra.mxu0 0
      %595 = vmatprep.subr.bf16.mxu0 0
      %596 = vmatpush1.bf16.xpose.msra.mxu0 0
      %597 = vmatprep.subr.bf16.mxu0 0
      %598 = vmatpush1.bf16.xpose.msra.mxu0 0
      %599 = vmatprep.subr.bf16.mxu0 0
      %600 = vmatpush1.bf16.xpose.msra.mxu0 0
      %601 = vmatprep.subr.bf16.mxu0 0
      %602 = vmatpush1.bf16.xpose.msra.mxu0 0
      %603 = vmatprep.subr.bf16.mxu0 0
      %604 = vmatpush1.bf16.xpose.msra.mxu0 0
      %605 = vmatprep.subr.bf16.mxu0 0
      %606 = vmatpush1.bf16.xpose.msra.mxu0 0
      %607 = vmatprep.subr.bf16.mxu0 0
      %608 = vmatpush1.bf16.xpose.msra.mxu0 0
      %609 = vmatprep.subr.bf16.mxu0 0
      %610 = vmatpush1.bf16.xpose.msra.mxu0 0
      %611 = vmatprep.subr.bf16.mxu0 0
      %612 = vmatpush1.bf16.xpose.msra.mxu0 0
      %613 = vmatprep.subr.bf16.mxu0 0
      %614 = vmatpush1.bf16.xpose.msra.mxu0 0
      %615 = vmatprep.subr.bf16.mxu0 0
      %616 = vmatpush1.bf16.xpose.msra.mxu0 0
      %617 = vmatprep.mubr.bf16.mxu0 0
      %618 = vmatmul.mubr.bf16.gmra.mrb[0].mxu0 %v562
      %v619 = vpop.f32.mrb[0].mxu0
      %v620 = vadd.f32 0.0, %v619
      %v621 = vpop.f32.mrb[0].mxu0
      %v622 = vpop.f32.mrb[0].mxu0
      %v623 = vadd.f32 0.0, %v622
      %v624 = vpop.f32.mrb[0].mxu0
      %625 = vmatprep.mubr.bf16.mxu0 0
      %626 = vmatmul.mubr.bf16.gmra.mrb[0].mxu0 %v565
      %v627 = vpop.f32.mrb[0].mxu0
      %v628 = vadd.f32 0.0, %v627
      %v629 = vpop.f32.mrb[0].mxu0
      %v630 = vpop.f32.mrb[0].mxu0
      %v631 = vadd.f32 0.0, %v630
      %v632 = vpop.f32.mrb[0].mxu0
      %633 = vmatprep.mubr.bf16.mxu0 0
      %634 = vmatmul.mubr.bf16.gmra.mrb[0].mxu0 %v568
      %v635 = vpop.f32.mrb[0].mxu0
      %v636 = vadd.f32 0.0, %v635
      %v637 = vpop.f32.mrb[0].mxu0
      %v638 = vpop.f32.mrb[0].mxu0
      %v639 = vadd.f32 0.0, %v638
      %v640 = vpop.f32.mrb[0].mxu0
      %641 = vmatprep.mubr.bf16.mxu0 0
      %642 = vmatmul.mubr.bf16.gmra.mrb[0].mxu0 %v571
      %v643 = vpop.f32.mrb[0].mxu0
      %v644 = vadd.f32 0.0, %v643
      %v645 = vpop.f32.mrb[0].mxu0
      %v646 = vpop.f32.mrb[0].mxu0
      %v647 = vadd.f32 0.0, %v646
      %v648 = vpop.f32.mrb[0].mxu0
      %649 = vdwg.mxu0
      %v650 = vsel %vm359, %v620, -inf
      %651 = vmax.xlane.f32.xlu0 %v650
      %v652 = vpop.xlane.xlu0 %651
      %v653 = vsel %vm359, %v623, -inf
      %654 = vmax.xlane.f32.xlu0 %v653
      %v655 = vpop.xlane.xlu0 %654
      %v656 = vsel %vm359, %v628, -inf
      %657 = vmax.xlane.f32.xlu0 %v656
      %v658 = vpop.xlane.xlu0 %657
      %v659 = vsel %vm359, %v631, -inf
      %660 = vmax.xlane.f32.xlu0 %v659
      %v661 = vpop.xlane.xlu0 %660
      %v662 = vsel %vm359, %v636, -inf
      %663 = vmax.xlane.f32.xlu0 %v662
      %v664 = vpop.xlane.xlu0 %663
      %v665 = vsel %vm359, %v639, -inf
      %666 = vmax.xlane.f32.xlu0 %v665
      %v667 = vpop.xlane.xlu0 %666
      %v668 = vsel %vm359, %v644, -inf
      %669 = vmax.xlane.f32.xlu0 %v668
      %v670 = vpop.xlane.xlu0 %669
      %v671 = vsel %vm359, %v647, -inf
      %672 = vmax.xlane.f32.xlu0 %v671
      %v673 = vpop.xlane.xlu0 %672
      %v674 = vsub.f32 %v620, %v652
      %v675 = vsub.f32 %v623, %v655
      %v676 = vsub.f32 %v628, %v658
      %v677 = vsub.f32 %v631, %v661
      %v678 = vsub.f32 %v636, %v664
      %v679 = vsub.f32 %v639, %v667
      %v680 = vsub.f32 %v644, %v670
      %v681 = vsub.f32 %v647, %v673
      %v682 = vmul.f32 %v674, 1.442695
      %v683 = vpow.pop %v682
      %v684 = vmul.f32 %v675, 1.442695
      %v685 = vpow.pop %v684
      %v686 = vmul.f32 %v676, 1.442695
      %v687 = vpow.pop %v686
      %v688 = vmul.f32 %v677, 1.442695
      %v689 = vpow.pop %v688
      %v690 = vmul.f32 %v678, 1.442695
      %v691 = vpow.pop %v690
      %v692 = vmul.f32 %v679, 1.442695
      %v693 = vpow.pop %v692
      %v694 = vmul.f32 %v680, 1.442695
      %v695 = vpow.pop %v694
      %v696 = vmul.f32 %v681, 1.442695
      %v697 = vpow.pop %v696
      %v698 = vsel %vm359, %v683, 0.0
      %699 = vadd.xlane.f32.xlu0 %v698
      %v700 = vpop.xlane.xlu0 %699
      %v701 = vsel %vm359, %v685, 0.0
      %702 = vadd.xlane.f32.xlu0 %v701
      %v703 = vpop.xlane.xlu0 %702
      %v704 = vsel %vm359, %v687, 0.0
      %705 = vadd.xlane.f32.xlu0 %v704
      %v706 = vpop.xlane.xlu0 %705
      %v707 = vsel %vm359, %v689, 0.0
      %708 = vadd.xlane.f32.xlu0 %v707
      %v709 = vpop.xlane.xlu0 %708
      %v710 = vsel %vm359, %v691, 0.0
      %711 = vadd.xlane.f32.xlu0 %v710
      %v712 = vpop.xlane.xlu0 %711
      %v713 = vsel %vm359, %v693, 0.0
      %714 = vadd.xlane.f32.xlu0 %v713
      %v715 = vpop.xlane.xlu0 %714
      %v716 = vsel %vm359, %v695, 0.0
      %717 = vadd.xlane.f32.xlu0 %v716
      %v718 = vpop.xlane.xlu0 %717
      %v719 = vsel %vm359, %v697, 0.0
      %720 = vadd.xlane.f32.xlu0 %v719
      %v721 = vpop.xlane.xlu0 %720
      %v722 = vrcp.pop %v700
      %v723 = vrcp.pop %v703
      %v724 = vrcp.pop %v706
      %v725 = vrcp.pop %v709
      %v726 = vrcp.pop %v712
      %v727 = vrcp.pop %v715
      %v728 = vrcp.pop %v718
      %v729 = vrcp.pop %v721
      %v730 = vmul.f32 %v683, %v722
      %v731 = vmul.f32 %v685, %v723
      %v732 = vmul.f32 %v687, %v724
      %v733 = vmul.f32 %v689, %v725
      %v734 = vmul.f32 %v691, %v726
      %v735 = vmul.f32 %v693, %v727
      %v736 = vmul.f32 %v695, %v728
      %v737 = vmul.f32 %v697, %v729
      %v738 = vpack.c.bf16 %v731, %v730
      %v739 = vpack.c.bf16 %v733, %v732
      %v740 = vpack.c.bf16 %v735, %v734
      %v741 = vpack.c.bf16 %v737, %v736
      %742 = vrot.lane.b32.xlu0 %v253, 56
      %v743 = vpop.permute.xlu0 %742
      %744 = vrot.lane.b32.xlu0 %v254, 56
      %v745 = vpop.permute.xlu0 %744
      %746 = vrot.lane.b32.xlu0 %v255, 56
      %v747 = vpop.permute.xlu0 %746
      %748 = vrot.lane.b32.xlu0 %v256, 56
      %v749 = vpop.permute.xlu0 %748
      %v755 = vsel %vm359, %v738, 0
      %v758 = vsel %vm359, %v739, 0
      %v761 = vsel %vm359, %v740, 0
      %v764 = vsel %vm359, %v741, 0
      %766 = vmatprep.subr.bf16.mxu0 0
      %767 = vmatpush1.bf16.msra.mxu0 %v743
      %768 = vmatprep.subr.bf16.mxu0 0
      %769 = vmatpush1.bf16.msra.mxu0 %v745
      %770 = vmatprep.subr.bf16.mxu0 0
      %771 = vmatpush1.bf16.msra.mxu0 %v747
      %772 = vmatprep.subr.bf16.mxu0 0
      %773 = vmatpush1.bf16.msra.mxu0 %v749
      %774 = vmatprep.subr.bf16.mxu0 0
      %775 = vmatpush1.bf16.msra.mxu0 0
      %776 = vmatprep.subr.bf16.mxu0 0
      %777 = vmatpush1.bf16.msra.mxu0 0
      %778 = vmatprep.subr.bf16.mxu0 0
      %779 = vmatpush1.bf16.msra.mxu0 0
      %780 = vmatprep.subr.bf16.mxu0 0
      %781 = vmatpush1.bf16.msra.mxu0 0
      %782 = vmatprep.subr.bf16.mxu0 0
      %783 = vmatpush1.bf16.msra.mxu0 0
      %784 = vmatprep.subr.bf16.mxu0 0
      %785 = vmatpush1.bf16.msra.mxu0 0
      %786 = vmatprep.subr.bf16.mxu0 0
      %787 = vmatpush1.bf16.msra.mxu0 0
      %788 = vmatprep.subr.bf16.mxu0 0
      %789 = vmatpush1.bf16.msra.mxu0 0
      %790 = vmatprep.subr.bf16.mxu0 0
      %791 = vmatpush1.bf16.msra.mxu0 0
      %792 = vmatprep.subr.bf16.mxu0 0
      %793 = vmatpush1.bf16.msra.mxu0 0
      %794 = vmatprep.subr.bf16.mxu0 0
      %795 = vmatpush1.bf16.msra.mxu0 0
      %796 = vmatprep.subr.bf16.mxu0 0
      %797 = vmatpush1.bf16.msra.mxu0 0
      %798 = vmatprep.mubr.bf16.mxu0 0
      %799 = vmatmul.mubr.bf16.gmra.mrb[0].mxu0 %v755
      %v800 = vpop.f32.mrb[0].mxu0
      %v801 = vadd.f32 0.0, %v800
      %v802 = vpop.f32.mrb[0].mxu0
      %v803 = vpop.f32.mrb[0].mxu0
      %v804 = vadd.f32 0.0, %v803
      %v805 = vpop.f32.mrb[0].mxu0
      %806 = vmatprep.mubr.bf16.mxu0 0
      %807 = vmatmul.mubr.bf16.gmra.mrb[0].mxu0 %v758
      %v808 = vpop.f32.mrb[0].mxu0
      %v809 = vadd.f32 0.0, %v808
      %v810 = vpop.f32.mrb[0].mxu0
      %v811 = vpop.f32.mrb[0].mxu0
      %v812 = vadd.f32 0.0, %v811
      %v813 = vpop.f32.mrb[0].mxu0
      %814 = vmatprep.mubr.bf16.mxu0 0
      %815 = vmatmul.mubr.bf16.gmra.mrb[0].mxu0 %v761
      %v816 = vpop.f32.mrb[0].mxu0
      %v817 = vadd.f32 0.0, %v816
      %v818 = vpop.f32.mrb[0].mxu0
      %v819 = vpop.f32.mrb[0].mxu0
      %v820 = vadd.f32 0.0, %v819
      %v821 = vpop.f32.mrb[0].mxu0
      %822 = vmatprep.mubr.bf16.mxu0 0
      %823 = vmatmul.mubr.bf16.gmra.mrb[0].mxu0 %v764
      %v824 = vpop.f32.mrb[0].mxu0
      %v825 = vadd.f32 0.0, %v824
      %v826 = vpop.f32.mrb[0].mxu0
      %v827 = vpop.f32.mrb[0].mxu0
      %v828 = vadd.f32 0.0, %v827
      %v829 = vpop.f32.mrb[0].mxu0
      %830 = vdwg.mxu0
      %831 = vrot.lane.b32.xlu0 %v249, 112
      %v832 = vpop.permute.xlu0 %831
      %833 = vrot.lane.b32.xlu0 %v250, 112
      %v834 = vpop.permute.xlu0 %833
      %835 = vrot.lane.b32.xlu0 %v251, 112
      %v836 = vpop.permute.xlu0 %835
      %837 = vrot.lane.b32.xlu0 %v252, 112
      %v838 = vpop.permute.xlu0 %837
      %839 = vrot.lane.b32.xlu0 %v253, 80
      %v840 = vpop.permute.xlu0 %839
      %841 = vrot.lane.b32.xlu0 %v254, 80
      %v842 = vpop.permute.xlu0 %841
      %843 = vrot.lane.b32.xlu0 %v255, 80
      %v844 = vpop.permute.xlu0 %843
      %845 = vrot.lane.b32.xlu0 %v256, 80
      %v846 = vpop.permute.xlu0 %845
      %v848 = vsel %vm269, %v832, 0
      %v851 = vsel %vm269, %v834, 0
      %v854 = vsel %vm269, %v836, 0
      %v857 = vsel %vm269, %v838, 0
      %v860 = vsel %vm269, %v840, 0
      %v863 = vsel %vm269, %v842, 0
      %v866 = vsel %vm269, %v844, 0
      %v869 = vsel %vm269, %v846, 0
      %871 = vmatprep.subr.bf16.mxu0 0
      %872 = vmatpush1.bf16.xpose.msra.mxu0 %v860
      %873 = vmatprep.subr.bf16.mxu0 0
      %874 = vmatpush1.bf16.xpose.msra.mxu0 %v863
      %875 = vmatprep.subr.bf16.mxu0 0
      %876 = vmatpush1.bf16.xpose.msra.mxu0 %v866
      %877 = vmatprep.subr.bf16.mxu0 0
      %878 = vmatpush1.bf16.xpose.msra.mxu0 %v869
      %879 = vmatprep.subr.bf16.mxu0 0
      %880 = vmatpush1.bf16.xpose.msra.mxu0 0
      %881 = vmatprep.subr.bf16.mxu0 0
      %882 = vmatpush1.bf16.xpose.msra.mxu0 0
      %883 = vmatprep.subr.bf16.mxu0 0
      %884 = vmatpush1.bf16.xpose.msra.mxu0 0
      %885 = vmatprep.subr.bf16.mxu0 0
      %886 = vmatpush1.bf16.xpose.msra.mxu0 0
      %887 = vmatprep.subr.bf16.mxu0 0
      %888 = vmatpush1.bf16.xpose.msra.mxu0 0
      %889 = vmatprep.subr.bf16.mxu0 0
      %890 = vmatpush1.bf16.xpose.msra.mxu0 0
      %891 = vmatprep.subr.bf16.mxu0 0
      %892 = vmatpush1.bf16.xpose.msra.mxu0 0
      %893 = vmatprep.subr.bf16.mxu0 0
      %894 = vmatpush1.bf16.xpose.msra.mxu0 0
      %895 = vmatprep.subr.bf16.mxu0 0
      %896 = vmatpush1.bf16.xpose.msra.mxu0 0
      %897 = vmatprep.subr.bf16.mxu0 0
      %898 = vmatpush1.bf16.xpose.msra.mxu0 0
      %899 = vmatprep.subr.bf16.mxu0 0
      %900 = vmatpush1.bf16.xpose.msra.mxu0 0
      %901 = vmatprep.subr.bf16.mxu0 0
      %902 = vmatpush1.bf16.xpose.msra.mxu0 0
      %903 = vmatprep.mubr.bf16.mxu0 0
      %904 = vmatmul.mubr.bf16.gmra.mrb[0].mxu0 %v848
      %v905 = vpop.f32.mrb[0].mxu0
      %v906 = vadd.f32 0.0, %v905
      %v907 = vpop.f32.mrb[0].mxu0
      %v908 = vpop.f32.mrb[0].mxu0
      %v909 = vadd.f32 0.0, %v908
      %v910 = vpop.f32.mrb[0].mxu0
      %911 = vmatprep.mubr.bf16.mxu0 0
      %912 = vmatmul.mubr.bf16.gmra.mrb[0].mxu0 %v851
      %v913 = vpop.f32.mrb[0].mxu0
      %v914 = vadd.f32 0.0, %v913
      %v915 = vpop.f32.mrb[0].mxu0
      %v916 = vpop.f32.mrb[0].mxu0
      %v917 = vadd.f32 0.0, %v916
      %v918 = vpop.f32.mrb[0].mxu0
      %919 = vmatprep.mubr.bf16.mxu0 0
      %920 = vmatmul.mubr.bf16.gmra.mrb[0].mxu0 %v854
      %v921 = vpop.f32.mrb[0].mxu0
      %v922 = vadd.f32 0.0, %v921
      %v923 = vpop.f32.mrb[0].mxu0
      %v924 = vpop.f32.mrb[0].mxu0
      %v925 = vadd.f32 0.0, %v924
      %v926 = vpop.f32.mrb[0].mxu0
      %927 = vmatprep.mubr.bf16.mxu0 0
      %928 = vmatmul.mubr.bf16.gmra.mrb[0].mxu0 %v857
      %v929 = vpop.f32.mrb[0].mxu0
      %v930 = vadd.f32 0.0, %v929
      %v931 = vpop.f32.mrb[0].mxu0
      %v932 = vpop.f32.mrb[0].mxu0
      %v933 = vadd.f32 0.0, %v932
      %v934 = vpop.f32.mrb[0].mxu0
      %935 = vdwg.mxu0
      %v936 = vsel %vm359, %v906, -inf
      %937 = vmax.xlane.f32.xlu0 %v936
      %v938 = vpop.xlane.xlu0 %937
      %v939 = vsel %vm359, %v909, -inf
      %940 = vmax.xlane.f32.xlu0 %v939
      %v941 = vpop.xlane.xlu0 %940
      %v942 = vsel %vm359, %v914, -inf
      %943 = vmax.xlane.f32.xlu0 %v942
      %v944 = vpop.xlane.xlu0 %943
      %v945 = vsel %vm359, %v917, -inf
      %946 = vmax.xlane.f32.xlu0 %v945
      %v947 = vpop.xlane.xlu0 %946
      %v948 = vsel %vm359, %v922, -inf
      %949 = vmax.xlane.f32.xlu0 %v948
      %v950 = vpop.xlane.xlu0 %949
      %v951 = vsel %vm359, %v925, -inf
      %952 = vmax.xlane.f32.xlu0 %v951
      %v953 = vpop.xlane.xlu0 %952
      %v954 = vsel %vm359, %v930, -inf
      %955 = vmax.xlane.f32.xlu0 %v954
      %v956 = vpop.xlane.xlu0 %955
      %v957 = vsel %vm359, %v933, -inf
      %958 = vmax.xlane.f32.xlu0 %v957
      %v959 = vpop.xlane.xlu0 %958
      %v960 = vsub.f32 %v906, %v938
      %v961 = vsub.f32 %v909, %v941
      %v962 = vsub.f32 %v914, %v944
      %v963 = vsub.f32 %v917, %v947
      %v964 = vsub.f32 %v922, %v950
      %v965 = vsub.f32 %v925, %v953
      %v966 = vsub.f32 %v930, %v956
      %v967 = vsub.f32 %v933, %v959
      %v968 = vmul.f32 %v960, 1.442695
      %v969 = vpow.pop %v968
      %v970 = vmul.f32 %v961, 1.442695
      %v971 = vpow.pop %v970
      %v972 = vmul.f32 %v962, 1.442695
      %v973 = vpow.pop %v972
      %v974 = vmul.f32 %v963, 1.442695
      %v975 = vpow.pop %v974
      %v976 = vmul.f32 %v964, 1.442695
      %v977 = vpow.pop %v976
      %v978 = vmul.f32 %v965, 1.442695
      %v979 = vpow.pop %v978
      %v980 = vmul.f32 %v966, 1.442695
      %v981 = vpow.pop %v980
      %v982 = vmul.f32 %v967, 1.442695
      %v983 = vpow.pop %v982
      %v984 = vsel %vm359, %v969, 0.0
      %985 = vadd.xlane.f32.xlu0 %v984
      %v986 = vpop.xlane.xlu0 %985
      %v987 = vsel %vm359, %v971, 0.0
      %988 = vadd.xlane.f32.xlu0 %v987
      %v989 = vpop.xlane.xlu0 %988
      %v990 = vsel %vm359, %v973, 0.0
      %991 = vadd.xlane.f32.xlu0 %v990
      %v992 = vpop.xlane.xlu0 %991
      %v993 = vsel %vm359, %v975, 0.0
      %994 = vadd.xlane.f32.xlu0 %v993
      %v995 = vpop.xlane.xlu0 %994
      %v996 = vsel %vm359, %v977, 0.0
      %997 = vadd.xlane.f32.xlu0 %v996
      %v998 = vpop.xlane.xlu0 %997
      %v999 = vsel %vm359, %v979, 0.0
      %1000 = vadd.xlane.f32.xlu0 %v999
      %v1001 = vpop.xlane.xlu0 %1000
      %v1002 = vsel %vm359, %v981, 0.0
      %1003 = vadd.xlane.f32.xlu0 %v1002
      %v1004 = vpop.xlane.xlu0 %1003
      %v1005 = vsel %vm359, %v983, 0.0
      %1006 = vadd.xlane.f32.xlu0 %v1005
      %v1007 = vpop.xlane.xlu0 %1006
      %v1008 = vrcp.pop %v986
      %v1009 = vrcp.pop %v989
      %v1010 = vrcp.pop %v992
      %v1011 = vrcp.pop %v995
      %v1012 = vrcp.pop %v998
      %v1013 = vrcp.pop %v1001
      %v1014 = vrcp.pop %v1004
      %v1015 = vrcp.pop %v1007
      %v1016 = vmul.f32 %v969, %v1008
      %v1017 = vmul.f32 %v971, %v1009
      %v1018 = vmul.f32 %v973, %v1010
      %v1019 = vmul.f32 %v975, %v1011
      %v1020 = vmul.f32 %v977, %v1012
      %v1021 = vmul.f32 %v979, %v1013
      %v1022 = vmul.f32 %v981, %v1014
      %v1023 = vmul.f32 %v983, %v1015
      %v1024 = vpack.c.bf16 %v1017, %v1016
      %v1025 = vpack.c.bf16 %v1019, %v1018
      %v1026 = vpack.c.bf16 %v1021, %v1020
      %v1027 = vpack.c.bf16 %v1023, %v1022
      %1028 = vrot.lane.b32.xlu0 %v253, 48
      %v1029 = vpop.permute.xlu0 %1028
      %1030 = vrot.lane.b32.xlu0 %v254, 48
      %v1031 = vpop.permute.xlu0 %1030
      %1032 = vrot.lane.b32.xlu0 %v255, 48
      %v1033 = vpop.permute.xlu0 %1032
      %1034 = vrot.lane.b32.xlu0 %v256, 48
      %v1035 = vpop.permute.xlu0 %1034
      %v1041 = vsel %vm359, %v1024, 0
      %v1044 = vsel %vm359, %v1025, 0
      %v1047 = vsel %vm359, %v1026, 0
      %v1050 = vsel %vm359, %v1027, 0
      %1052 = vmatprep.subr.bf16.mxu0 0
      %1053 = vmatpush1.bf16.msra.mxu0 %v1029
      %1054 = vmatprep.subr.bf16.mxu0 0
      %1055 = vmatpush1.bf16.msra.mxu0 %v1031
      %1056 = vmatprep.subr.bf16.mxu0 0
      %1057 = vmatpush1.bf16.msra.mxu0 %v1033
      %1058 = vmatprep.subr.bf16.mxu0 0
      %1059 = vmatpush1.bf16.msra.mxu0 %v1035
      %1060 = vmatprep.subr.bf16.mxu0 0
      %1061 = vmatpush1.bf16.msra.mxu0 0
      %1062 = vmatprep.subr.bf16.mxu0 0
      %1063 = vmatpush1.bf16.msra.mxu0 0
      %1064 = vmatprep.subr.bf16.mxu0 0
      %1065 = vmatpush1.bf16.msra.mxu0 0
      %1066 = vmatprep.subr.bf16.mxu0 0
      %1067 = vmatpush1.bf16.msra.mxu0 0
      %1068 = vmatprep.subr.bf16.mxu0 0
      %1069 = vmatpush1.bf16.msra.mxu0 0
      %1070 = vmatprep.subr.bf16.mxu0 0
      %1071 = vmatpush1.bf16.msra.mxu0 0
      %1072 = vmatprep.subr.bf16.mxu0 0
      %1073 = vmatpush1.bf16.msra.mxu0 0
      %1074 = vmatprep.subr.bf16.mxu0 0
      %1075 = vmatpush1.bf16.msra.mxu0 0
      %1076 = vmatprep.subr.bf16.mxu0 0
      %1077 = vmatpush1.bf16.msra.mxu0 0
      %1078 = vmatprep.subr.bf16.mxu0 0
      %1079 = vmatpush1.bf16.msra.mxu0 0
      %1080 = vmatprep.subr.bf16.mxu0 0
      %1081 = vmatpush1.bf16.msra.mxu0 0
      %1082 = vmatprep.subr.bf16.mxu0 0
      %1083 = vmatpush1.bf16.msra.mxu0 0
      %1084 = vmatprep.mubr.bf16.mxu0 0
      %1085 = vmatmul.mubr.bf16.gmra.mrb[0].mxu0 %v1041
      %v1086 = vpop.f32.mrb[0].mxu0
      %v1087 = vadd.f32 0.0, %v1086
      %v1088 = vpop.f32.mrb[0].mxu0
      %v1089 = vpop.f32.mrb[0].mxu0
      %v1090 = vadd.f32 0.0, %v1089
      %v1091 = vpop.f32.mrb[0].mxu0
      %1092 = vmatprep.mubr.bf16.mxu0 0
      %1093 = vmatmul.mubr.bf16.gmra.mrb[0].mxu0 %v1044
      %v1094 = vpop.f32.mrb[0].mxu0
      %v1095 = vadd.f32 0.0, %v1094
      %v1096 = vpop.f32.mrb[0].mxu0
      %v1097 = vpop.f32.mrb[0].mxu0
      %v1098 = vadd.f32 0.0, %v1097
      %v1099 = vpop.f32.mrb[0].mxu0
      %1100 = vmatprep.mubr.bf16.mxu0 0
      %1101 = vmatmul.mubr.bf16.gmra.mrb[0].mxu0 %v1047
      %v1102 = vpop.f32.mrb[0].mxu0
      %v1103 = vadd.f32 0.0, %v1102
      %v1104 = vpop.f32.mrb[0].mxu0
      %v1105 = vpop.f32.mrb[0].mxu0
      %v1106 = vadd.f32 0.0, %v1105
      %v1107 = vpop.f32.mrb[0].mxu0
      %1108 = vmatprep.mubr.bf16.mxu0 0
      %1109 = vmatmul.mubr.bf16.gmra.mrb[0].mxu0 %v1050
      %v1110 = vpop.f32.mrb[0].mxu0
      %v1111 = vadd.f32 0.0, %v1110
      %v1112 = vpop.f32.mrb[0].mxu0
      %v1113 = vpop.f32.mrb[0].mxu0
      %v1114 = vadd.f32 0.0, %v1113
      %v1115 = vpop.f32.mrb[0].mxu0
      %1116 = vdwg.mxu0
      %1117 = vrot.lane.b32.xlu0 %v249, 104
      %v1118 = vpop.permute.xlu0 %1117
      %1119 = vrot.lane.b32.xlu0 %v250, 104
      %v1120 = vpop.permute.xlu0 %1119
      %1121 = vrot.lane.b32.xlu0 %v251, 104
      %v1122 = vpop.permute.xlu0 %1121
      %1123 = vrot.lane.b32.xlu0 %v252, 104
      %v1124 = vpop.permute.xlu0 %1123
      %1125 = vrot.lane.b32.xlu0 %v253, 72
      %v1126 = vpop.permute.xlu0 %1125
      %1127 = vrot.lane.b32.xlu0 %v254, 72
      %v1128 = vpop.permute.xlu0 %1127
      %1129 = vrot.lane.b32.xlu0 %v255, 72
      %v1130 = vpop.permute.xlu0 %1129
      %1131 = vrot.lane.b32.xlu0 %v256, 72
      %v1132 = vpop.permute.xlu0 %1131
      %v1134 = vsel %vm269, %v1118, 0
      %v1137 = vsel %vm269, %v1120, 0
      %v1140 = vsel %vm269, %v1122, 0
      %v1143 = vsel %vm269, %v1124, 0
      %v1146 = vsel %vm269, %v1126, 0
      %v1149 = vsel %vm269, %v1128, 0
      %v1152 = vsel %vm269, %v1130, 0
      %v1155 = vsel %vm269, %v1132, 0
      %1157 = vmatprep.subr.bf16.mxu0 0
      %1158 = vmatpush1.bf16.xpose.msra.mxu0 %v1146
      %1159 = vmatprep.subr.bf16.mxu0 0
      %1160 = vmatpush1.bf16.xpose.msra.mxu0 %v1149
      %1161 = vmatprep.subr.bf16.mxu0 0
      %1162 = vmatpush1.bf16.xpose.msra.mxu0 %v1152
      %1163 = vmatprep.subr.bf16.mxu0 0
      %1164 = vmatpush1.bf16.xpose.msra.mxu0 %v1155
      %1165 = vmatprep.subr.bf16.mxu0 0
      %1166 = vmatpush1.bf16.xpose.msra.mxu0 0
      %1167 = vmatprep.subr.bf16.mxu0 0
      %1168 = vmatpush1.bf16.xpose.msra.mxu0 0
      %1169 = vmatprep.subr.bf16.mxu0 0
      %1170 = vmatpush1.bf16.xpose.msra.mxu0 0
      %1171 = vmatprep.subr.bf16.mxu0 0
      %1172 = vmatpush1.bf16.xpose.msra.mxu0 0
      %1173 = vmatprep.subr.bf16.mxu0 0
      %1174 = vmatpush1.bf16.xpose.msra.mxu0 0
      %1175 = vmatprep.subr.bf16.mxu0 0
      %1176 = vmatpush1.bf16.xpose.msra.mxu0 0
      %1177 = vmatprep.subr.bf16.mxu0 0
      %1178 = vmatpush1.bf16.xpose.msra.mxu0 0
      %1179 = vmatprep.subr.bf16.mxu0 0
      %1180 = vmatpush1.bf16.xpose.msra.mxu0 0
      %1181 = vmatprep.subr.bf16.mxu0 0
      %1182 = vmatpush1.bf16.xpose.msra.mxu0 0
      %1183 = vmatprep.subr.bf16.mxu0 0
      %1184 = vmatpush1.bf16.xpose.msra.mxu0 0
      %1185 = vmatprep.subr.bf16.mxu0 0
      %1186 = vmatpush1.bf16.xpose.msra.mxu0 0
      %1187 = vmatprep.subr.bf16.mxu0 0
      %1188 = vmatpush1.bf16.xpose.msra.mxu0 0
      %1189 = vmatprep.mubr.bf16.mxu0 0
      %1190 = vmatmul.mubr.bf16.gmra.mrb[0].mxu0 %v1134
      %v1191 = vpop.f32.mrb[0].mxu0
      %v1192 = vadd.f32 0.0, %v1191
      %v1193 = vpop.f32.mrb[0].mxu0
      %v1194 = vpop.f32.mrb[0].mxu0
      %v1195 = vadd.f32 0.0, %v1194
      %v1196 = vpop.f32.mrb[0].mxu0
      %1197 = vmatprep.mubr.bf16.mxu0 0
      %1198 = vmatmul.mubr.bf16.gmra.mrb[0].mxu0 %v1137
      %v1199 = vpop.f32.mrb[0].mxu0
      %v1200 = vadd.f32 0.0, %v1199
      %v1201 = vpop.f32.mrb[0].mxu0
      %v1202 = vpop.f32.mrb[0].mxu0
      %v1203 = vadd.f32 0.0, %v1202
      %v1204 = vpop.f32.mrb[0].mxu0
      %1205 = vmatprep.mubr.bf16.mxu0 0
      %1206 = vmatmul.mubr.bf16.gmra.mrb[0].mxu0 %v1140
      %v1207 = vpop.f32.mrb[0].mxu0
      %v1208 = vadd.f32 0.0, %v1207
      %v1209 = vpop.f32.mrb[0].mxu0
      %v1210 = vpop.f32.mrb[0].mxu0
      %v1211 = vadd.f32 0.0, %v1210
      %v1212 = vpop.f32.mrb[0].mxu0
      %1213 = vmatprep.mubr.bf16.mxu0 0
      %1214 = vmatmul.mubr.bf16.gmra.mrb[0].mxu0 %v1143
      %v1215 = vpop.f32.mrb[0].mxu0
      %v1216 = vadd.f32 0.0, %v1215
      %v1217 = vpop.f32.mrb[0].mxu0
      %v1218 = vpop.f32.mrb[0].mxu0
      %v1219 = vadd.f32 0.0, %v1218
      %v1220 = vpop.f32.mrb[0].mxu0
      %1221 = vdwg.mxu0
      %v1222 = vsel %vm359, %v1192, -inf
      %1223 = vmax.xlane.f32.xlu0 %v1222
      %v1224 = vpop.xlane.xlu0 %1223
      %v1225 = vsel %vm359, %v1195, -inf
      %1226 = vmax.xlane.f32.xlu0 %v1225
      %v1227 = vpop.xlane.xlu0 %1226
      %v1228 = vsel %vm359, %v1200, -inf
      %1229 = vmax.xlane.f32.xlu0 %v1228
      %v1230 = vpop.xlane.xlu0 %1229
      %v1231 = vsel %vm359, %v1203, -inf
      %1232 = vmax.xlane.f32.xlu0 %v1231
      %v1233 = vpop.xlane.xlu0 %1232
      %v1234 = vsel %vm359, %v1208, -inf
      %1235 = vmax.xlane.f32.xlu0 %v1234
      %v1236 = vpop.xlane.xlu0 %1235
      %v1237 = vsel %vm359, %v1211, -inf
      %1238 = vmax.xlane.f32.xlu0 %v1237
      %v1239 = vpop.xlane.xlu0 %1238
      %v1240 = vsel %vm359, %v1216, -inf
      %1241 = vmax.xlane.f32.xlu0 %v1240
      %v1242 = vpop.xlane.xlu0 %1241
      %v1243 = vsel %vm359, %v1219, -inf
      %1244 = vmax.xlane.f32.xlu0 %v1243
      %v1245 = vpop.xlane.xlu0 %1244
      %v1246 = vsub.f32 %v1192, %v1224
      %v1247 = vsub.f32 %v1195, %v1227
      %v1248 = vsub.f32 %v1200, %v1230
      %v1249 = vsub.f32 %v1203, %v1233
      %v1250 = vsub.f32 %v1208, %v1236
      %v1251 = vsub.f32 %v1211, %v1239
      %v1252 = vsub.f32 %v1216, %v1242
      %v1253 = vsub.f32 %v1219, %v1245
      %v1254 = vmul.f32 %v1246, 1.442695
      %v1255 = vpow.pop %v1254
      %v1256 = vmul.f32 %v1247, 1.442695
      %v1257 = vpow.pop %v1256
      %v1258 = vmul.f32 %v1248, 1.442695
      %v1259 = vpow.pop %v1258
      %v1260 = vmul.f32 %v1249, 1.442695
      %v1261 = vpow.pop %v1260
      %v1262 = vmul.f32 %v1250, 1.442695
      %v1263 = vpow.pop %v1262
      %v1264 = vmul.f32 %v1251, 1.442695
      %v1265 = vpow.pop %v1264
      %v1266 = vmul.f32 %v1252, 1.442695
      %v1267 = vpow.pop %v1266
      %v1268 = vmul.f32 %v1253, 1.442695
      %v1269 = vpow.pop %v1268
      %v1270 = vsel %vm359, %v1255, 0.0
      %1271 = vadd.xlane.f32.xlu0 %v1270
      %v1272 = vpop.xlane.xlu0 %1271
      %v1273 = vsel %vm359, %v1257, 0.0
      %1274 = vadd.xlane.f32.xlu0 %v1273
      %v1275 = vpop.xlane.xlu0 %1274
      %v1276 = vsel %vm359, %v1259, 0.0
      %1277 = vadd.xlane.f32.xlu0 %v1276
      %v1278 = vpop.xlane.xlu0 %1277
      %v1279 = vsel %vm359, %v1261, 0.0
      %1280 = vadd.xlane.f32.xlu0 %v1279
      %v1281 = vpop.xlane.xlu0 %1280
      %v1282 = vsel %vm359, %v1263, 0.0
      %1283 = vadd.xlane.f32.xlu0 %v1282
      %v1284 = vpop.xlane.xlu0 %1283
      %v1285 = vsel %vm359, %v1265, 0.0
      %1286 = vadd.xlane.f32.xlu0 %v1285
      %v1287 = vpop.xlane.xlu0 %1286
      %v1288 = vsel %vm359, %v1267, 0.0
      %1289 = vadd.xlane.f32.xlu0 %v1288
      %v1290 = vpop.xlane.xlu0 %1289
      %v1291 = vsel %vm359, %v1269, 0.0
      %1292 = vadd.xlane.f32.xlu0 %v1291
      %v1293 = vpop.xlane.xlu0 %1292
      %v1294 = vrcp.pop %v1272
      %v1295 = vrcp.pop %v1275
      %v1296 = vrcp.pop %v1278
      %v1297 = vrcp.pop %v1281
      %v1298 = vrcp.pop %v1284
      %v1299 = vrcp.pop %v1287
      %v1300 = vrcp.pop %v1290
      %v1301 = vrcp.pop %v1293
      %v1302 = vmul.f32 %v1255, %v1294
      %v1303 = vmul.f32 %v1257, %v1295
      %v1304 = vmul.f32 %v1259, %v1296
      %v1305 = vmul.f32 %v1261, %v1297
      %v1306 = vmul.f32 %v1263, %v1298
      %v1307 = vmul.f32 %v1265, %v1299
      %v1308 = vmul.f32 %v1267, %v1300
      %v1309 = vmul.f32 %v1269, %v1301
      %v1310 = vpack.c.bf16 %v1303, %v1302
      %v1311 = vpack.c.bf16 %v1305, %v1304
      %v1312 = vpack.c.bf16 %v1307, %v1306
      %v1313 = vpack.c.bf16 %v1309, %v1308
      %1314 = vrot.lane.b32.xlu0 %v253, 40
      %v1315 = vpop.permute.xlu0 %1314
      %1316 = vrot.lane.b32.xlu0 %v254, 40
      %v1317 = vpop.permute.xlu0 %1316
      %1318 = vrot.lane.b32.xlu0 %v255, 40
      %v1319 = vpop.permute.xlu0 %1318
      %1320 = vrot.lane.b32.xlu0 %v256, 40
      %v1321 = vpop.permute.xlu0 %1320
      %v1327 = vsel %vm359, %v1310, 0
      %v1330 = vsel %vm359, %v1311, 0
      %v1333 = vsel %vm359, %v1312, 0
      %v1336 = vsel %vm359, %v1313, 0
      %1338 = vmatprep.subr.bf16.mxu0 0
      %1339 = vmatpush1.bf16.msra.mxu0 %v1315
      %1340 = vmatprep.subr.bf16.mxu0 0
      %1341 = vmatpush1.bf16.msra.mxu0 %v1317
      %1342 = vmatprep.subr.bf16.mxu0 0
      %1343 = vmatpush1.bf16.msra.mxu0 %v1319
      %1344 = vmatprep.subr.bf16.mxu0 0
      %1345 = vmatpush1.bf16.msra.mxu0 %v1321
      %1346 = vmatprep.subr.bf16.mxu0 0
      %1347 = vmatpush1.bf16.msra.mxu0 0
      %1348 = vmatprep.subr.bf16.mxu0 0
      %1349 = vmatpush1.bf16.msra.mxu0 0
      %1350 = vmatprep.subr.bf16.mxu0 0
      %1351 = vmatpush1.bf16.msra.mxu0 0
      %1352 = vmatprep.subr.bf16.mxu0 0
      %1353 = vmatpush1.bf16.msra.mxu0 0
      %1354 = vmatprep.subr.bf16.mxu0 0
      %1355 = vmatpush1.bf16.msra.mxu0 0
      %1356 = vmatprep.subr.bf16.mxu0 0
      %1357 = vmatpush1.bf16.msra.mxu0 0
      %1358 = vmatprep.subr.bf16.mxu0 0
      %1359 = vmatpush1.bf16.msra.mxu0 0
      %1360 = vmatprep.subr.bf16.mxu0 0
      %1361 = vmatpush1.bf16.msra.mxu0 0
      %1362 = vmatprep.subr.bf16.mxu0 0
      %1363 = vmatpush1.bf16.msra.mxu0 0
      %1364 = vmatprep.subr.bf16.mxu0 0
      %1365 = vmatpush1.bf16.msra.mxu0 0
      %1366 = vmatprep.subr.bf16.mxu0 0
      %1367 = vmatpush1.bf16.msra.mxu0 0
      %1368 = vmatprep.subr.bf16.mxu0 0
      %1369 = vmatpush1.bf16.msra.mxu0 0
      %1370 = vmatprep.mubr.bf16.mxu0 0
      %1371 = vmatmul.mubr.bf16.gmra.mrb[0].mxu0 %v1327
      %v1372 = vpop.f32.mrb[0].mxu0
      %v1373 = vadd.f32 0.0, %v1372
      %v1374 = vpop.f32.mrb[0].mxu0
      %v1375 = vpop.f32.mrb[0].mxu0
      %v1376 = vadd.f32 0.0, %v1375
      %v1377 = vpop.f32.mrb[0].mxu0
      %1378 = vmatprep.mubr.bf16.mxu0 0
      %1379 = vmatmul.mubr.bf16.gmra.mrb[0].mxu0 %v1330
      %v1380 = vpop.f32.mrb[0].mxu0
      %v1381 = vadd.f32 0.0, %v1380
      %v1382 = vpop.f32.mrb[0].mxu0
      %v1383 = vpop.f32.mrb[0].mxu0
      %v1384 = vadd.f32 0.0, %v1383
      %v1385 = vpop.f32.mrb[0].mxu0
      %1386 = vmatprep.mubr.bf16.mxu0 0
      %1387 = vmatmul.mubr.bf16.gmra.mrb[0].mxu0 %v1333
      %v1388 = vpop.f32.mrb[0].mxu0
      %v1389 = vadd.f32 0.0, %v1388
      %v1390 = vpop.f32.mrb[0].mxu0
      %v1391 = vpop.f32.mrb[0].mxu0
      %v1392 = vadd.f32 0.0, %v1391
      %v1393 = vpop.f32.mrb[0].mxu0
      %1394 = vmatprep.mubr.bf16.mxu0 0
      %1395 = vmatmul.mubr.bf16.gmra.mrb[0].mxu0 %v1336
      %v1396 = vpop.f32.mrb[0].mxu0
      %v1397 = vadd.f32 0.0, %v1396
      %v1398 = vpop.f32.mrb[0].mxu0
      %v1399 = vpop.f32.mrb[0].mxu0
      %v1400 = vadd.f32 0.0, %v1399
      %v1401 = vpop.f32.mrb[0].mxu0
      %1402 = vdwg.mxu0
      %1411 = vrot.lane.b32.xlu0 %v801, 8
      %v1412 = vpop.permute.xlu0 %1411
      %1413 = vrot.lane.b32.xlu0 %v804, 8
      %v1414 = vpop.permute.xlu0 %1413
      %1415 = vrot.lane.b32.xlu0 %v809, 8
      %v1416 = vpop.permute.xlu0 %1415
      %1417 = vrot.lane.b32.xlu0 %v812, 8
      %v1418 = vpop.permute.xlu0 %1417
      %1419 = vrot.lane.b32.xlu0 %v817, 8
      %v1420 = vpop.permute.xlu0 %1419
      %1421 = vrot.lane.b32.xlu0 %v820, 8
      %v1422 = vpop.permute.xlu0 %1421
      %1423 = vrot.lane.b32.xlu0 %v825, 8
      %v1424 = vpop.permute.xlu0 %1423
      %1425 = vrot.lane.b32.xlu0 %v828, 8
      %v1426 = vpop.permute.xlu0 %1425
      %1443 = vrot.lane.b32.xlu0 %v1087, 16
      %v1444 = vpop.permute.xlu0 %1443
      %1445 = vrot.lane.b32.xlu0 %v1090, 16
      %v1446 = vpop.permute.xlu0 %1445
      %1447 = vrot.lane.b32.xlu0 %v1095, 16
      %v1448 = vpop.permute.xlu0 %1447
      %1449 = vrot.lane.b32.xlu0 %v1098, 16
      %v1450 = vpop.permute.xlu0 %1449
      %1451 = vrot.lane.b32.xlu0 %v1103, 16
      %v1452 = vpop.permute.xlu0 %1451
      %1453 = vrot.lane.b32.xlu0 %v1106, 16
      %v1454 = vpop.permute.xlu0 %1453
      %1455 = vrot.lane.b32.xlu0 %v1111, 16
      %v1456 = vpop.permute.xlu0 %1455
      %1457 = vrot.lane.b32.xlu0 %v1114, 16
      %v1458 = vpop.permute.xlu0 %1457
      %1475 = vrot.lane.b32.xlu0 %v1373, 24
      %v1476 = vpop.permute.xlu0 %1475
      %1477 = vrot.lane.b32.xlu0 %v1376, 24
      %v1478 = vpop.permute.xlu0 %1477
      %1479 = vrot.lane.b32.xlu0 %v1381, 24
      %v1480 = vpop.permute.xlu0 %1479
      %1481 = vrot.lane.b32.xlu0 %v1384, 24
      %v1482 = vpop.permute.xlu0 %1481
      %1483 = vrot.lane.b32.xlu0 %v1389, 24
      %v1484 = vpop.permute.xlu0 %1483
      %1485 = vrot.lane.b32.xlu0 %v1392, 24
      %v1486 = vpop.permute.xlu0 %1485
      %1487 = vrot.lane.b32.xlu0 %v1397, 24
      %v1488 = vpop.permute.xlu0 %1487
      %1489 = vrot.lane.b32.xlu0 %v1400, 24
      %v1490 = vpop.permute.xlu0 %1489
      %v1499 = vsel %vm269, %v511, %v1412
      %v1500 = vsel %vm269, %v514, %v1414
      %v1501 = vsel %vm269, %v519, %v1416
      %v1502 = vsel %vm269, %v522, %v1418
      %v1503 = vsel %vm269, %v527, %v1420
      %v1504 = vsel %vm269, %v530, %v1422
      %v1505 = vsel %vm269, %v535, %v1424
      %v1506 = vsel %vm269, %v538, %v1426
      %vm1507 = vcmask 130048
      %v1508 = vsel %vm1507, %v1499, %v1444
      %v1509 = vsel %vm1507, %v1500, %v1446
      %v1510 = vsel %vm1507, %v1501, %v1448
      %v1511 = vsel %vm1507, %v1502, %v1450
      %v1512 = vsel %vm1507, %v1503, %v1452
      %v1513 = vsel %vm1507, %v1504, %v1454
      %v1514 = vsel %vm1507, %v1505, %v1456
      %v1515 = vsel %vm1507, %v1506, %v1458
      %vm1516 = vcmask 195584
      %v1517 = vsel %vm1516, %v1508, %v1476
      %v1518 = vsel %vm1516, %v1509, %v1478
      %v1519 = vsel %vm1516, %v1510, %v1480
      %v1520 = vsel %vm1516, %v1511, %v1482
      %v1521 = vsel %vm1516, %v1512, %v1484
      %v1522 = vsel %vm1516, %v1513, %v1486
      %v1523 = vsel %vm1516, %v1514, %v1488
      %v1524 = vsel %vm1516, %v1515, %v1490
      %1525 = vst.msk [vmem:[%s143] sm:$0xff] %vm163, %v1517
      %1526 = vst.msk [vmem:[%s143 + $0x8] sm:$0xff] %vm163, %v1518
      %1527 = vst.msk [vmem:[%s143 + $0x10] sm:$0xff] %vm163, %v1519
      %1528 = vst.msk [vmem:[%s143 + $0x18] sm:$0xff] %vm163, %v1520
      %1529 = vst.msk [vmem:[%s143 + $0x20] sm:$0xff] %vm163, %v1521
      %1530 = vst.msk [vmem:[%s143 + $0x28] sm:$0xff] %vm163, %v1522
      %1531 = vst.msk [vmem:[%s143 + $0x30] sm:$0xff] %vm163, %v1523
      %1532 = vst.msk [vmem:[%s143 + $0x38] sm:$0xff] %vm163, %v1524
      %p1533 = scmp.lt.s32.totalorder %s13, 1
      %s1534 = scalar_select %p1533, %s13, 1
      %s1535 = smul.addr %s1534, 8
      %s1536 = smul.addr %s1535, 8
      %s1537 = scalar_lea.vmem %s2, %s1536
      // Predicated region
      $region29: #{global_sparse_attn.2} parent=27 // pred_check
        %p1538 = pneg %p78
      $region30: #{global_sparse_attn.2} parent=27 // pred_check_branch
        %1540 = sbr.rel (%p1538) target = $region32
      $region31: #{global_sparse_attn.2} parent=27 // pred_region
        _
      $region32: #{global_sparse_attn.2} parent=27 // pred_fallthru
        _
    $region28: #{global_sparse_attn.2} parent=5 // pred_fallthru
      _
    %p1541 = scmp.le.s32.totalorder 2, %s8
    // Predicated region
    $region33: #{global_sparse_attn.2} parent=5 // pred_check
      %p1542 = pneg %p1541
    $region34: #{global_sparse_attn.2} parent=5 // pred_check_branch
      %1544 = sbr.rel (%p1542) target = $region36
    $region35: #{global_sparse_attn.2} parent=5 // pred_region
      %s1545 = ssub.s32 %s8, 2
      // Predicated region
      $region37: #{global_sparse_attn.2} parent=35 // pred_check
        %p1546 = pneg %p84
      $region38: #{global_sparse_attn.2} parent=35 // pred_check_branch
        %1548 = sbr.rel (%p1546) target = $region40
      $region39: #{global_sparse_attn.2} parent=35 // pred_region
        %p1549 = scmp.lt.s32.totalorder %s14, 1
        %s1550 = scalar_select %p1549, %s14, 1
        %s1551 = smul.addr %s1550, 8
        %s1552 = smul.addr %s1551, 8
        %s1553 = scalar_lea.vmem %s2, %s1552
      $region40: #{global_sparse_attn.2} parent=35 // pred_fallthru
        _
    $region36: #{global_sparse_attn.2} parent=5 // pred_fallthru
      _
  $region6: #{global_sparse_attn.2} parent=0 // loop_footer
    %s12 = sadd.s32 1, %s8
  $region7: #{global_sparse_attn.2} parent=0 // loop_footer_branch
    %7 = sbr.rel target = $region3
  $region8: #{global_sparse_attn.2} parent=0 // loop_exit
    _

</llo_original>
